<compile_context>
chip_gen: v6e
topology: v6e:2x2x1
jax: 0.10.0
libtpu: 0.0.40
codegen_flags: <defaults>
</compile_context>

<pallas_src>
import functools

import jax
import jax.numpy as jnp
from jax.experimental import pallas as pl
from jax.experimental.pallas import tpu as pltpu


# ---------------------------------------------------------------------------
# Kernel 1: series_decomp seasonal residual (moving average with replicate pad)
# ---------------------------------------------------------------------------

def _decomp_kernel(xp_ref, res_ref, *, dk, L):
    pad = (dk - 1) // 2
    acc = xp_ref[0:L, :]
    for off in range(1, dk):                      # dk is small & static -> unrolled adds
        acc = acc + xp_ref[off:off + L, :]
    mean = acc * (1.0 / dk)
    res_ref[...] = (xp_ref[pad:pad + L, :] - mean).astype(res_ref.dtype)


def series_decomp_seasonal(x, dk):
    """x:[B,L,D] -> seasonal residual [B,L,D] (the trend is discarded by MIC)."""
    B, L, D = x.shape
    pad = (dk - 1) // 2
    front = jnp.broadcast_to(x[:, :1, :], (B, pad, D))
    end = jnp.broadcast_to(x[:, -1:, :], (B, pad, D))
    xp = jnp.concatenate([front, x, end], axis=1)          # [B, L + dk - 1, D]
    Lp = L + 2 * pad
    return pl.pallas_call(
        functools.partial(_decomp_kernel, dk=dk, L=L),
        out_shape=jax.ShapeDtypeStruct((B, L, D), jnp.float32),
        grid=(B,),
        in_specs=[pl.BlockSpec((None, Lp, D), lambda b: (b, 0, 0))],
        out_specs=pl.BlockSpec((None, L, D), lambda b: (b, 0, 0)),
        compiler_params=pltpu.CompilerParams(dimension_semantics=("parallel",)),
    )(xp)


# ---------------------------------------------------------------------------
# Kernel 2: fused MIC branch
#   strided conv + tanh -> isometric causal conv + tanh -> add + LayerNorm
#   -> ConvTranspose (stride == kernel) + tanh
# ---------------------------------------------------------------------------

def _branch_kernel(patches_ref, wc_ref, bc_ref, wi_ref, bi_ref, g_ref, be_ref,
                   wt_ref, bt_ref, o_ref, xi_acc, *, L_out, D, eps):
    # --- Conv1d(kernel=k, stride=k, padding=k//2) + tanh (im2col already applied) ---
    x1 = jnp.tanh(jnp.dot(patches_ref[...], wc_ref[...],
                          preferred_element_type=jnp.float32) + bc_ref[...])   # [L_out, D]

    # --- isometric causal Conv1d (kernel = L_out) on [zeros(L_out-1), x1] + tanh ---
    # out[t] = b + sum_{d=0}^{t} x1[t-d] @ W_d  (diagonal-offset accumulation,
    # stays entirely in VMEM — the [L_out, L_out*D] im2col is never materialized).
    xi_acc[...] = jnp.zeros((L_out, D), jnp.float32) + bi_ref[...]
    for d in range(L_out):                                  # L_out is small & static
        w_d = wi_ref[d * D:(d + 1) * D, :]                  # [D, D]
        y = jnp.dot(x1[:L_out - d, :], w_d, preferred_element_type=jnp.float32)
        xi_acc[d:, :] = xi_acc[d:, :] + y
    xi = jnp.tanh(xi_acc[...])

    # --- residual add + LayerNorm over the feature dim ---
    xs = xi + x1
    mean = jnp.mean(xs, axis=-1, keepdims=True)
    var = jnp.mean(jnp.square(xs - mean), axis=-1, keepdims=True)
    xn = (xs - mean) * jax.lax.rsqrt(var + eps) * g_ref[...] + be_ref[...]

    # --- ConvTranspose1d(kernel=k, stride=k, padding=0) + tanh ---
    # Output kept as [L_out, k*D] (columns ordered (r, o)); the cheap reshape to
    # [L_out*k, D] + truncation to L happens in XLA outside the kernel.
    o_ref[...] = jnp.tanh(jnp.dot(xn, wt_ref[...],
                                  preferred_element_type=jnp.float32) + bt_ref[...])


def mic_branch(res, br, L):
    """res:[B,L,D] (seasonal residual) -> [B,L,D]. Matches MIC.conv_trans_conv."""
    B, _, D = res.shape
    k = br["conv_k"]
    p = k // 2
    L_out = (L + 2 * p - k) // k + 1
    assert br["iso_k"] == L_out, (br["iso_k"], L_out)
    total = L_out * k
    kD = k * D

    # im2col for a stride==kernel conv is a plain zero-pad + reshape (no gather,
    # no data duplication): windows are non-overlapping.
    tail = max(0, total - L - p)
    resp = jnp.pad(res, ((0, 0), (p, tail), (0, 0)))[:, :total, :]
    patches = resp.reshape(B, L_out, kD)                    # columns ordered (tau, in)

    flops = int(B * (2 * L_out * kD * D                     # strided conv
                     + D * D * L_out * (L_out + 1)          # isometric (banded)
                     + 2 * L_out * D * kD))                 # transpose conv
    transcendentals = int(B * L_out * (2 * D + kD))
    bytes_accessed = int(4 * (2 * B * L_out * kD + kD * D + L_out * D * D
                              + D * kD + 4 * D + kD))

    out = pl.pallas_call(
        functools.partial(_branch_kernel, L_out=L_out, D=D, eps=1e-5),
        out_shape=jax.ShapeDtypeStruct((B, L_out, kD), jnp.float32),
        grid=(B,),
        in_specs=[
            pl.BlockSpec((None, L_out, kD), lambda b: (b, 0, 0)),   # patches
            pl.BlockSpec((kD, D), lambda b: (0, 0)),                # conv weight
            pl.BlockSpec((1, D), lambda b: (0, 0)),                 # conv bias
            pl.BlockSpec((L_out * D, D), lambda b: (0, 0)),         # iso weight (diag)
            pl.BlockSpec((1, D), lambda b: (0, 0)),                 # iso bias
            pl.BlockSpec((1, D), lambda b: (0, 0)),                 # LN gamma
            pl.BlockSpec((1, D), lambda b: (0, 0)),                 # LN beta
            pl.BlockSpec((D, kD), lambda b: (0, 0)),                # transconv weight
            pl.BlockSpec((1, kD), lambda b: (0, 0)),                # transconv bias
        ],
        out_specs=pl.BlockSpec((None, L_out, kD), lambda b: (b, 0, 0)),
        scratch_shapes=[pltpu.VMEM((L_out, D), jnp.float32)],
        compiler_params=pltpu.CompilerParams(dimension_semantics=("parallel",)),
        cost_estimate=pl.CostEstimate(flops=flops, transcendentals=transcendentals,
                                      bytes_accessed=bytes_accessed),
    )(patches, br["conv_w"], br["conv_b"], br["iso_w"], br["iso_b"],
      br["ln_g"], br["ln_b"], br["trans_w"], br["trans_b"])

    # [B, L_out, k*D] -> [B, L_out*k, D], truncate to L (ConvTranspose crop).
    return out.reshape(B, total, D)[:, :L, :]


# ---------------------------------------------------------------------------
# Kernel 3: fused branch merge  (Conv2d kernel=(n_k, 1)  ==  bias + sum_j X_j @ W_j)
# ---------------------------------------------------------------------------

def _merge_kernel(*args, n_k, D):
    x_refs = args[:n_k]
    w_ref, b_ref, o_ref = args[n_k], args[n_k + 1], args[n_k + 2]
    acc = jnp.zeros(o_ref.shape, jnp.float32) + b_ref[...]
    for j in range(n_k):
        acc = acc + jnp.dot(x_refs[j][...], w_ref[j * D:(j + 1) * D, :],
                            preferred_element_type=jnp.float32)
    o_ref[...] = acc.astype(o_ref.dtype)


def mic_layer(src, layer):
    """One MIC block: src [B,L,D] -> [B,L,D]."""
    B, L, D = src.shape
    branch_outs = []
    for br in layer["branches"]:
        res = series_decomp_seasonal(src, br["decomp_k"])   # seasonal part (trend unused)
        branch_outs.append(mic_branch(res, br, L))
    n_k = len(branch_outs)

    in_specs = [pl.BlockSpec((None, L, D), lambda b: (b, 0, 0)) for _ in range(n_k)]
    in_specs += [pl.BlockSpec((n_k * D, D), lambda b: (0, 0)),
                 pl.BlockSpec((1, D), lambda b: (0, 0))]
    return pl.pallas_call(
        functools.partial(_merge_kernel, n_k=n_k, D=D),
        out_shape=jax.ShapeDtypeStruct((B, L, D), jnp.float32),
        grid=(B,),
        in_specs=in_specs,
        out_specs=pl.BlockSpec((None, L, D), lambda b: (b, 0, 0)),
        compiler_params=pltpu.CompilerParams(dimension_semantics=("parallel",)),
    )(*branch_outs, layer["merge_w"], layer["merge_b"])


def seasonal_prediction_forward(params, dec):
    """SeasonalPrediction.forward: dec [B,L,D] -> [B,L,D]."""
    for layer in params["layers"]:
        dec = mic_layer(dec, layer)
    return dec


# ---------------------------------------------------------------------------
# Deterministic parameter initialization (shapes follow the PyTorch __init__)
# ---------------------------------------------------------------------------

def init_params(key, d_model, conv_kernel, decomp_kernel, isometric_kernel, d_layers):
    D = d_model
    n_k = len(conv_kernel)
    layers = []
    for _ in range(d_layers):
        branches = []
        for k, ik, dk in zip(conv_kernel, isometric_kernel, decomp_kernel):
            key, k1, k2, k3, k4, k5, k6 = jax.random.split(key, 7)
            conv_w = jax.random.normal(k1, (D, D, k), jnp.float32) / jnp.sqrt(D * k)   # [o,i,tau]
            conv_b = jax.random.normal(k2, (D,), jnp.float32) * 0.02
            iso_w = jax.random.normal(k3, (D, D, ik), jnp.float32) / jnp.sqrt(D * ik)  # [o,i,tau]
            iso_b = jax.random.normal(k4, (D,), jnp.float32) * 0.02
            trans_w = jax.random.normal(k5, (D, D, k), jnp.float32) / jnp.sqrt(D * k)  # [i,o,r]
            trans_b = jax.random.normal(k6, (D,), jnp.float32) * 0.02
            branches.append(dict(
                conv_k=k, iso_k=ik, decomp_k=dk,
                # Conv1d weight [o,i,tau] -> matmul form [tau*D + i, o]
                conv_w=jnp.transpose(conv_w, (2, 1, 0)).reshape(k * D, D),
                conv_b=conv_b.reshape(1, D),
                # isometric weight -> diagonal-offset form: row d*D + i holds
                # W[o, i, ik-1-d]  (d = output_t - input_s)
                iso_w=jnp.transpose(iso_w, (2, 1, 0))[::-1].reshape(ik * D, D),
                iso_b=iso_b.reshape(1, D),
                # ConvTranspose1d weight [i,o,r] -> matmul form [i, r*D + o]
                trans_w=jnp.transpose(trans_w, (0, 2, 1)).reshape(D, k * D),
                trans_b=jnp.tile(trans_b, k).reshape(1, k * D),
                ln_g=jnp.ones((1, D), jnp.float32),
                ln_b=jnp.zeros((1, D), jnp.float32),
            ))
        key, km1, km2 = jax.random.split(key, 3)
        merge_w = jax.random.normal(km1, (D, D, n_k, 1), jnp.float32) / jnp.sqrt(D * n_k)
        merge_b = jax.random.normal(km2, (D,), jnp.float32) * 0.02
        layers.append(dict(
            branches=branches,
            # Conv2d merge weight [o,i,j,0] -> matmul form [j*D + i, o]
            merge_w=jnp.transpose(merge_w[..., 0], (2, 1, 0)).reshape(n_k * D, D),
            merge_b=merge_b.reshape(1, D),
        ))
    return dict(layers=layers)


# ---------------------------------------------------------------------------
# Plain-JAX reference (numerical cross-check of the Pallas kernels)
# ---------------------------------------------------------------------------

def _reference_forward(params, dec):
    x = dec
    for layer in params["layers"]:
        B, L, D = x.shape
        outs = []
        for br in layer["branches"]:
            dk, k, ik = br["decomp_k"], br["conv_k"], br["iso_k"]
            pad = (dk - 1) // 2
            xp = jnp.concatenate([jnp.repeat(x[:, :1], pad, 1), x,
                                  jnp.repeat(x[:, -1:], pad, 1)], axis=1)
            mean = jnp.stack([xp[:, o:o + L] for o in range(dk)], 0).mean(0)
            res = x - mean
            p = k // 2
            L_out = (L + 2 * p - k) // k + 1
            rp = jnp.pad(res, ((0, 0), (p, max(0, L_out * k - L - p)), (0, 0)))[:, :L_out * k]
            x1 = jnp.tanh(rp.reshape(B, L_out, k * D) @ br["conv_w"] + br["conv_b"])
            # causal isometric conv written the direct (zero-prepend) way
            wi = br["iso_w"].reshape(ik, D, D)[::-1]                 # back to tau order
            xz = jnp.concatenate([jnp.zeros((B, L_out - 1, D), x1.dtype), x1], axis=1)
            xi = sum(jnp.einsum("btd,de->bte", xz[:, t:t + L_out], wi[t]) for t in range(ik))
            xi = jnp.tanh(xi + br["iso_b"])
            xs = xi + x1
            mu = xs.mean(-1, keepdims=True)
            var = ((xs - mu) ** 2).mean(-1, keepdims=True)
            xn = (xs - mu) * jax.lax.rsqrt(var + 1e-5) * br["ln_g"] + br["ln_b"]
            y = jnp.tanh(xn @ br["trans_w"] + br["trans_b"])
            outs.append(y.reshape(B, L_out * k, D)[:, :L])
        mg = jnp.stack(outs, axis=2).reshape(B * L, len(outs) * D)
        x = (mg @ layer["merge_w"] + layer["merge_b"]).reshape(B, L, D)
    return x


# ---------------------------------------------------------------------------

if __name__ == "__main__":
    B, seq_len, pred_len, d_model, d_layers = 2, 8, 4, 16, 1
    conv_kernel = [2, 4]

    # Exactly the kernel-size derivation MICN does before building SeasonalPrediction.
    decomp_kernel, isometric_kernel = [], []
    for ii in conv_kernel:
        if ii % 2 == 0:
            decomp_kernel.append(ii + 1)
            isometric_kernel.append((seq_len + pred_len + ii) // ii)
        else:
            decomp_kernel.append(ii)
            isometric_kernel.append((seq_len + pred_len + ii - 1) // ii)

    key = jax.random.PRNGKey(0)
    kp, kd = jax.random.split(key)
    params = init_params(kp, d_model, conv_kernel, decomp_kernel,
                         isometric_kernel, d_layers)

    # SeasonalPrediction input: embedded decoder series [B, seq_len + pred_len, d_model]
    dec = jax.random.normal(kd, (B, seq_len + pred_len, d_model), jnp.float32)

    fwd = jax.jit(lambda d: seasonal_prediction_forward(params, d))
    out = jax.block_until_ready(fwd(dec))

    assert out.shape == dec.shape, out.shape
    assert bool(jnp.all(jnp.isfinite(out)))

    ref = _reference_forward(params, dec)
    assert bool(jnp.allclose(out, ref, atol=2e-2, rtol=2e-2)), \
        float(jnp.max(jnp.abs(out - ref)))

    print("KERNEL_OK")
</pallas_src>

<mosaic_0001>
module attributes {stable_mosaic.version = 11 : i64} {
  func.func @_decomp_kernel(%arg0: i32, %arg1: memref<1x14x16xf32, #tpu.memory_space<vmem>>, %arg2: memref<1x12x16xf32, #tpu.memory_space<vmem>>) attributes {dimension_semantics = [#tpu.dimension_semantics<parallel>], iteration_bounds = array<i64: 2>, scalar_prefetch = 0 : i64, scratch_operands = 0 : i64, tpu.core_type = #tpu.core_type<tc>, window_params = [{transform_indices = @transform_0, window_bounds = array<i64: 1, 14, 16>}, {transform_indices = @transform_1, window_bounds = array<i64: 1, 12, 16>}]} {
    %c0 = arith.constant 0 : index
    %c0_0 = arith.constant 0 : index
    %c0_1 = arith.constant 0 : index
    %0 = vector.load %arg1[%c0, %c0_0, %c0_1] : memref<1x14x16xf32, #tpu.memory_space<vmem>>, vector<1x12x16xf32>
    %1 = vector.shape_cast %0 : vector<1x12x16xf32> to vector<12x16xf32>
    %c0_2 = arith.constant 0 : index
    %c1 = arith.constant 1 : index
    %c0_3 = arith.constant 0 : index
    %2 = vector.load %arg1[%c0_2, %c1, %c0_3] : memref<1x14x16xf32, #tpu.memory_space<vmem>>, vector<1x12x16xf32>
    %3 = vector.shape_cast %2 : vector<1x12x16xf32> to vector<12x16xf32>
    %4 = arith.addf %1, %3 : vector<12x16xf32>
    %c0_4 = arith.constant 0 : index
    %c2 = arith.constant 2 : index
    %c0_5 = arith.constant 0 : index
    %5 = vector.load %arg1[%c0_4, %c2, %c0_5] : memref<1x14x16xf32, #tpu.memory_space<vmem>>, vector<1x12x16xf32>
    %6 = vector.shape_cast %5 : vector<1x12x16xf32> to vector<12x16xf32>
    %7 = arith.addf %4, %6 : vector<12x16xf32>
    %cst = arith.constant 0.333333343 : f32
    %8 = vector.broadcast %cst : f32 to vector<12x16xf32>
    %9 = arith.mulf %7, %8 : vector<12x16xf32>
    %c0_6 = arith.constant 0 : index
    %c1_7 = arith.constant 1 : index
    %c0_8 = arith.constant 0 : index
    %10 = vector.load %arg1[%c0_6, %c1_7, %c0_8] : memref<1x14x16xf32, #tpu.memory_space<vmem>>, vector<1x12x16xf32>
    %11 = vector.shape_cast %10 : vector<1x12x16xf32> to vector<12x16xf32>
    %12 = arith.subf %11, %9 : vector<12x16xf32>
    %c0_9 = arith.constant 0 : index
    %c0_10 = arith.constant 0 : index
    %c0_11 = arith.constant 0 : index
    %13 = vector.load %arg2[%c0_9, %c0_10, %c0_11] : memref<1x12x16xf32, #tpu.memory_space<vmem>>, vector<1x12x16xf32>
    %14 = vector.shape_cast %13 : vector<1x12x16xf32> to vector<12x16xf32>
    %15 = vector.shape_cast %12 : vector<12x16xf32> to vector<1x12x16xf32>
    tpu.vector_store %arg2[%c0_9, %c0_10, %c0_11], %15 {strides = array<i32>} : memref<1x12x16xf32, #tpu.memory_space<vmem>>, vector<1x12x16xf32>,
    return
  }
  func.func @transform_0(%arg0: i32) -> (i32, i32, i32) {
    %c0_i32 = arith.constant 0 : i32
    %c0_i32_0 = arith.constant 0 : i32
    %c0_i32_1 = arith.constant 0 : i32
    return %arg0, %c0_i32, %c0_i32_0 : i32, i32, i32
  }
  func.func @transform_1(%arg0: i32) -> (i32, i32, i32) {
    %c0_i32 = arith.constant 0 : i32
    %c0_i32_0 = arith.constant 0 : i32
    %c0_i32_1 = arith.constant 0 : i32
    return %arg0, %c0_i32, %c0_i32_0 : i32, i32, i32
  }
}

module attributes {stable_mosaic.version = 11 : i64} {
  func.func @_branch_kernel(%arg0: i32, %arg1: memref<1x7x32xf32, #tpu.memory_space<vmem>>, %arg2: memref<32x16xf32, #tpu.memory_space<vmem>>, %arg3: memref<1x16xf32, #tpu.memory_space<vmem>>, %arg4: memref<112x16xf32, #tpu.memory_space<vmem>>, %arg5: memref<1x16xf32, #tpu.memory_space<vmem>>, %arg6: memref<1x16xf32, #tpu.memory_space<vmem>>, %arg7: memref<1x16xf32, #tpu.memory_space<vmem>>, %arg8: memref<16x32xf32, #tpu.memory_space<vmem>>, %arg9: memref<1x32xf32, #tpu.memory_space<vmem>>, %arg10: memref<1x7x32xf32, #tpu.memory_space<vmem>>, %arg11: memref<7x16xf32, #tpu.memory_space<vmem>>) attributes {dimension_semantics = [#tpu.dimension_semantics<parallel>], iteration_bounds = array<i64: 2>, scalar_prefetch = 0 : i64, scratch_operands = 1 : i64, tpu.core_type = #tpu.core_type<tc>, window_params = [{transform_indices = @transform_0, window_bounds = array<i64: 1, 7, 32>}, {pipeline_mode = #tpu.pipeline_mode<synchronous>, transform_indices = @transform_1, window_bounds = array<i64: 32, 16>}, {pipeline_mode = #tpu.pipeline_mode<synchronous>, transform_indices = @transform_2, window_bounds = array<i64: 1, 16>}, {pipeline_mode = #tpu.pipeline_mode<synchronous>, transform_indices = @transform_3, window_bounds = array<i64: 112, 16>}, {pipeline_mode = #tpu.pipeline_mode<synchronous>, transform_indices = @transform_4, window_bounds = array<i64: 1, 16>}, {pipeline_mode = #tpu.pipeline_mode<synchronous>, transform_indices = @transform_5, window_bounds = array<i64: 1, 16>}, {pipeline_mode = #tpu.pipeline_mode<synchronous>, transform_indices = @transform_6, window_bounds = array<i64: 1, 16>}, {pipeline_mode = #tpu.pipeline_mode<synchronous>, transform_indices = @transform_7, window_bounds = array<i64: 16, 32>}, {pipeline_mode = #tpu.pipeline_mode<synchronous>, transform_indices = @transform_8, window_bounds = array<i64: 1, 32>}, {transform_indices = @transform_9, window_bounds = array<i64: 1, 7, 32>}]} {
    %c0 = arith.constant 0 : index
    %c0_0 = arith.constant 0 : index
    %c0_1 = arith.constant 0 : index
    %0 = vector.load %arg1[%c0, %c0_0, %c0_1] : memref<1x7x32xf32, #tpu.memory_space<vmem>>, vector<1x7x32xf32>
    %1 = vector.shape_cast %0 : vector<1x7x32xf32> to vector<7x32xf32>
    %c0_2 = arith.constant 0 : index
    %c0_3 = arith.constant 0 : index
    %2 = vector.load %arg2[%c0_2, %c0_3] : memref<32x16xf32, #tpu.memory_space<vmem>>, vector<32x16xf32>
    %cst = arith.constant dense<0.000000e+00> : vector<7x16xf32>
    %3 = tpu.matmul %1, %2, %cst {dimension_numbers = #tpu.dot_dimension_numbers<[1], [0], [0], [1], [0, 0, 1, 1], [], []>} : vector<7x32xf32>, vector<32x16xf32>, vector<7x16xf32> -> vector<7x16xf32>
    %c0_4 = arith.constant 0 : index
    %c0_5 = arith.constant 0 : index
    %4 = vector.load %arg3[%c0_4, %c0_5] : memref<1x16xf32, #tpu.memory_space<vmem>>, vector<1x16xf32>
    %5 = vector.broadcast %4 : vector<1x16xf32> to vector<7x16xf32>
    %6 = arith.addf %3, %5 : vector<7x16xf32>
    %7 = math.tanh %6 : vector<7x16xf32>
    %cst_6 = arith.constant 0.000000e+00 : f32
    %8 = vector.broadcast %cst_6 : f32 to vector<7x16xf32>
    %c0_7 = arith.constant 0 : index
    %c0_8 = arith.constant 0 : index
    %9 = vector.load %arg5[%c0_7, %c0_8] : memref<1x16xf32, #tpu.memory_space<vmem>>, vector<1x16xf32>
    %10 = vector.broadcast %9 : vector<1x16xf32> to vector<7x16xf32>
    %11 = arith.addf %8, %10 : vector<7x16xf32>
    %c0_9 = arith.constant 0 : index
    %c0_10 = arith.constant 0 : index
    %12 = vector.load %arg11[%c0_9, %c0_10] : memref<7x16xf32, #tpu.memory_space<vmem>>, vector<7x16xf32>
    tpu.vector_store %arg11[%c0_9, %c0_10], %11 {strides = array<i32>} : memref<7x16xf32, #tpu.memory_space<vmem>>, vector<7x16xf32>,
    %c0_11 = arith.constant 0 : index
    %c0_12 = arith.constant 0 : index
    %13 = vector.load %arg4[%c0_11, %c0_12] : memref<112x16xf32, #tpu.memory_space<vmem>>, vector<16x16xf32>
    %cst_13 = arith.constant dense<0.000000e+00> : vector<7x16xf32>
    %14 = tpu.matmul %7, %13, %cst_13 {dimension_numbers = #tpu.dot_dimension_numbers<[1], [0], [0], [1], [0, 0, 1, 1], [], []>} : vector<7x16xf32>, vector<16x16xf32>, vector<7x16xf32> -> vector<7x16xf32>
    %c0_14 = arith.constant 0 : index
    %c0_15 = arith.constant 0 : index
    %15 = vector.load %arg11[%c0_14, %c0_15] : memref<7x16xf32, #tpu.memory_space<vmem>>, vector<7x16xf32>
    %16 = arith.addf %15, %14 : vector<7x16xf32>
    %c0_16 = arith.constant 0 : index
    %c0_17 = arith.constant 0 : index
    %17 = vector.load %arg11[%c0_16, %c0_17] : memref<7x16xf32, #tpu.memory_space<vmem>>, vector<7x16xf32>
    tpu.vector_store %arg11[%c0_16, %c0_17], %16 {strides = array<i32>} : memref<7x16xf32, #tpu.memory_space<vmem>>, vector<7x16xf32>,
    %c16 = arith.constant 16 : index
    %c0_18 = arith.constant 0 : index
    %18 = vector.load %arg4[%c16, %c0_18] : memref<112x16xf32, #tpu.memory_space<vmem>>, vector<16x16xf32>
    %19 = vector.extract_strided_slice %7 {offsets = [0, 0], sizes = [6, 16], strides = [1, 1]} : vector<7x16xf32> to vector<6x16xf32>
    %cst_19 = arith.constant dense<0.000000e+00> : vector<6x16xf32>
    %20 = tpu.matmul %19, %18, %cst_19 {dimension_numbers = #tpu.dot_dimension_numbers<[1], [0], [0], [1], [0, 0, 1, 1], [], []>} : vector<6x16xf32>, vector<16x16xf32>, vector<6x16xf32> -> vector<6x16xf32>
    %c1 = arith.constant 1 : index
    %c0_20 = arith.constant 0 : index
    %21 = vector.load %arg11[%c1, %c0_20] : memref<7x16xf32, #tpu.memory_space<vmem>>, vector<6x16xf32>
    %22 = arith.addf %21, %20 : vector<6x16xf32>
    %c1_21 = arith.constant 1 : index
    %c0_22 = arith.constant 0 : index
    %23 = vector.load %arg11[%c1_21, %c0_22] : memref<7x16xf32, #tpu.memory_space<vmem>>, vector<6x16xf32>
    tpu.vector_store %arg11[%c1_21, %c0_22], %22 {strides = array<i32>} : memref<7x16xf32, #tpu.memory_space<vmem>>, vector<6x16xf32>,
    %c32 = arith.constant 32 : index
    %c0_23 = arith.constant 0 : index
    %24 = vector.load %arg4[%c32, %c0_23] : memref<112x16xf32, #tpu.memory_space<vmem>>, vector<16x16xf32>
    %25 = vector.extract_strided_slice %7 {offsets = [0, 0], sizes = [5, 16], strides = [1, 1]} : vector<7x16xf32> to vector<5x16xf32>
    %cst_24 = arith.constant dense<0.000000e+00> : vector<5x16xf32>
    %26 = tpu.matmul %25, %24, %cst_24 {dimension_numbers = #tpu.dot_dimension_numbers<[1], [0], [0], [1], [0, 0, 1, 1], [], []>} : vector<5x16xf32>, vector<16x16xf32>, vector<5x16xf32> -> vector<5x16xf32>
    %c2 = arith.constant 2 : index
    %c0_25 = arith.constant 0 : index
    %27 = vector.load %arg11[%c2, %c0_25] : memref<7x16xf32, #tpu.memory_space<vmem>>, vector<5x16xf32>
    %28 = arith.addf %27, %26 : vector<5x16xf32>
    %c2_26 = arith.constant 2 : index
    %c0_27 = arith.constant 0 : index
    %29 = vector.load %arg11[%c2_26, %c0_27] : memref<7x16xf32, #tpu.memory_space<vmem>>, vector<5x16xf32>
    tpu.vector_store %arg11[%c2_26, %c0_27], %28 {strides = array<i32>} : memref<7x16xf32, #tpu.memory_space<vmem>>, vector<5x16xf32>,
    %c48 = arith.constant 48 : index
    %c0_28 = arith.constant 0 : index
    %30 = vector.load %arg4[%c48, %c0_28] : memref<112x16xf32, #tpu.memory_space<vmem>>, vector<16x16xf32>
    %31 = vector.extract_strided_slice %7 {offsets = [0, 0], sizes = [4, 16], strides = [1, 1]} : vector<7x16xf32> to vector<4x16xf32>
    %cst_29 = arith.constant dense<0.000000e+00> : vector<4x16xf32>
    %32 = tpu.matmul %31, %30, %cst_29 {dimension_numbers = #tpu.dot_dimension_numbers<[1], [0], [0], [1], [0, 0, 1, 1], [], []>} : vector<4x16xf32>, vector<16x16xf32>, vector<4x16xf32> -> vector<4x16xf32>
    %c3 = arith.constant 3 : index
    %c0_30 = arith.constant 0 : index
    %33 = vector.load %arg11[%c3, %c0_30] : memref<7x16xf32, #tpu.memory_space<vmem>>, vector<4x16xf32>
    %34 = arith.addf %33, %32 : vector<4x16xf32>
    %c3_31 = arith.constant 3 : index
    %c0_32 = arith.constant 0 : index
    %35 = vector.load %arg11[%c3_31, %c0_32] : memref<7x16xf32, #tpu.memory_space<vmem>>, vector<4x16xf32>
    tpu.vector_store %arg11[%c3_31, %c0_32], %34 {strides = array<i32>} : memref<7x16xf32, #tpu.memory_space<vmem>>, vector<4x16xf32>,
    %c64 = arith.constant 64 : index
    %c0_33 = arith.constant 0 : index
    %36 = vector.load %arg4[%c64, %c0_33] : memref<112x16xf32, #tpu.memory_space<vmem>>, vector<16x16xf32>
    %37 = vector.extract_strided_slice %7 {offsets = [0, 0], sizes = [3, 16], strides = [1, 1]} : vector<7x16xf32> to vector<3x16xf32>
    %cst_34 = arith.constant dense<0.000000e+00> : vector<3x16xf32>
    %38 = tpu.matmul %37, %36, %cst_34 {dimension_numbers = #tpu.dot_dimension_numbers<[1], [0], [0], [1], [0, 0, 1, 1], [], []>} : vector<3x16xf32>, vector<16x16xf32>, vector<3x16xf32> -> vector<3x16xf32>
    %c4 = arith.constant 4 : index
    %c0_35 = arith.constant 0 : index
    %39 = vector.load %arg11[%c4, %c0_35] : memref<7x16xf32, #tpu.memory_space<vmem>>, vector<3x16xf32>
    %40 = arith.addf %39, %38 : vector<3x16xf32>
    %c4_36 = arith.constant 4 : index
    %c0_37 = arith.constant 0 : index
    %41 = vector.load %arg11[%c4_36, %c0_37] : memref<7x16xf32, #tpu.memory_space<vmem>>, vector<3x16xf32>
    tpu.vector_store %arg11[%c4_36, %c0_37], %40 {strides = array<i32>} : memref<7x16xf32, #tpu.memory_space<vmem>>, vector<3x16xf32>,
    %c80 = arith.constant 80 : index
    %c0_38 = arith.constant 0 : index
    %42 = vector.load %arg4[%c80, %c0_38] : memref<112x16xf32, #tpu.memory_space<vmem>>, vector<16x16xf32>
    %43 = vector.extract_strided_slice %7 {offsets = [0, 0], sizes = [2, 16], strides = [1, 1]} : vector<7x16xf32> to vector<2x16xf32>
    %cst_39 = arith.constant dense<0.000000e+00> : vector<2x16xf32>
    %44 = tpu.matmul %43, %42, %cst_39 {dimension_numbers = #tpu.dot_dimension_numbers<[1], [0], [0], [1], [0, 0, 1, 1], [], []>} : vector<2x16xf32>, vector<16x16xf32>, vector<2x16xf32> -> vector<2x16xf32>
    %c5 = arith.constant 5 : index
    %c0_40 = arith.constant 0 : index
    %45 = vector.load %arg11[%c5, %c0_40] : memref<7x16xf32, #tpu.memory_space<vmem>>, vector<2x16xf32>
    %46 = arith.addf %45, %44 : vector<2x16xf32>
    %c5_41 = arith.constant 5 : index
    %c0_42 = arith.constant 0 : index
    %47 = vector.load %arg11[%c5_41, %c0_42] : memref<7x16xf32, #tpu.memory_space<vmem>>, vector<2x16xf32>
    tpu.vector_store %arg11[%c5_41, %c0_42], %46 {strides = array<i32>} : memref<7x16xf32, #tpu.memory_space<vmem>>, vector<2x16xf32>,
    %c96 = arith.constant 96 : index
    %c0_43 = arith.constant 0 : index
    %48 = vector.load %arg4[%c96, %c0_43] : memref<112x16xf32, #tpu.memory_space<vmem>>, vector<16x16xf32>
    %49 = vector.extract_strided_slice %7 {offsets = [0, 0], sizes = [1, 16], strides = [1, 1]} : vector<7x16xf32> to vector<1x16xf32>
    %cst_44 = arith.constant dense<0.000000e+00> : vector<1x16xf32>
    %50 = tpu.matmul %49, %48, %cst_44 {dimension_numbers = #tpu.dot_dimension_numbers<[1], [0], [0], [1], [0, 0, 1, 1], [], []>} : vector<1x16xf32>, vector<16x16xf32>, vector<1x16xf32> -> vector<1x16xf32>
    %c6 = arith.constant 6 : index
    %c0_45 = arith.constant 0 : index
    %51 = vector.load %arg11[%c6, %c0_45] : memref<7x16xf32, #tpu.memory_space<vmem>>, vector<1x16xf32>
    %52 = arith.addf %51, %50 : vector<1x16xf32>
    %c6_46 = arith.constant 6 : index
    %c0_47 = arith.constant 0 : index
    %53 = vector.load %arg11[%c6_46, %c0_47] : memref<7x16xf32, #tpu.memory_space<vmem>>, vector<1x16xf32>
    tpu.vector_store %arg11[%c6_46, %c0_47], %52 {strides = array<i32>} : memref<7x16xf32, #tpu.memory_space<vmem>>, vector<1x16xf32>,
    %c0_48 = arith.constant 0 : index
    %c0_49 = arith.constant 0 : index
    %54 = vector.load %arg11[%c0_48, %c0_49] : memref<7x16xf32, #tpu.memory_space<vmem>>, vector<7x16xf32>
    %55 = math.tanh %54 : vector<7x16xf32>
    %56 = arith.addf %55, %7 : vector<7x16xf32>
    %cst_50 = arith.constant dense<0.000000e+00> : vector<7xf32>
    %57 = vector.multi_reduction <add>, %56, %cst_50 [1] : vector<7x16xf32> to vector<7xf32>
    %58 = vector.shape_cast %57 : vector<7xf32> to vector<7x1xf32>
    %cst_51 = arith.constant 1.600000e+01 : f32
    %59 = vector.broadcast %cst_51 : f32 to vector<7x1xf32>
    %60 = arith.divf %58, %59 : vector<7x1xf32>
    %61 = vector.broadcast %60 : vector<7x1xf32> to vector<7x16xf32>
    %62 = arith.subf %56, %61 : vector<7x16xf32>
    %63 = arith.mulf %62, %62 : vector<7x16xf32>
    %cst_52 = arith.constant dense<0.000000e+00> : vector<7xf32>
    %64 = vector.multi_reduction <add>, %63, %cst_52 [1] : vector<7x16xf32> to vector<7xf32>
    %65 = vector.shape_cast %64 : vector<7xf32> to vector<7x1xf32>
    %cst_53 = arith.constant 1.600000e+01 : f32
    %66 = vector.broadcast %cst_53 : f32 to vector<7x1xf32>
    %67 = arith.divf %65, %66 : vector<7x1xf32>
    %68 = vector.broadcast %60 : vector<7x1xf32> to vector<7x16xf32>
    %69 = arith.subf %56, %68 : vector<7x16xf32>
    %cst_54 = arith.constant 9.99999974E-6 : f32
    %70 = vector.broadcast %cst_54 : f32 to vector<7x1xf32>
    %71 = arith.addf %67, %70 : vector<7x1xf32>
    %72 = math.rsqrt %71 : vector<7x1xf32>
    %73 = vector.broadcast %72 : vector<7x1xf32> to vector<7x16xf32>
    %74 = arith.mulf %69, %73 : vector<7x16xf32>
    %c0_55 = arith.constant 0 : index
    %c0_56 = arith.constant 0 : index
    %75 = vector.load %arg6[%c0_55, %c0_56] : memref<1x16xf32, #tpu.memory_space<vmem>>, vector<1x16xf32>
    %76 = vector.broadcast %75 : vector<1x16xf32> to vector<7x16xf32>
    %77 = arith.mulf %74, %76 : vector<7x16xf32>
    %c0_57 = arith.constant 0 : index
    %c0_58 = arith.constant 0 : index
    %78 = vector.load %arg7[%c0_57, %c0_58] : memref<1x16xf32, #tpu.memory_space<vmem>>, vector<1x16xf32>
    %79 = vector.broadcast %78 : vector<1x16xf32> to vector<7x16xf32>
    %80 = arith.addf %77, %79 : vector<7x16xf32>
    %c0_59 = arith.constant 0 : index
    %c0_60 = arith.constant 0 : index
    %81 = vector.load %arg8[%c0_59, %c0_60] : memref<16x32xf32, #tpu.memory_space<vmem>>, vector<16x32xf32>
    %cst_61 = arith.constant dense<0.000000e+00> : vector<7x32xf32>
    %82 = tpu.matmul %80, %81, %cst_61 {dimension_numbers = #tpu.dot_dimension_numbers<[1], [0], [0], [1], [0, 0, 1, 1], [], []>} : vector<7x16xf32>, vector<16x32xf32>, vector<7x32xf32> -> vector<7x32xf32>
    %c0_62 = arith.constant 0 : index
    %c0_63 = arith.constant 0 : index
    %83 = vector.load %arg9[%c0_62, %c0_63] : memref<1x32xf32, #tpu.memory_space<vmem>>, vector<1x32xf32>
    %84 = vector.broadcast %83 : vector<1x32xf32> to vector<7x32xf32>
    %85 = arith.addf %82, %84 : vector<7x32xf32>
    %86 = math.tanh %85 : vector<7x32xf32>
    %c0_64 = arith.constant 0 : index
    %c0_65 = arith.constant 0 : index
    %c0_66 = arith.constant 0 : index
    %87 = vector.load %arg10[%c0_64, %c0_65, %c0_66] : memref<1x7x32xf32, #tpu.memory_space<vmem>>, vector<1x7x32xf32>
    %88 = vector.shape_cast %87 : vector<1x7x32xf32> to vector<7x32xf32>
    %89 = vector.shape_cast %86 : vector<7x32xf32> to vector<1x7x32xf32>
    tpu.vector_store %arg10[%c0_64, %c0_65, %c0_66], %89 {strides = array<i32>} : memref<1x7x32xf32, #tpu.memory_space<vmem>>, vector<1x7x32xf32>,
    return
  }
  func.func @transform_0(%arg0: i32) -> (i32, i32, i32) {
    %c0_i32 = arith.constant 0 : i32
    %c0_i32_0 = arith.constant 0 : i32
    %c0_i32_1 = arith.constant 0 : i32
    return %arg0, %c0_i32, %c0_i32_0 : i32, i32, i32
  }
  func.func @transform_1(%arg0: i32) -> (i32, i32) {
    %c0_i32 = arith.constant 0 : i32
    %c0_i32_0 = arith.constant 0 : i32
    %c0_i32_1 = arith.constant 0 : i32
    return %c0_i32, %c0_i32_0 : i32, i32
  }
  func.func @transform_2(%arg0: i32) -> (i32, i32) {
    %c0_i32 = arith.constant 0 : i32
    %c0_i32_0 = arith.constant 0 : i32
    %c0_i32_1 = arith.constant 0 : i32
    return %c0_i32, %c0_i32_0 : i32, i32
  }
  func.func @transform_3(%arg0: i32) -> (i32, i32) {
    %c0_i32 = arith.constant 0 : i32
    %c0_i32_0 = arith.constant 0 : i32
    %c0_i32_1 = arith.constant 0 : i32
    return %c0_i32, %c0_i32_0 : i32, i32
  }
  func.func @transform_4(%arg0: i32) -> (i32, i32) {
    %c0_i32 = arith.constant 0 : i32
    %c0_i32_0 = arith.constant 0 : i32
    %c0_i32_1 = arith.constant 0 : i32
    return %c0_i32, %c0_i32_0 : i32, i32
  }
  func.func @transform_5(%arg0: i32) -> (i32, i32) {
    %c0_i32 = arith.constant 0 : i32
    %c0_i32_0 = arith.constant 0 : i32
    %c0_i32_1 = arith.constant 0 : i32
    return %c0_i32, %c0_i32_0 : i32, i32
  }
  func.func @transform_6(%arg0: i32) -> (i32, i32) {
    %c0_i32 = arith.constant 0 : i32
    %c0_i32_0 = arith.constant 0 : i32
    %c0_i32_1 = arith.constant 0 : i32
    return %c0_i32, %c0_i32_0 : i32, i32
  }
  func.func @transform_7(%arg0: i32) -> (i32, i32) {
    %c0_i32 = arith.constant 0 : i32
    %c0_i32_0 = arith.constant 0 : i32
    %c0_i32_1 = arith.constant 0 : i32
    return %c0_i32, %c0_i32_0 : i32, i32
  }
  func.func @transform_8(%arg0: i32) -> (i32, i32) {
    %c0_i32 = arith.constant 0 : i32
    %c0_i32_0 = arith.constant 0 : i32
    %c0_i32_1 = arith.constant 0 : i32
    return %c0_i32, %c0_i32_0 : i32, i32
  }
  func.func @transform_9(%arg0: i32) -> (i32, i32, i32) {
    %c0_i32 = arith.constant 0 : i32
    %c0_i32_0 = arith.constant 0 : i32
    %c0_i32_1 = arith.constant 0 : i32
    return %arg0, %c0_i32, %c0_i32_0 : i32, i32, i32
  }
}

module attributes {stable_mosaic.version = 11 : i64} {
  func.func @_decomp_kernel(%arg0: i32, %arg1: memref<1x16x16xf32, #tpu.memory_space<vmem>>, %arg2: memref<1x12x16xf32, #tpu.memory_space<vmem>>) attributes {dimension_semantics = [#tpu.dimension_semantics<parallel>], iteration_bounds = array<i64: 2>, scalar_prefetch = 0 : i64, scratch_operands = 0 : i64, tpu.core_type = #tpu.core_type<tc>, window_params = [{transform_indices = @transform_0, window_bounds = array<i64: 1, 16, 16>}, {transform_indices = @transform_1, window_bounds = array<i64: 1, 12, 16>}]} {
    %c0 = arith.constant 0 : index
    %c0_0 = arith.constant 0 : index
    %c0_1 = arith.constant 0 : index
    %0 = vector.load %arg1[%c0, %c0_0, %c0_1] : memref<1x16x16xf32, #tpu.memory_space<vmem>>, vector<1x12x16xf32>
    %1 = vector.shape_cast %0 : vector<1x12x16xf32> to vector<12x16xf32>
    %c0_2 = arith.constant 0 : index
    %c1 = arith.constant 1 : index
    %c0_3 = arith.constant 0 : index
    %2 = vector.load %arg1[%c0_2, %c1, %c0_3] : memref<1x16x16xf32, #tpu.memory_space<vmem>>, vector<1x12x16xf32>
    %3 = vector.shape_cast %2 : vector<1x12x16xf32> to vector<12x16xf32>
    %4 = arith.addf %1, %3 : vector<12x16xf32>
    %c0_4 = arith.constant 0 : index
    %c2 = arith.constant 2 : index
    %c0_5 = arith.constant 0 : index
    %5 = vector.load %arg1[%c0_4, %c2, %c0_5] : memref<1x16x16xf32, #tpu.memory_space<vmem>>, vector<1x12x16xf32>
    %6 = vector.shape_cast %5 : vector<1x12x16xf32> to vector<12x16xf32>
    %7 = arith.addf %4, %6 : vector<12x16xf32>
    %c0_6 = arith.constant 0 : index
    %c3 = arith.constant 3 : index
    %c0_7 = arith.constant 0 : index
    %8 = vector.load %arg1[%c0_6, %c3, %c0_7] : memref<1x16x16xf32, #tpu.memory_space<vmem>>, vector<1x12x16xf32>
    %9 = vector.shape_cast %8 : vector<1x12x16xf32> to vector<12x16xf32>
    %10 = arith.addf %7, %9 : vector<12x16xf32>
    %c0_8 = arith.constant 0 : index
    %c4 = arith.constant 4 : index
    %c0_9 = arith.constant 0 : index
    %11 = vector.load %arg1[%c0_8, %c4, %c0_9] : memref<1x16x16xf32, #tpu.memory_space<vmem>>, vector<1x12x16xf32>
    %12 = vector.shape_cast %11 : vector<1x12x16xf32> to vector<12x16xf32>
    %13 = arith.addf %10, %12 : vector<12x16xf32>
    %cst = arith.constant 2.000000e-01 : f32
    %14 = vector.broadcast %cst : f32 to vector<12x16xf32>
    %15 = arith.mulf %13, %14 : vector<12x16xf32>
    %c0_10 = arith.constant 0 : index
    %c2_11 = arith.constant 2 : index
    %c0_12 = arith.constant 0 : index
    %16 = vector.load %arg1[%c0_10, %c2_11, %c0_12] : memref<1x16x16xf32, #tpu.memory_space<vmem>>, vector<1x12x16xf32>
    %17 = vector.shape_cast %16 : vector<1x12x16xf32> to vector<12x16xf32>
    %18 = arith.subf %17, %15 : vector<12x16xf32>
    %c0_13 = arith.constant 0 : index
    %c0_14 = arith.constant 0 : index
    %c0_15 = arith.constant 0 : index
    %19 = vector.load %arg2[%c0_13, %c0_14, %c0_15] : memref<1x12x16xf32, #tpu.memory_space<vmem>>, vector<1x12x16xf32>
    %20 = vector.shape_cast %19 : vector<1x12x16xf32> to vector<12x16xf32>
    %21 = vector.shape_cast %18 : vector<12x16xf32> to vector<1x12x16xf32>
    tpu.vector_store %arg2[%c0_13, %c0_14, %c0_15], %21 {strides = array<i32>} : memref<1x12x16xf32, #tpu.memory_space<vmem>>, vector<1x12x16xf32>,
    return
  }
  func.func @transform_0(%arg0: i32) -> (i32, i32, i32) {
    %c0_i32 = arith.constant 0 : i32
    %c0_i32_0 = arith.constant 0 : i32
    %c0_i32_1 = arith.constant 0 : i32
    return %arg0, %c0_i32, %c0_i32_0 : i32, i32, i32
  }
  func.func @transform_1(%arg0: i32) -> (i32, i32, i32) {
    %c0_i32 = arith.constant 0 : i32
    %c0_i32_0 = arith.constant 0 : i32
    %c0_i32_1 = arith.constant 0 : i32
    return %arg0, %c0_i32, %c0_i32_0 : i32, i32, i32
  }
}

module attributes {stable_mosaic.version = 11 : i64} {
  func.func @_branch_kernel(%arg0: i32, %arg1: memref<1x4x64xf32, #tpu.memory_space<vmem>>, %arg2: memref<64x16xf32, #tpu.memory_space<vmem>>, %arg3: memref<1x16xf32, #tpu.memory_space<vmem>>, %arg4: memref<64x16xf32, #tpu.memory_space<vmem>>, %arg5: memref<1x16xf32, #tpu.memory_space<vmem>>, %arg6: memref<1x16xf32, #tpu.memory_space<vmem>>, %arg7: memref<1x16xf32, #tpu.memory_space<vmem>>, %arg8: memref<16x64xf32, #tpu.memory_space<vmem>>, %arg9: memref<1x64xf32, #tpu.memory_space<vmem>>, %arg10: memref<1x4x64xf32, #tpu.memory_space<vmem>>, %arg11: memref<4x16xf32, #tpu.memory_space<vmem>>) attributes {dimension_semantics = [#tpu.dimension_semantics<parallel>], iteration_bounds = array<i64: 2>, scalar_prefetch = 0 : i64, scratch_operands = 1 : i64, tpu.core_type = #tpu.core_type<tc>, window_params = [{transform_indices = @transform_0, window_bounds = array<i64: 1, 4, 64>}, {pipeline_mode = #tpu.pipeline_mode<synchronous>, transform_indices = @transform_1, window_bounds = array<i64: 64, 16>}, {pipeline_mode = #tpu.pipeline_mode<synchronous>, transform_indices = @transform_2, window_bounds = array<i64: 1, 16>}, {pipeline_mode = #tpu.pipeline_mode<synchronous>, transform_indices = @transform_3, window_bounds = array<i64: 64, 16>}, {pipeline_mode = #tpu.pipeline_mode<synchronous>, transform_indices = @transform_4, window_bounds = array<i64: 1, 16>}, {pipeline_mode = #tpu.pipeline_mode<synchronous>, transform_indices = @transform_5, window_bounds = array<i64: 1, 16>}, {pipeline_mode = #tpu.pipeline_mode<synchronous>, transform_indices = @transform_6, window_bounds = array<i64: 1, 16>}, {pipeline_mode = #tpu.pipeline_mode<synchronous>, transform_indices = @transform_7, window_bounds = array<i64: 16, 64>}, {pipeline_mode = #tpu.pipeline_mode<synchronous>, transform_indices = @transform_8, window_bounds = array<i64: 1, 64>}, {transform_indices = @transform_9, window_bounds = array<i64: 1, 4, 64>}]} {
    %c0 = arith.constant 0 : index
    %c0_0 = arith.constant 0 : index
    %c0_1 = arith.constant 0 : index
    %0 = vector.load %arg1[%c0, %c0_0, %c0_1] : memref<1x4x64xf32, #tpu.memory_space<vmem>>, vector<1x4x64xf32>
    %1 = vector.shape_cast %0 : vector<1x4x64xf32> to vector<4x64xf32>
    %c0_2 = arith.constant 0 : index
    %c0_3 = arith.constant 0 : index
    %2 = vector.load %arg2[%c0_2, %c0_3] : memref<64x16xf32, #tpu.memory_space<vmem>>, vector<64x16xf32>
    %cst = arith.constant dense<0.000000e+00> : vector<4x16xf32>
    %3 = tpu.matmul %1, %2, %cst {dimension_numbers = #tpu.dot_dimension_numbers<[1], [0], [0], [1], [0, 0, 1, 1], [], []>} : vector<4x64xf32>, vector<64x16xf32>, vector<4x16xf32> -> vector<4x16xf32>
    %c0_4 = arith.constant 0 : index
    %c0_5 = arith.constant 0 : index
    %4 = vector.load %arg3[%c0_4, %c0_5] : memref<1x16xf32, #tpu.memory_space<vmem>>, vector<1x16xf32>
    %5 = vector.broadcast %4 : vector<1x16xf32> to vector<4x16xf32>
    %6 = arith.addf %3, %5 : vector<4x16xf32>
    %7 = math.tanh %6 : vector<4x16xf32>
    %cst_6 = arith.constant 0.000000e+00 : f32
    %8 = vector.broadcast %cst_6 : f32 to vector<4x16xf32>
    %c0_7 = arith.constant 0 : index
    %c0_8 = arith.constant 0 : index
    %9 = vector.load %arg5[%c0_7, %c0_8] : memref<1x16xf32, #tpu.memory_space<vmem>>, vector<1x16xf32>
    %10 = vector.broadcast %9 : vector<1x16xf32> to vector<4x16xf32>
    %11 = arith.addf %8, %10 : vector<4x16xf32>
    %c0_9 = arith.constant 0 : index
    %c0_10 = arith.constant 0 : index
    %12 = vector.load %arg11[%c0_9, %c0_10] : memref<4x16xf32, #tpu.memory_space<vmem>>, vector<4x16xf32>
    tpu.vector_store %arg11[%c0_9, %c0_10], %11 {strides = array<i32>} : memref<4x16xf32, #tpu.memory_space<vmem>>, vector<4x16xf32>,
    %c0_11 = arith.constant 0 : index
    %c0_12 = arith.constant 0 : index
    %13 = vector.load %arg4[%c0_11, %c0_12] : memref<64x16xf32, #tpu.memory_space<vmem>>, vector<16x16xf32>
    %cst_13 = arith.constant dense<0.000000e+00> : vector<4x16xf32>
    %14 = tpu.matmul %7, %13, %cst_13 {dimension_numbers = #tpu.dot_dimension_numbers<[1], [0], [0], [1], [0, 0, 1, 1], [], []>} : vector<4x16xf32>, vector<16x16xf32>, vector<4x16xf32> -> vector<4x16xf32>
    %c0_14 = arith.constant 0 : index
    %c0_15 = arith.constant 0 : index
    %15 = vector.load %arg11[%c0_14, %c0_15] : memref<4x16xf32, #tpu.memory_space<vmem>>, vector<4x16xf32>
    %16 = arith.addf %15, %14 : vector<4x16xf32>
    %c0_16 = arith.constant 0 : index
    %c0_17 = arith.constant 0 : index
    %17 = vector.load %arg11[%c0_16, %c0_17] : memref<4x16xf32, #tpu.memory_space<vmem>>, vector<4x16xf32>
    tpu.vector_store %arg11[%c0_16, %c0_17], %16 {strides = array<i32>} : memref<4x16xf32, #tpu.memory_space<vmem>>, vector<4x16xf32>,
    %c16 = arith.constant 16 : index
    %c0_18 = arith.constant 0 : index
    %18 = vector.load %arg4[%c16, %c0_18] : memref<64x16xf32, #tpu.memory_space<vmem>>, vector<16x16xf32>
    %19 = vector.extract_strided_slice %7 {offsets = [0, 0], sizes = [3, 16], strides = [1, 1]} : vector<4x16xf32> to vector<3x16xf32>
    %cst_19 = arith.constant dense<0.000000e+00> : vector<3x16xf32>
    %20 = tpu.matmul %19, %18, %cst_19 {dimension_numbers = #tpu.dot_dimension_numbers<[1], [0], [0], [1], [0, 0, 1, 1], [], []>} : vector<3x16xf32>, vector<16x16xf32>, vector<3x16xf32> -> vector<3x16xf32>
    %c1 = arith.constant 1 : index
    %c0_20 = arith.constant 0 : index
    %21 = vector.load %arg11[%c1, %c0_20] : memref<4x16xf32, #tpu.memory_space<vmem>>, vector<3x16xf32>
    %22 = arith.addf %21, %20 : vector<3x16xf32>
    %c1_21 = arith.constant 1 : index
    %c0_22 = arith.constant 0 : index
    %23 = vector.load %arg11[%c1_21, %c0_22] : memref<4x16xf32, #tpu.memory_space<vmem>>, vector<3x16xf32>
    tpu.vector_store %arg11[%c1_21, %c0_22], %22 {strides = array<i32>} : memref<4x16xf32, #tpu.memory_space<vmem>>, vector<3x16xf32>,
    %c32 = arith.constant 32 : index
    %c0_23 = arith.constant 0 : index
    %24 = vector.load %arg4[%c32, %c0_23] : memref<64x16xf32, #tpu.memory_space<vmem>>, vector<16x16xf32>
    %25 = vector.extract_strided_slice %7 {offsets = [0, 0], sizes = [2, 16], strides = [1, 1]} : vector<4x16xf32> to vector<2x16xf32>
    %cst_24 = arith.constant dense<0.000000e+00> : vector<2x16xf32>
    %26 = tpu.matmul %25, %24, %cst_24 {dimension_numbers = #tpu.dot_dimension_numbers<[1], [0], [0], [1], [0, 0, 1, 1], [], []>} : vector<2x16xf32>, vector<16x16xf32>, vector<2x16xf32> -> vector<2x16xf32>
    %c2 = arith.constant 2 : index
    %c0_25 = arith.constant 0 : index
    %27 = vector.load %arg11[%c2, %c0_25] : memref<4x16xf32, #tpu.memory_space<vmem>>, vector<2x16xf32>
    %28 = arith.addf %27, %26 : vector<2x16xf32>
    %c2_26 = arith.constant 2 : index
    %c0_27 = arith.constant 0 : index
    %29 = vector.load %arg11[%c2_26, %c0_27] : memref<4x16xf32, #tpu.memory_space<vmem>>, vector<2x16xf32>
    tpu.vector_store %arg11[%c2_26, %c0_27], %28 {strides = array<i32>} : memref<4x16xf32, #tpu.memory_space<vmem>>, vector<2x16xf32>,
    %c48 = arith.constant 48 : index
    %c0_28 = arith.constant 0 : index
    %30 = vector.load %arg4[%c48, %c0_28] : memref<64x16xf32, #tpu.memory_space<vmem>>, vector<16x16xf32>
    %31 = vector.extract_strided_slice %7 {offsets = [0, 0], sizes = [1, 16], strides = [1, 1]} : vector<4x16xf32> to vector<1x16xf32>
    %cst_29 = arith.constant dense<0.000000e+00> : vector<1x16xf32>
    %32 = tpu.matmul %31, %30, %cst_29 {dimension_numbers = #tpu.dot_dimension_numbers<[1], [0], [0], [1], [0, 0, 1, 1], [], []>} : vector<1x16xf32>, vector<16x16xf32>, vector<1x16xf32> -> vector<1x16xf32>
    %c3 = arith.constant 3 : index
    %c0_30 = arith.constant 0 : index
    %33 = vector.load %arg11[%c3, %c0_30] : memref<4x16xf32, #tpu.memory_space<vmem>>, vector<1x16xf32>
    %34 = arith.addf %33, %32 : vector<1x16xf32>
    %c3_31 = arith.constant 3 : index
    %c0_32 = arith.constant 0 : index
    %35 = vector.load %arg11[%c3_31, %c0_32] : memref<4x16xf32, #tpu.memory_space<vmem>>, vector<1x16xf32>
    tpu.vector_store %arg11[%c3_31, %c0_32], %34 {strides = array<i32>} : memref<4x16xf32, #tpu.memory_space<vmem>>, vector<1x16xf32>,
    %c0_33 = arith.constant 0 : index
    %c0_34 = arith.constant 0 : index
    %36 = vector.load %arg11[%c0_33, %c0_34] : memref<4x16xf32, #tpu.memory_space<vmem>>, vector<4x16xf32>
    %37 = math.tanh %36 : vector<4x16xf32>
    %38 = arith.addf %37, %7 : vector<4x16xf32>
    %cst_35 = arith.constant dense<0.000000e+00> : vector<4xf32>
    %39 = vector.multi_reduction <add>, %38, %cst_35 [1] : vector<4x16xf32> to vector<4xf32>
    %40 = vector.shape_cast %39 : vector<4xf32> to vector<4x1xf32>
    %cst_36 = arith.constant 1.600000e+01 : f32
    %41 = vector.broadcast %cst_36 : f32 to vector<4x1xf32>
    %42 = arith.divf %40, %41 : vector<4x1xf32>
    %43 = vector.broadcast %42 : vector<4x1xf32> to vector<4x16xf32>
    %44 = arith.subf %38, %43 : vector<4x16xf32>
    %45 = arith.mulf %44, %44 : vector<4x16xf32>
    %cst_37 = arith.constant dense<0.000000e+00> : vector<4xf32>
    %46 = vector.multi_reduction <add>, %45, %cst_37 [1] : vector<4x16xf32> to vector<4xf32>
    %47 = vector.shape_cast %46 : vector<4xf32> to vector<4x1xf32>
    %cst_38 = arith.constant 1.600000e+01 : f32
    %48 = vector.broadcast %cst_38 : f32 to vector<4x1xf32>
    %49 = arith.divf %47, %48 : vector<4x1xf32>
    %50 = vector.broadcast %42 : vector<4x1xf32> to vector<4x16xf32>
    %51 = arith.subf %38, %50 : vector<4x16xf32>
    %cst_39 = arith.constant 9.99999974E-6 : f32
    %52 = vector.broadcast %cst_39 : f32 to vector<4x1xf32>
    %53 = arith.addf %49, %52 : vector<4x1xf32>
    %54 = math.rsqrt %53 : vector<4x1xf32>
    %55 = vector.broadcast %54 : vector<4x1xf32> to vector<4x16xf32>
    %56 = arith.mulf %51, %55 : vector<4x16xf32>
    %c0_40 = arith.constant 0 : index
    %c0_41 = arith.constant 0 : index
    %57 = vector.load %arg6[%c0_40, %c0_41] : memref<1x16xf32, #tpu.memory_space<vmem>>, vector<1x16xf32>
    %58 = vector.broadcast %57 : vector<1x16xf32> to vector<4x16xf32>
    %59 = arith.mulf %56, %58 : vector<4x16xf32>
    %c0_42 = arith.constant 0 : index
    %c0_43 = arith.constant 0 : index
    %60 = vector.load %arg7[%c0_42, %c0_43] : memref<1x16xf32, #tpu.memory_space<vmem>>, vector<1x16xf32>
    %61 = vector.broadcast %60 : vector<1x16xf32> to vector<4x16xf32>
    %62 = arith.addf %59, %61 : vector<4x16xf32>
    %c0_44 = arith.constant 0 : index
    %c0_45 = arith.constant 0 : index
    %63 = vector.load %arg8[%c0_44, %c0_45] : memref<16x64xf32, #tpu.memory_space<vmem>>, vector<16x64xf32>
    %cst_46 = arith.constant dense<0.000000e+00> : vector<4x64xf32>
    %64 = tpu.matmul %62, %63, %cst_46 {dimension_numbers = #tpu.dot_dimension_numbers<[1], [0], [0], [1], [0, 0, 1, 1], [], []>} : vector<4x16xf32>, vector<16x64xf32>, vector<4x64xf32> -> vector<4x64xf32>
    %c0_47 = arith.constant 0 : index
    %c0_48 = arith.constant 0 : index
    %65 = vector.load %arg9[%c0_47, %c0_48] : memref<1x64xf32, #tpu.memory_space<vmem>>, vector<1x64xf32>
    %66 = vector.broadcast %65 : vector<1x64xf32> to vector<4x64xf32>
    %67 = arith.addf %64, %66 : vector<4x64xf32>
    %68 = math.tanh %67 : vector<4x64xf32>
    %c0_49 = arith.constant 0 : index
    %c0_50 = arith.constant 0 : index
    %c0_51 = arith.constant 0 : index
    %69 = vector.load %arg10[%c0_49, %c0_50, %c0_51] : memref<1x4x64xf32, #tpu.memory_space<vmem>>, vector<1x4x64xf32>
    %70 = vector.shape_cast %69 : vector<1x4x64xf32> to vector<4x64xf32>
    %71 = vector.shape_cast %68 : vector<4x64xf32> to vector<1x4x64xf32>
    tpu.vector_store %arg10[%c0_49, %c0_50, %c0_51], %71 {strides = array<i32>} : memref<1x4x64xf32, #tpu.memory_space<vmem>>, vector<1x4x64xf32>,
    return
  }
  func.func @transform_0(%arg0: i32) -> (i32, i32, i32) {
    %c0_i32 = arith.constant 0 : i32
    %c0_i32_0 = arith.constant 0 : i32
    %c0_i32_1 = arith.constant 0 : i32
    return %arg0, %c0_i32, %c0_i32_0 : i32, i32, i32
  }
  func.func @transform_1(%arg0: i32) -> (i32, i32) {
    %c0_i32 = arith.constant 0 : i32
    %c0_i32_0 = arith.constant 0 : i32
    %c0_i32_1 = arith.constant 0 : i32
    return %c0_i32, %c0_i32_0 : i32, i32
  }
  func.func @transform_2(%arg0: i32) -> (i32, i32) {
    %c0_i32 = arith.constant 0 : i32
    %c0_i32_0 = arith.constant 0 : i32
    %c0_i32_1 = arith.constant 0 : i32
    return %c0_i32, %c0_i32_0 : i32, i32
  }
  func.func @transform_3(%arg0: i32) -> (i32, i32) {
    %c0_i32 = arith.constant 0 : i32
    %c0_i32_0 = arith.constant 0 : i32
    %c0_i32_1 = arith.constant 0 : i32
    return %c0_i32, %c0_i32_0 : i32, i32
  }
  func.func @transform_4(%arg0: i32) -> (i32, i32) {
    %c0_i32 = arith.constant 0 : i32
    %c0_i32_0 = arith.constant 0 : i32
    %c0_i32_1 = arith.constant 0 : i32
    return %c0_i32, %c0_i32_0 : i32, i32
  }
  func.func @transform_5(%arg0: i32) -> (i32, i32) {
    %c0_i32 = arith.constant 0 : i32
    %c0_i32_0 = arith.constant 0 : i32
    %c0_i32_1 = arith.constant 0 : i32
    return %c0_i32, %c0_i32_0 : i32, i32
  }
  func.func @transform_6(%arg0: i32) -> (i32, i32) {
    %c0_i32 = arith.constant 0 : i32
    %c0_i32_0 = arith.constant 0 : i32
    %c0_i32_1 = arith.constant 0 : i32
    return %c0_i32, %c0_i32_0 : i32, i32
  }
  func.func @transform_7(%arg0: i32) -> (i32, i32) {
    %c0_i32 = arith.constant 0 : i32
    %c0_i32_0 = arith.constant 0 : i32
    %c0_i32_1 = arith.constant 0 : i32
    return %c0_i32, %c0_i32_0 : i32, i32
  }
  func.func @transform_8(%arg0: i32) -> (i32, i32) {
    %c0_i32 = arith.constant 0 : i32
    %c0_i32_0 = arith.constant 0 : i32
    %c0_i32_1 = arith.constant 0 : i32
    return %c0_i32, %c0_i32_0 : i32, i32
  }
  func.func @transform_9(%arg0: i32) -> (i32, i32, i32) {
    %c0_i32 = arith.constant 0 : i32
    %c0_i32_0 = arith.constant 0 : i32
    %c0_i32_1 = arith.constant 0 : i32
    return %arg0, %c0_i32, %c0_i32_0 : i32, i32, i32
  }
}

module attributes {stable_mosaic.version = 11 : i64} {
  func.func @_merge_kernel(%arg0: i32, %arg1: memref<1x12x16xf32, #tpu.memory_space<vmem>>, %arg2: memref<1x12x16xf32, #tpu.memory_space<vmem>>, %arg3: memref<32x16xf32, #tpu.memory_space<vmem>>, %arg4: memref<1x16xf32, #tpu.memory_space<vmem>>, %arg5: memref<1x12x16xf32, #tpu.memory_space<vmem>>) attributes {dimension_semantics = [#tpu.dimension_semantics<parallel>], iteration_bounds = array<i64: 2>, scalar_prefetch = 0 : i64, scratch_operands = 0 : i64, tpu.core_type = #tpu.core_type<tc>, window_params = [{transform_indices = @transform_0, window_bounds = array<i64: 1, 12, 16>}, {transform_indices = @transform_1, window_bounds = array<i64: 1, 12, 16>}, {pipeline_mode = #tpu.pipeline_mode<synchronous>, transform_indices = @transform_2, window_bounds = array<i64: 32, 16>}, {pipeline_mode = #tpu.pipeline_mode<synchronous>, transform_indices = @transform_3, window_bounds = array<i64: 1, 16>}, {transform_indices = @transform_4, window_bounds = array<i64: 1, 12, 16>}]} {
    %cst = arith.constant 0.000000e+00 : f32
    %0 = vector.broadcast %cst : f32 to vector<12x16xf32>
    %c0 = arith.constant 0 : index
    %c0_0 = arith.constant 0 : index
    %1 = vector.load %arg4[%c0, %c0_0] : memref<1x16xf32, #tpu.memory_space<vmem>>, vector<1x16xf32>
    %2 = vector.broadcast %1 : vector<1x16xf32> to vector<12x16xf32>
    %3 = arith.addf %0, %2 : vector<12x16xf32>
    %c0_1 = arith.constant 0 : index
    %c0_2 = arith.constant 0 : index
    %c0_3 = arith.constant 0 : index
    %4 = vector.load %arg1[%c0_1, %c0_2, %c0_3] : memref<1x12x16xf32, #tpu.memory_space<vmem>>, vector<1x12x16xf32>
    %5 = vector.shape_cast %4 : vector<1x12x16xf32> to vector<12x16xf32>
    %c0_4 = arith.constant 0 : index
    %c0_5 = arith.constant 0 : index
    %6 = vector.load %arg3[%c0_4, %c0_5] : memref<32x16xf32, #tpu.memory_space<vmem>>, vector<16x16xf32>
    %cst_6 = arith.constant dense<0.000000e+00> : vector<12x16xf32>
    %7 = tpu.matmul %5, %6, %cst_6 {dimension_numbers = #tpu.dot_dimension_numbers<[1], [0], [0], [1], [0, 0, 1, 1], [], []>} : vector<12x16xf32>, vector<16x16xf32>, vector<12x16xf32> -> vector<12x16xf32>
    %8 = arith.addf %3, %7 : vector<12x16xf32>
    %c0_7 = arith.constant 0 : index
    %c0_8 = arith.constant 0 : index
    %c0_9 = arith.constant 0 : index
    %9 = vector.load %arg2[%c0_7, %c0_8, %c0_9] : memref<1x12x16xf32, #tpu.memory_space<vmem>>, vector<1x12x16xf32>
    %10 = vector.shape_cast %9 : vector<1x12x16xf32> to vector<12x16xf32>
    %c16 = arith.constant 16 : index
    %c0_10 = arith.constant 0 : index
    %11 = vector.load %arg3[%c16, %c0_10] : memref<32x16xf32, #tpu.memory_space<vmem>>, vector<16x16xf32>
    %cst_11 = arith.constant dense<0.000000e+00> : vector<12x16xf32>
    %12 = tpu.matmul %10, %11, %cst_11 {dimension_numbers = #tpu.dot_dimension_numbers<[1], [0], [0], [1], [0, 0, 1, 1], [], []>} : vector<12x16xf32>, vector<16x16xf32>, vector<12x16xf32> -> vector<12x16xf32>
    %13 = arith.addf %8, %12 : vector<12x16xf32>
    %c0_12 = arith.constant 0 : index
    %c0_13 = arith.constant 0 : index
    %c0_14 = arith.constant 0 : index
    %14 = vector.load %arg5[%c0_12, %c0_13, %c0_14] : memref<1x12x16xf32, #tpu.memory_space<vmem>>, vector<1x12x16xf32>
    %15 = vector.shape_cast %14 : vector<1x12x16xf32> to vector<12x16xf32>
    %16 = vector.shape_cast %13 : vector<12x16xf32> to vector<1x12x16xf32>
    tpu.vector_store %arg5[%c0_12, %c0_13, %c0_14], %16 {strides = array<i32>} : memref<1x12x16xf32, #tpu.memory_space<vmem>>, vector<1x12x16xf32>,
    return
  }
  func.func @transform_0(%arg0: i32) -> (i32, i32, i32) {
    %c0_i32 = arith.constant 0 : i32
    %c0_i32_0 = arith.constant 0 : i32
    %c0_i32_1 = arith.constant 0 : i32
    return %arg0, %c0_i32, %c0_i32_0 : i32, i32, i32
  }
  func.func @transform_1(%arg0: i32) -> (i32, i32, i32) {
    %c0_i32 = arith.constant 0 : i32
    %c0_i32_0 = arith.constant 0 : i32
    %c0_i32_1 = arith.constant 0 : i32
    return %arg0, %c0_i32, %c0_i32_0 : i32, i32, i32
  }
  func.func @transform_2(%arg0: i32) -> (i32, i32) {
    %c0_i32 = arith.constant 0 : i32
    %c0_i32_0 = arith.constant 0 : i32
    %c0_i32_1 = arith.constant 0 : i32
    return %c0_i32, %c0_i32_0 : i32, i32
  }
  func.func @transform_3(%arg0: i32) -> (i32, i32) {
    %c0_i32 = arith.constant 0 : i32
    %c0_i32_0 = arith.constant 0 : i32
    %c0_i32_1 = arith.constant 0 : i32
    return %c0_i32, %c0_i32_0 : i32, i32
  }
  func.func @transform_4(%arg0: i32) -> (i32, i32, i32) {
    %c0_i32 = arith.constant 0 : i32
    %c0_i32_0 = arith.constant 0 : i32
    %c0_i32_1 = arith.constant 0 : i32
    return %arg0, %c0_i32, %c0_i32_0 : i32, i32, i32
  }
}

</mosaic_0001>

<llo_original>
// kernel: _lambda_.7
$region0: #{_lambda_.7}
  #allocation0 [shape = 'u32[]', space=smem, size = 0x4, offset = 0x4, fixed_abs, tag = 'smem constant byte address 0x4 - core index']
  #allocation1 [shape = 'u32[144,128]{1,0:T(1,128)}', space=vmem, size = 0x12000, scoped, tag = 'internal scratch']
  %s0 = inlined_call_operand.vmem [shape: f32[2,16,16], index: 0, kind: input, shape index: {}]
  %s1 = inlined_call_operand.vmem [shape: f32[2,12,16], index: 1, kind: output, shape index: {}]
  %s2 = sld [smem:[#allocation0]]
  $region37: #{_lambda_.7} parent=0
    _
  %s4 = ssub.s32 1, %s2
  %s5 = scalar_select 0, %s4, %s2
  loop: start=0, step=1, limit=4
  $region2: #{_lambda_.7} parent=0 // loop_pre_header
    _
  $region3: #{_lambda_.7} parent=0 // loop_header
    %s7 = sphi 0, %s11
    %p8 = scmp.ge.s32.totalorder %s7, 4
    %s17 = sphi 0, %s19
    %s20 = sphi 0, %s17
    %s21 = sphi 0, %s20
    %s37 = sphi 0, %s21
    %s43 = sphi 0, %s45
    %s46 = sphi 0, %s43
    %s47 = sphi 0, %s46
    %s63 = sphi 0, %s47
  $region4: #{_lambda_.7} parent=0 // loop_header_branch
    %10 = sbr.rel (%p8) target = $region8
  $region5: #{_lambda_.7} parent=0 // loop_body
    %s12 = ssub.s32 %s7, 1
    %s13 = ssub.s32 %s7, 2
    %s14 = sadd.s32 %s7, 1
    %s15 = ssub.s32 %s7, %s14
    %p16 = scmp.eq.s32.totalorder %s15, 0
    %s18 = sadd.s32 %s17, 1
    %s19 = scalar_select %p16, %s17, %s18
    %p22 = pneg %p16
    %p23 = scmp.eq.s32.totalorder %s7, 1
    %p24 = por %p22, %p23
    %p25 = scmp.ne.s32.totalorder %s17, %s20
    %p26 = scmp.eq.s32.totalorder %s7, 0
    %p27 = por %p25, %p26
    %p28 = scmp.ne.s32.totalorder %s17, %s20
    %p29 = scmp.eq.s32.totalorder %s12, 1
    %p30 = por %p28, %p29
    %p31 = scmp.ne.s32.totalorder %s20, %s21
    %p32 = scmp.eq.s32.totalorder %s12, 0
    %p33 = por %p31, %p32
    %p34 = scmp.ne.s32.totalorder %s20, %s21
    %p35 = scmp.eq.s32.totalorder %s13, 1
    %p36 = por %p34, %p35
    %p38 = scmp.ne.s32.totalorder %s21, %s37
    %p39 = scmp.eq.s32.totalorder %s13, 0
    %p40 = por %p38, %p39
    %s41 = ssub.s32 %s7, %s14
    %p42 = scmp.eq.s32.totalorder %s41, 0
    %s44 = sadd.s32 %s43, 1
    %s45 = scalar_select %p42, %s43, %s44
    %p48 = pneg %p42
    %p49 = scmp.eq.s32.totalorder %s7, 1
    %p50 = por %p48, %p49
    %p51 = scmp.ne.s32.totalorder %s43, %s46
    %p52 = scmp.eq.s32.totalorder %s7, 0
    %p53 = por %p51, %p52
    %p54 = scmp.ne.s32.totalorder %s43, %s46
    %p55 = scmp.eq.s32.totalorder %s12, 1
    %p56 = por %p54, %p55
    %p57 = scmp.ne.s32.totalorder %s46, %s47
    %p58 = scmp.eq.s32.totalorder %s12, 0
    %p59 = por %p57, %p58
    %p60 = scmp.ne.s32.totalorder %s46, %s47
    %p61 = scmp.eq.s32.totalorder %s13, 1
    %p62 = por %p60, %p61
    %p64 = scmp.ne.s32.totalorder %s47, %s63
    %p65 = scmp.eq.s32.totalorder %s13, 0
    %p66 = por %p64, %p65
    %p67 = scmp.le.s32.totalorder 1, %s7
    %p68 = scmp.lt.s32.totalorder %s7, 3
    %p69 = pnand %p67, %p68
    %p70 = pneg %p69
    // Predicated region
    $region9: #{_lambda_.7} parent=5 // pred_check
      _
    $region10: #{_lambda_.7} parent=5 // pred_check_branch
      %72 = sbr.rel (%p69) target = $region12
    $region11: #{_lambda_.7} parent=5 // pred_region
      %s73 = ssub.s32 %s7, 1
    $region12: #{_lambda_.7} parent=5 // pred_fallthru
      _
    %p74 = scmp.lt.s32.totalorder %s7, 2
    // Predicated region
    $region13: #{_lambda_.7} parent=5 // pred_check
      %p75 = pneg %p74
    $region14: #{_lambda_.7} parent=5 // pred_check_branch
      %77 = sbr.rel (%p75) target = $region16
    $region15: #{_lambda_.7} parent=5 // pred_region
      // Predicated region
      $region17: #{_lambda_.7} parent=15 // pred_check
        %p78 = pneg %p27
      $region18: #{_lambda_.7} parent=15 // pred_check_branch
        %80 = sbr.rel (%p78) target = $region20
      $region19: #{_lambda_.7} parent=15 // pred_region
        %p81 = scmp.lt.s32.totalorder %s7, 1
        %s82 = scalar_select %p81, %s7, 1
        %s83 = smul.addr %s82, 2
        %s84 = smul.addr %s83, 8
        %s85 = scalar_lea.vmem %s0, %s84
      $region20: #{_lambda_.7} parent=15 // pred_fallthru
        _
    $region16: #{_lambda_.7} parent=5 // pred_fallthru
      _
    %p86 = scmp.le.s32.totalorder 1, %s7
    %p87 = scmp.lt.s32.totalorder %s7, 3
    %p88 = pnand %p86, %p87
    %p89 = pneg %p88
    // Predicated region
    $region21: #{_lambda_.7} parent=5 // pred_check
      _
    $region22: #{_lambda_.7} parent=5 // pred_check_branch
      %91 = sbr.rel (%p88) target = $region24
    $region23: #{_lambda_.7} parent=5 // pred_region
      %s92 = ssub.s32 %s7, 1
      %p93 = scmp.lt.s32.totalorder %s12, 1
      %s94 = scalar_select %p93, %s12, 1
      %s95 = smul.addr %s94, 2
      %s96 = smul.addr %s95, 8
      %s97 = scalar_lea.vmem %s0, %s96
      %p98 = pneg %p33
      %p99 = pneg %p30
      %p100 = pneg %p59
      %p101 = pneg %p56
      %p102 = scmp.lt.s32.totalorder %s12, 1
      %s103 = scalar_select %p102, %s12, 1
      %s104 = smul.addr %s103, 2
      %s105 = smul.addr %s104, 8
      %s106 = scalar_lea.vmem %s1, %s105
      %p107 = scmp.lt.s32.totalorder %s12, 1
      %s108 = scalar_select %p107, %s12, 1
      %s109 = smul.addr %s108, 2
      %s110 = smul.addr %s109, 8
      %s111 = scalar_lea.vmem %s0, %s110
      %p112 = scmp.lt.s32.totalorder %s12, 1
      %s113 = scalar_select %p112, %s12, 1
      %s114 = smul.addr %s113, 2
      %s115 = smul.addr %s114, 8
      %s116 = scalar_lea.vmem %s1, %s115
      %v117 = vld [vmem:[%s111] sm:$0xff]
      %v118 = vld [vmem:[%s111 + $0x8] sm:$0xf]
      %v119 = vld [vmem:[%s111 + $0x1] sm:$0xff]
      %v120 = vld [vmem:[%s111 + $0x9] sm:$0xf]
      %v121 = vadd.f32 %v117, %v119
      %v122 = vadd.f32 %v118, %v120
      %v123 = vld [vmem:[%s111 + $0x2] sm:$0xff]
      %v124 = vld [vmem:[%s111 + $0xa] sm:$0xf]
      %v125 = vadd.f32 %v121, %v123
      %v126 = vadd.f32 %v122, %v124
      %v127 = vld [vmem:[%s111 + $0x3] sm:$0xff]
      %v128 = vld [vmem:[%s111 + $0xb] sm:$0xf]
      %v129 = vadd.f32 %v125, %v127
      %v130 = vadd.f32 %v126, %v128
      %v131 = vld [vmem:[%s111 + $0x4] sm:$0xff]
      %v132 = vld [vmem:[%s111 + $0xc] sm:$0xf]
      %v133 = vadd.f32 %v129, %v131
      %v134 = vadd.f32 %v130, %v132
      %v135 = vmul.f32 %v133, 0.2
      %v136 = vmul.f32 %v134, 0.2
      %v137 = vsub.f32 %v123, %v135
      %v138 = vsub.f32 %v124, %v136
      %vm139 = vcmask 130048
      %140 = vst.msk [vmem:[%s116] sm:$0xff] %vm139, %v137
      %vm141 = vcmask 125952
      %142 = vst.msk [vmem:[%s116 + $0x8] sm:$0xf] %vm141, %v138
      %p143 = scmp.lt.s32.totalorder %s12, 1
      %s144 = scalar_select %p143, %s12, 1
      %s145 = smul.addr %s144, 2
      %s146 = smul.addr %s145, 8
      %s147 = scalar_lea.vmem %s1, %s146
      // Predicated region
      $region25: #{_lambda_.7} parent=23 // pred_check
        %p148 = pneg %p56
      $region26: #{_lambda_.7} parent=23 // pred_check_branch
        %150 = sbr.rel (%p148) target = $region28
      $region27: #{_lambda_.7} parent=23 // pred_region
        _
      $region28: #{_lambda_.7} parent=23 // pred_fallthru
        _
    $region24: #{_lambda_.7} parent=5 // pred_fallthru
      _
    %p151 = scmp.le.s32.totalorder 2, %s7
    // Predicated region
    $region29: #{_lambda_.7} parent=5 // pred_check
      %p152 = pneg %p151
    $region30: #{_lambda_.7} parent=5 // pred_check_branch
      %154 = sbr.rel (%p152) target = $region32
    $region31: #{_lambda_.7} parent=5 // pred_region
      %s155 = ssub.s32 %s7, 2
      // Predicated region
      $region33: #{_lambda_.7} parent=31 // pred_check
        %p156 = pneg %p62
      $region34: #{_lambda_.7} parent=31 // pred_check_branch
        %158 = sbr.rel (%p156) target = $region36
      $region35: #{_lambda_.7} parent=31 // pred_region
        %p159 = scmp.lt.s32.totalorder %s13, 1
        %s160 = scalar_select %p159, %s13, 1
        %s161 = smul.addr %s160, 2
        %s162 = smul.addr %s161, 8
        %s163 = scalar_lea.vmem %s1, %s162
      $region36: #{_lambda_.7} parent=31 // pred_fallthru
        _
    $region32: #{_lambda_.7} parent=5 // pred_fallthru
      _
  $region6: #{_lambda_.7} parent=0 // loop_footer
    %s11 = sadd.s32 1, %s7
  $region7: #{_lambda_.7} parent=0 // loop_footer_branch
    %6 = sbr.rel target = $region3
  $region8: #{_lambda_.7} parent=0 // loop_exit
    _

// kernel: _lambda_.5
$region0: #{_lambda_.5}
  #allocation0 [shape = 'u32[]', space=smem, size = 0x4, offset = 0x4, fixed_abs, tag = 'smem constant byte address 0x4 - core index']
  #allocation1 [shape = 'u32[144,128]{1,0:T(1,128)}', space=vmem, size = 0x12000, scoped, tag = 'internal scratch']
  %s0 = inlined_call_operand.vmem [shape: f32[2,14,16], index: 0, kind: input, shape index: {}]
  %s1 = inlined_call_operand.vmem [shape: f32[2,12,16], index: 1, kind: output, shape index: {}]
  %s2 = sld [smem:[#allocation0]]
  $region37: #{_lambda_.5} parent=0
    _
  %s4 = ssub.s32 1, %s2
  %s5 = scalar_select 0, %s4, %s2
  loop: start=0, step=1, limit=4
  $region2: #{_lambda_.5} parent=0 // loop_pre_header
    _
  $region3: #{_lambda_.5} parent=0 // loop_header
    %s7 = sphi 0, %s11
    %p8 = scmp.ge.s32.totalorder %s7, 4
    %s17 = sphi 0, %s19
    %s20 = sphi 0, %s17
    %s21 = sphi 0, %s20
    %s37 = sphi 0, %s21
    %s43 = sphi 0, %s45
    %s46 = sphi 0, %s43
    %s47 = sphi 0, %s46
    %s63 = sphi 0, %s47
  $region4: #{_lambda_.5} parent=0 // loop_header_branch
    %10 = sbr.rel (%p8) target = $region8
  $region5: #{_lambda_.5} parent=0 // loop_body
    %s12 = ssub.s32 %s7, 1
    %s13 = ssub.s32 %s7, 2
    %s14 = sadd.s32 %s7, 1
    %s15 = ssub.s32 %s7, %s14
    %p16 = scmp.eq.s32.totalorder %s15, 0
    %s18 = sadd.s32 %s17, 1
    %s19 = scalar_select %p16, %s17, %s18
    %p22 = pneg %p16
    %p23 = scmp.eq.s32.totalorder %s7, 1
    %p24 = por %p22, %p23
    %p25 = scmp.ne.s32.totalorder %s17, %s20
    %p26 = scmp.eq.s32.totalorder %s7, 0
    %p27 = por %p25, %p26
    %p28 = scmp.ne.s32.totalorder %s17, %s20
    %p29 = scmp.eq.s32.totalorder %s12, 1
    %p30 = por %p28, %p29
    %p31 = scmp.ne.s32.totalorder %s20, %s21
    %p32 = scmp.eq.s32.totalorder %s12, 0
    %p33 = por %p31, %p32
    %p34 = scmp.ne.s32.totalorder %s20, %s21
    %p35 = scmp.eq.s32.totalorder %s13, 1
    %p36 = por %p34, %p35
    %p38 = scmp.ne.s32.totalorder %s21, %s37
    %p39 = scmp.eq.s32.totalorder %s13, 0
    %p40 = por %p38, %p39
    %s41 = ssub.s32 %s7, %s14
    %p42 = scmp.eq.s32.totalorder %s41, 0
    %s44 = sadd.s32 %s43, 1
    %s45 = scalar_select %p42, %s43, %s44
    %p48 = pneg %p42
    %p49 = scmp.eq.s32.totalorder %s7, 1
    %p50 = por %p48, %p49
    %p51 = scmp.ne.s32.totalorder %s43, %s46
    %p52 = scmp.eq.s32.totalorder %s7, 0
    %p53 = por %p51, %p52
    %p54 = scmp.ne.s32.totalorder %s43, %s46
    %p55 = scmp.eq.s32.totalorder %s12, 1
    %p56 = por %p54, %p55
    %p57 = scmp.ne.s32.totalorder %s46, %s47
    %p58 = scmp.eq.s32.totalorder %s12, 0
    %p59 = por %p57, %p58
    %p60 = scmp.ne.s32.totalorder %s46, %s47
    %p61 = scmp.eq.s32.totalorder %s13, 1
    %p62 = por %p60, %p61
    %p64 = scmp.ne.s32.totalorder %s47, %s63
    %p65 = scmp.eq.s32.totalorder %s13, 0
    %p66 = por %p64, %p65
    %p67 = scmp.le.s32.totalorder 1, %s7
    %p68 = scmp.lt.s32.totalorder %s7, 3
    %p69 = pnand %p67, %p68
    %p70 = pneg %p69
    // Predicated region
    $region9: #{_lambda_.5} parent=5 // pred_check
      _
    $region10: #{_lambda_.5} parent=5 // pred_check_branch
      %72 = sbr.rel (%p69) target = $region12
    $region11: #{_lambda_.5} parent=5 // pred_region
      %s73 = ssub.s32 %s7, 1
    $region12: #{_lambda_.5} parent=5 // pred_fallthru
      _
    %p74 = scmp.lt.s32.totalorder %s7, 2
    // Predicated region
    $region13: #{_lambda_.5} parent=5 // pred_check
      %p75 = pneg %p74
    $region14: #{_lambda_.5} parent=5 // pred_check_branch
      %77 = sbr.rel (%p75) target = $region16
    $region15: #{_lambda_.5} parent=5 // pred_region
      // Predicated region
      $region17: #{_lambda_.5} parent=15 // pred_check
        %p78 = pneg %p27
      $region18: #{_lambda_.5} parent=15 // pred_check_branch
        %80 = sbr.rel (%p78) target = $region20
      $region19: #{_lambda_.5} parent=15 // pred_region
        %p81 = scmp.lt.s32.totalorder %s7, 1
        %s82 = scalar_select %p81, %s7, 1
        %s83 = smul.addr %s82, 2
        %s84 = smul.addr %s83, 8
        %s85 = scalar_lea.vmem %s0, %s84
      $region20: #{_lambda_.5} parent=15 // pred_fallthru
        _
    $region16: #{_lambda_.5} parent=5 // pred_fallthru
      _
    %p86 = scmp.le.s32.totalorder 1, %s7
    %p87 = scmp.lt.s32.totalorder %s7, 3
    %p88 = pnand %p86, %p87
    %p89 = pneg %p88
    // Predicated region
    $region21: #{_lambda_.5} parent=5 // pred_check
      _
    $region22: #{_lambda_.5} parent=5 // pred_check_branch
      %91 = sbr.rel (%p88) target = $region24
    $region23: #{_lambda_.5} parent=5 // pred_region
      %s92 = ssub.s32 %s7, 1
      %p93 = scmp.lt.s32.totalorder %s12, 1
      %s94 = scalar_select %p93, %s12, 1
      %s95 = smul.addr %s94, 2
      %s96 = smul.addr %s95, 8
      %s97 = scalar_lea.vmem %s0, %s96
      %p98 = pneg %p33
      %p99 = pneg %p30
      %p100 = pneg %p59
      %p101 = pneg %p56
      %p102 = scmp.lt.s32.totalorder %s12, 1
      %s103 = scalar_select %p102, %s12, 1
      %s104 = smul.addr %s103, 2
      %s105 = smul.addr %s104, 8
      %s106 = scalar_lea.vmem %s1, %s105
      %p107 = scmp.lt.s32.totalorder %s12, 1
      %s108 = scalar_select %p107, %s12, 1
      %s109 = smul.addr %s108, 2
      %s110 = smul.addr %s109, 8
      %s111 = scalar_lea.vmem %s0, %s110
      %p112 = scmp.lt.s32.totalorder %s12, 1
      %s113 = scalar_select %p112, %s12, 1
      %s114 = smul.addr %s113, 2
      %s115 = smul.addr %s114, 8
      %s116 = scalar_lea.vmem %s1, %s115
      %v117 = vld [vmem:[%s111] sm:$0xff]
      %v118 = vld [vmem:[%s111 + $0x8] sm:$0xf]
      %v119 = vld [vmem:[%s111 + $0x1] sm:$0xff]
      %v120 = vld [vmem:[%s111 + $0x9] sm:$0xf]
      %v121 = vadd.f32 %v117, %v119
      %v122 = vadd.f32 %v118, %v120
      %v123 = vld [vmem:[%s111 + $0x2] sm:$0xff]
      %v124 = vld [vmem:[%s111 + $0xa] sm:$0xf]
      %v125 = vadd.f32 %v121, %v123
      %v126 = vadd.f32 %v122, %v124
      %v127 = vmul.f32 %v125, 0.33333334
      %v128 = vmul.f32 %v126, 0.33333334
      %v129 = vsub.f32 %v119, %v127
      %v130 = vsub.f32 %v120, %v128
      %vm131 = vcmask 130048
      %132 = vst.msk [vmem:[%s116] sm:$0xff] %vm131, %v129
      %vm133 = vcmask 125952
      %134 = vst.msk [vmem:[%s116 + $0x8] sm:$0xf] %vm133, %v130
      %p135 = scmp.lt.s32.totalorder %s12, 1
      %s136 = scalar_select %p135, %s12, 1
      %s137 = smul.addr %s136, 2
      %s138 = smul.addr %s137, 8
      %s139 = scalar_lea.vmem %s1, %s138
      // Predicated region
      $region25: #{_lambda_.5} parent=23 // pred_check
        %p140 = pneg %p56
      $region26: #{_lambda_.5} parent=23 // pred_check_branch
        %142 = sbr.rel (%p140) target = $region28
      $region27: #{_lambda_.5} parent=23 // pred_region
        _
      $region28: #{_lambda_.5} parent=23 // pred_fallthru
        _
    $region24: #{_lambda_.5} parent=5 // pred_fallthru
      _
    %p143 = scmp.le.s32.totalorder 2, %s7
    // Predicated region
    $region29: #{_lambda_.5} parent=5 // pred_check
      %p144 = pneg %p143
    $region30: #{_lambda_.5} parent=5 // pred_check_branch
      %146 = sbr.rel (%p144) target = $region32
    $region31: #{_lambda_.5} parent=5 // pred_region
      %s147 = ssub.s32 %s7, 2
      // Predicated region
      $region33: #{_lambda_.5} parent=31 // pred_check
        %p148 = pneg %p62
      $region34: #{_lambda_.5} parent=31 // pred_check_branch
        %150 = sbr.rel (%p148) target = $region36
      $region35: #{_lambda_.5} parent=31 // pred_region
        %p151 = scmp.lt.s32.totalorder %s13, 1
        %s152 = scalar_select %p151, %s13, 1
        %s153 = smul.addr %s152, 2
        %s154 = smul.addr %s153, 8
        %s155 = scalar_lea.vmem %s1, %s154
      $region36: #{_lambda_.5} parent=31 // pred_fallthru
        _
    $region32: #{_lambda_.5} parent=5 // pred_fallthru
      _
  $region6: #{_lambda_.5} parent=0 // loop_footer
    %s11 = sadd.s32 1, %s7
  $region7: #{_lambda_.5} parent=0 // loop_footer_branch
    %6 = sbr.rel target = $region3
  $region8: #{_lambda_.5} parent=0 // loop_exit
    _

// kernel: _lambda_.8
$region0: #{_lambda_.8}
  #allocation0 [shape = 'u32[]', space=smem, size = 0x4, offset = 0x4, fixed_abs, tag = 'smem constant byte address 0x4 - core index']
  #allocation1 [shape = 'u32[144,128]{1,0:T(1,128)}', space=vmem, size = 0x12000, scoped, tag = 'internal scratch']
  #allocation2 [shape = 'f32[4,16]{1,0:T(4,128)}', space=vmem, size = 0x800, scoped, tag = 'scratch operand']
  %s0 = inlined_call_operand.vmem [shape: f32[2,4,64], index: 0, kind: input, shape index: {}]
  %s1 = inlined_call_operand.vmem [shape: f32[64,16], index: 1, kind: input, shape index: {}]
  %s2 = inlined_call_operand.vmem [shape: f32[1,16], index: 2, kind: input, shape index: {}]
  %s3 = inlined_call_operand.vmem [shape: f32[64,16], index: 3, kind: input, shape index: {}]
  %s4 = inlined_call_operand.vmem [shape: f32[1,16], index: 4, kind: input, shape index: {}]
  %s5 = inlined_call_operand.vmem [shape: f32[1,16], index: 5, kind: input, shape index: {}]
  %s6 = inlined_call_operand.vmem [shape: f32[1,16], index: 6, kind: input, shape index: {}]
  %s7 = inlined_call_operand.vmem [shape: f32[16,64], index: 7, kind: input, shape index: {}]
  %s8 = inlined_call_operand.vmem [shape: f32[1,64], index: 8, kind: input, shape index: {}]
  %s9 = inlined_call_operand.vmem [shape: f32[2,4,64], index: 9, kind: output, shape index: {}]
  %s10 = sld [smem:[#allocation0]]
  $region69: #{_lambda_.8} parent=0
    _
  %s12 = ssub.s32 1, %s10
  %s13 = scalar_select 0, %s12, %s10
  loop: start=0, step=1, limit=4
  $region2: #{_lambda_.8} parent=0 // loop_pre_header
    _
  $region3: #{_lambda_.8} parent=0 // loop_header
    %s15 = sphi 0, %s19
    %p16 = scmp.ge.s32.totalorder %s15, 4
    %s25 = sphi 0, %s27
    %s28 = sphi 0, %s25
    %s29 = sphi 0, %s28
    %s45 = sphi 0, %s29
    %s49 = sphi 0, %s49
    %s51 = sphi 0, %s49
    %s52 = sphi 0, %s51
    %s66 = sphi 0, %s52
    %s70 = sphi 0, %s70
    %s72 = sphi 0, %s70
    %s73 = sphi 0, %s72
    %s87 = sphi 0, %s73
    %s91 = sphi 0, %s91
    %s93 = sphi 0, %s91
    %s94 = sphi 0, %s93
    %s108 = sphi 0, %s94
    %s112 = sphi 0, %s112
    %s114 = sphi 0, %s112
    %s115 = sphi 0, %s114
    %s129 = sphi 0, %s115
    %s133 = sphi 0, %s133
    %s135 = sphi 0, %s133
    %s136 = sphi 0, %s135
    %s150 = sphi 0, %s136
    %s154 = sphi 0, %s154
    %s156 = sphi 0, %s154
    %s157 = sphi 0, %s156
    %s171 = sphi 0, %s157
    %s175 = sphi 0, %s175
    %s177 = sphi 0, %s175
    %s178 = sphi 0, %s177
    %s192 = sphi 0, %s178
    %s196 = sphi 0, %s196
    %s198 = sphi 0, %s196
    %s199 = sphi 0, %s198
    %s213 = sphi 0, %s199
    %s219 = sphi 0, %s221
    %s222 = sphi 0, %s219
    %s223 = sphi 0, %s222
    %s239 = sphi 0, %s223
  $region4: #{_lambda_.8} parent=0 // loop_header_branch
    %18 = sbr.rel (%p16) target = $region8
  $region5: #{_lambda_.8} parent=0 // loop_body
    %s20 = ssub.s32 %s15, 1
    %s21 = ssub.s32 %s15, 2
    %s22 = sadd.s32 %s15, 1
    %s23 = ssub.s32 %s15, %s22
    %p24 = scmp.eq.s32.totalorder %s23, 0
    %s26 = sadd.s32 %s25, 1
    %s27 = scalar_select %p24, %s25, %s26
    %p30 = pneg %p24
    %p31 = scmp.eq.s32.totalorder %s15, 1
    %p32 = por %p30, %p31
    %p33 = scmp.ne.s32.totalorder %s25, %s28
    %p34 = scmp.eq.s32.totalorder %s15, 0
    %p35 = por %p33, %p34
    %p36 = scmp.ne.s32.totalorder %s25, %s28
    %p37 = scmp.eq.s32.totalorder %s20, 1
    %p38 = por %p36, %p37
    %p39 = scmp.ne.s32.totalorder %s28, %s29
    %p40 = scmp.eq.s32.totalorder %s20, 0
    %p41 = por %p39, %p40
    %p42 = scmp.ne.s32.totalorder %s28, %s29
    %p43 = scmp.eq.s32.totalorder %s21, 1
    %p44 = por %p42, %p43
    %p46 = scmp.ne.s32.totalorder %s29, %s45
    %p47 = scmp.eq.s32.totalorder %s21, 0
    %p48 = por %p46, %p47
    %s50 = sadd.s32 %s49, 1
    %p53 = scmp.eq.s32.totalorder %s15, 1
    %p54 = scmp.ne.s32.totalorder %s49, %s51
    %p55 = scmp.eq.s32.totalorder %s15, 0
    %p56 = por %p54, %p55
    %p57 = scmp.ne.s32.totalorder %s49, %s51
    %p58 = scmp.eq.s32.totalorder %s20, 1
    %p59 = por %p57, %p58
    %p60 = scmp.ne.s32.totalorder %s51, %s52
    %p61 = scmp.eq.s32.totalorder %s20, 0
    %p62 = por %p60, %p61
    %p63 = scmp.ne.s32.totalorder %s51, %s52
    %p64 = scmp.eq.s32.totalorder %s21, 1
    %p65 = por %p63, %p64
    %p67 = scmp.ne.s32.totalorder %s52, %s66
    %p68 = scmp.eq.s32.totalorder %s21, 0
    %p69 = por %p67, %p68
    %s71 = sadd.s32 %s70, 1
    %p74 = scmp.eq.s32.totalorder %s15, 1
    %p75 = scmp.ne.s32.totalorder %s70, %s72
    %p76 = scmp.eq.s32.totalorder %s15, 0
    %p77 = por %p75, %p76
    %p78 = scmp.ne.s32.totalorder %s70, %s72
    %p79 = scmp.eq.s32.totalorder %s20, 1
    %p80 = por %p78, %p79
    %p81 = scmp.ne.s32.totalorder %s72, %s73
    %p82 = scmp.eq.s32.totalorder %s20, 0
    %p83 = por %p81, %p82
    %p84 = scmp.ne.s32.totalorder %s72, %s73
    %p85 = scmp.eq.s32.totalorder %s21, 1
    %p86 = por %p84, %p85
    %p88 = scmp.ne.s32.totalorder %s73, %s87
    %p89 = scmp.eq.s32.totalorder %s21, 0
    %p90 = por %p88, %p89
    %s92 = sadd.s32 %s91, 1
    %p95 = scmp.eq.s32.totalorder %s15, 1
    %p96 = scmp.ne.s32.totalorder %s91, %s93
    %p97 = scmp.eq.s32.totalorder %s15, 0
    %p98 = por %p96, %p97
    %p99 = scmp.ne.s32.totalorder %s91, %s93
    %p100 = scmp.eq.s32.totalorder %s20, 1
    %p101 = por %p99, %p100
    %p102 = scmp.ne.s32.totalorder %s93, %s94
    %p103 = scmp.eq.s32.totalorder %s20, 0
    %p104 = por %p102, %p103
    %p105 = scmp.ne.s32.totalorder %s93, %s94
    %p106 = scmp.eq.s32.totalorder %s21, 1
    %p107 = por %p105, %p106
    %p109 = scmp.ne.s32.totalorder %s94, %s108
    %p110 = scmp.eq.s32.totalorder %s21, 0
    %p111 = por %p109, %p110
    %s113 = sadd.s32 %s112, 1
    %p116 = scmp.eq.s32.totalorder %s15, 1
    %p117 = scmp.ne.s32.totalorder %s112, %s114
    %p118 = scmp.eq.s32.totalorder %s15, 0
    %p119 = por %p117, %p118
    %p120 = scmp.ne.s32.totalorder %s112, %s114
    %p121 = scmp.eq.s32.totalorder %s20, 1
    %p122 = por %p120, %p121
    %p123 = scmp.ne.s32.totalorder %s114, %s115
    %p124 = scmp.eq.s32.totalorder %s20, 0
    %p125 = por %p123, %p124
    %p126 = scmp.ne.s32.totalorder %s114, %s115
    %p127 = scmp.eq.s32.totalorder %s21, 1
    %p128 = por %p126, %p127
    %p130 = scmp.ne.s32.totalorder %s115, %s129
    %p131 = scmp.eq.s32.totalorder %s21, 0
    %p132 = por %p130, %p131
    %s134 = sadd.s32 %s133, 1
    %p137 = scmp.eq.s32.totalorder %s15, 1
    %p138 = scmp.ne.s32.totalorder %s133, %s135
    %p139 = scmp.eq.s32.totalorder %s15, 0
    %p140 = por %p138, %p139
    %p141 = scmp.ne.s32.totalorder %s133, %s135
    %p142 = scmp.eq.s32.totalorder %s20, 1
    %p143 = por %p141, %p142
    %p144 = scmp.ne.s32.totalorder %s135, %s136
    %p145 = scmp.eq.s32.totalorder %s20, 0
    %p146 = por %p144, %p145
    %p147 = scmp.ne.s32.totalorder %s135, %s136
    %p148 = scmp.eq.s32.totalorder %s21, 1
    %p149 = por %p147, %p148
    %p151 = scmp.ne.s32.totalorder %s136, %s150
    %p152 = scmp.eq.s32.totalorder %s21, 0
    %p153 = por %p151, %p152
    %s155 = sadd.s32 %s154, 1
    %p158 = scmp.eq.s32.totalorder %s15, 1
    %p159 = scmp.ne.s32.totalorder %s154, %s156
    %p160 = scmp.eq.s32.totalorder %s15, 0
    %p161 = por %p159, %p160
    %p162 = scmp.ne.s32.totalorder %s154, %s156
    %p163 = scmp.eq.s32.totalorder %s20, 1
    %p164 = por %p162, %p163
    %p165 = scmp.ne.s32.totalorder %s156, %s157
    %p166 = scmp.eq.s32.totalorder %s20, 0
    %p167 = por %p165, %p166
    %p168 = scmp.ne.s32.totalorder %s156, %s157
    %p169 = scmp.eq.s32.totalorder %s21, 1
    %p170 = por %p168, %p169
    %p172 = scmp.ne.s32.totalorder %s157, %s171
    %p173 = scmp.eq.s32.totalorder %s21, 0
    %p174 = por %p172, %p173
    %s176 = sadd.s32 %s175, 1
    %p179 = scmp.eq.s32.totalorder %s15, 1
    %p180 = scmp.ne.s32.totalorder %s175, %s177
    %p181 = scmp.eq.s32.totalorder %s15, 0
    %p182 = por %p180, %p181
    %p183 = scmp.ne.s32.totalorder %s175, %s177
    %p184 = scmp.eq.s32.totalorder %s20, 1
    %p185 = por %p183, %p184
    %p186 = scmp.ne.s32.totalorder %s177, %s178
    %p187 = scmp.eq.s32.totalorder %s20, 0
    %p188 = por %p186, %p187
    %p189 = scmp.ne.s32.totalorder %s177, %s178
    %p190 = scmp.eq.s32.totalorder %s21, 1
    %p191 = por %p189, %p190
    %p193 = scmp.ne.s32.totalorder %s178, %s192
    %p194 = scmp.eq.s32.totalorder %s21, 0
    %p195 = por %p193, %p194
    %s197 = sadd.s32 %s196, 1
    %p200 = scmp.eq.s32.totalorder %s15, 1
    %p201 = scmp.ne.s32.totalorder %s196, %s198
    %p202 = scmp.eq.s32.totalorder %s15, 0
    %p203 = por %p201, %p202
    %p204 = scmp.ne.s32.totalorder %s196, %s198
    %p205 = scmp.eq.s32.totalorder %s20, 1
    %p206 = por %p204, %p205
    %p207 = scmp.ne.s32.totalorder %s198, %s199
    %p208 = scmp.eq.s32.totalorder %s20, 0
    %p209 = por %p207, %p208
    %p210 = scmp.ne.s32.totalorder %s198, %s199
    %p211 = scmp.eq.s32.totalorder %s21, 1
    %p212 = por %p210, %p211
    %p214 = scmp.ne.s32.totalorder %s199, %s213
    %p215 = scmp.eq.s32.totalorder %s21, 0
    %p216 = por %p214, %p215
    %s217 = ssub.s32 %s15, %s22
    %p218 = scmp.eq.s32.totalorder %s217, 0
    %s220 = sadd.s32 %s219, 1
    %s221 = scalar_select %p218, %s219, %s220
    %p224 = pneg %p218
    %p225 = scmp.eq.s32.totalorder %s15, 1
    %p226 = por %p224, %p225
    %p227 = scmp.ne.s32.totalorder %s219, %s222
    %p228 = scmp.eq.s32.totalorder %s15, 0
    %p229 = por %p227, %p228
    %p230 = scmp.ne.s32.totalorder %s219, %s222
    %p231 = scmp.eq.s32.totalorder %s20, 1
    %p232 = por %p230, %p231
    %p233 = scmp.ne.s32.totalorder %s222, %s223
    %p234 = scmp.eq.s32.totalorder %s20, 0
    %p235 = por %p233, %p234
    %p236 = scmp.ne.s32.totalorder %s222, %s223
    %p237 = scmp.eq.s32.totalorder %s21, 1
    %p238 = por %p236, %p237
    %p240 = scmp.ne.s32.totalorder %s223, %s239
    %p241 = scmp.eq.s32.totalorder %s21, 0
    %p242 = por %p240, %p241
    %p243 = scmp.le.s32.totalorder 1, %s15
    %p244 = scmp.lt.s32.totalorder %s15, 3
    %p245 = pnand %p243, %p244
    %p246 = pneg %p245
    // Predicated region
    $region9: #{_lambda_.8} parent=5 // pred_check
      _
    $region10: #{_lambda_.8} parent=5 // pred_check_branch
      %248 = sbr.rel (%p245) target = $region12
    $region11: #{_lambda_.8} parent=5 // pred_region
      %s249 = ssub.s32 %s15, 1
      // Predicated region
      $region13: #{_lambda_.8} parent=11 // pred_check
        %p250 = pneg %p62
      $region14: #{_lambda_.8} parent=11 // pred_check_branch
        %252 = sbr.rel (%p250) target = $region16
      $region15: #{_lambda_.8} parent=11 // pred_region
        _
      $region16: #{_lambda_.8} parent=11 // pred_fallthru
        _
      // Predicated region
      $region17: #{_lambda_.8} parent=11 // pred_check
        %p253 = pneg %p83
      $region18: #{_lambda_.8} parent=11 // pred_check_branch
        %255 = sbr.rel (%p253) target = $region20
      $region19: #{_lambda_.8} parent=11 // pred_region
        _
      $region20: #{_lambda_.8} parent=11 // pred_fallthru
        _
      // Predicated region
      $region21: #{_lambda_.8} parent=11 // pred_check
        %p256 = pneg %p104
      $region22: #{_lambda_.8} parent=11 // pred_check_branch
        %258 = sbr.rel (%p256) target = $region24
      $region23: #{_lambda_.8} parent=11 // pred_region
        _
      $region24: #{_lambda_.8} parent=11 // pred_fallthru
        _
      // Predicated region
      $region25: #{_lambda_.8} parent=11 // pred_check
        %p259 = pneg %p125
      $region26: #{_lambda_.8} parent=11 // pred_check_branch
        %261 = sbr.rel (%p259) target = $region28
      $region27: #{_lambda_.8} parent=11 // pred_region
        _
      $region28: #{_lambda_.8} parent=11 // pred_fallthru
        _
      // Predicated region
      $region29: #{_lambda_.8} parent=11 // pred_check
        %p262 = pneg %p146
      $region30: #{_lambda_.8} parent=11 // pred_check_branch
        %264 = sbr.rel (%p262) target = $region32
      $region31: #{_lambda_.8} parent=11 // pred_region
        _
      $region32: #{_lambda_.8} parent=11 // pred_fallthru
        _
      // Predicated region
      $region33: #{_lambda_.8} parent=11 // pred_check
        %p265 = pneg %p167
      $region34: #{_lambda_.8} parent=11 // pred_check_branch
        %267 = sbr.rel (%p265) target = $region36
      $region35: #{_lambda_.8} parent=11 // pred_region
        _
      $region36: #{_lambda_.8} parent=11 // pred_fallthru
        _
      // Predicated region
      $region37: #{_lambda_.8} parent=11 // pred_check
        %p268 = pneg %p188
      $region38: #{_lambda_.8} parent=11 // pred_check_branch
        %270 = sbr.rel (%p268) target = $region40
      $region39: #{_lambda_.8} parent=11 // pred_region
        _
      $region40: #{_lambda_.8} parent=11 // pred_fallthru
        _
      // Predicated region
      $region41: #{_lambda_.8} parent=11 // pred_check
        %p271 = pneg %p209
      $region42: #{_lambda_.8} parent=11 // pred_check_branch
        %273 = sbr.rel (%p271) target = $region44
      $region43: #{_lambda_.8} parent=11 // pred_region
        _
      $region44: #{_lambda_.8} parent=11 // pred_fallthru
        _
    $region12: #{_lambda_.8} parent=5 // pred_fallthru
      _
    %p274 = scmp.lt.s32.totalorder %s15, 2
    // Predicated region
    $region45: #{_lambda_.8} parent=5 // pred_check
      %p275 = pneg %p274
    $region46: #{_lambda_.8} parent=5 // pred_check_branch
      %277 = sbr.rel (%p275) target = $region48
    $region47: #{_lambda_.8} parent=5 // pred_region
      // Predicated region
      $region49: #{_lambda_.8} parent=47 // pred_check
        %p278 = pneg %p35
      $region50: #{_lambda_.8} parent=47 // pred_check_branch
        %280 = sbr.rel (%p278) target = $region52
      $region51: #{_lambda_.8} parent=47 // pred_region
        %p281 = scmp.lt.s32.totalorder %s15, 1
        %s282 = scalar_select %p281, %s15, 1
        %s283 = smul.addr %s282, 4
        %s284 = scalar_lea.vmem %s0, %s283
      $region52: #{_lambda_.8} parent=47 // pred_fallthru
        _
    $region48: #{_lambda_.8} parent=5 // pred_fallthru
      _
    %p285 = scmp.le.s32.totalorder 1, %s15
    %p286 = scmp.lt.s32.totalorder %s15, 3
    %p287 = pnand %p285, %p286
    %p288 = pneg %p287
    // Predicated region
    $region53: #{_lambda_.8} parent=5 // pred_check
      _
    $region54: #{_lambda_.8} parent=5 // pred_check_branch
      %290 = sbr.rel (%p287) target = $region56
    $region55: #{_lambda_.8} parent=5 // pred_region
      %s291 = ssub.s32 %s15, 1
      %p292 = scmp.lt.s32.totalorder %s20, 1
      %s293 = scalar_select %p292, %s20, 1
      %s294 = smul.addr %s293, 4
      %s295 = scalar_lea.vmem %s0, %s294
      %p296 = pneg %p41
      %p297 = pneg %p38
      %p298 = pneg %p62
      %p299 = pneg %p59
      %p300 = pneg %p83
      %p301 = pneg %p80
      %p302 = pneg %p104
      %p303 = pneg %p101
      %p304 = pneg %p125
      %p305 = pneg %p122
      %p306 = pneg %p146
      %p307 = pneg %p143
      %p308 = pneg %p167
      %p309 = pneg %p164
      %p310 = pneg %p188
      %p311 = pneg %p185
      %p312 = pneg %p209
      %p313 = pneg %p206
      %p314 = pneg %p235
      %p315 = pneg %p232
      %p316 = scmp.lt.s32.totalorder %s20, 1
      %s317 = scalar_select %p316, %s20, 1
      %s318 = smul.addr %s317, 4
      %s319 = scalar_lea.vmem %s9, %s318
      %p320 = scmp.lt.s32.totalorder %s20, 1
      %s321 = scalar_select %p320, %s20, 1
      %s322 = smul.addr %s321, 4
      %s323 = scalar_lea.vmem %s0, %s322
      %p324 = scmp.lt.s32.totalorder %s20, 1
      %s325 = scalar_select %p324, %s20, 1
      %s326 = smul.addr %s325, 4
      %s327 = scalar_lea.vmem %s9, %s326
      %v328 = vld [vmem:[%s323] sm:$0xf]
      %v329 = vld [vmem:[%s1] sm:$0xff]
      %v330 = vld [vmem:[%s1 + $0x8] sm:$0xff]
      %v331 = vld [vmem:[%s1 + $0x10] sm:$0xff]
      %v332 = vld [vmem:[%s1 + $0x18] sm:$0xff]
      %v333 = vld [vmem:[%s1 + $0x20] sm:$0xff]
      %v334 = vld [vmem:[%s1 + $0x28] sm:$0xff]
      %v335 = vld [vmem:[%s1 + $0x30] sm:$0xff]
      %v336 = vld [vmem:[%s1 + $0x38] sm:$0xff]
      %v337 = vld [vmem:[%s2] sm:$0x1]
      %v339 = vlaneseq
      %v340 = vshrl.u32 %v339, 7
      %v341 = vsub.s32 0, %v340
      %v342 = vrot.slane %v337, %v341
      %vm344 = vcmask 523264
      %v346 = vsel %vm344, %v328, 0
      %348 = vmatprep.subr.mxu0 0.0
      %349 = vmatpush1.msra.mxu0 0.0
      %350 = vmatprep.subr.mxu0 0.0
      %351 = vmatpush1.msra.mxu0 0.0
      %352 = vmatprep.subr.mxu0 0.0
      %353 = vmatpush1.msra.mxu0 0.0
      %354 = vmatprep.subr.mxu0 0.0
      %355 = vmatpush1.msra.mxu0 0.0
      %356 = vmatprep.subr.mxu0 0.0
      %357 = vmatpush1.msra.mxu0 0.0
      %358 = vmatprep.subr.mxu0 0.0
      %359 = vmatpush1.msra.mxu0 0.0
      %360 = vmatprep.subr.mxu0 0.0
      %361 = vmatpush1.msra.mxu0 0.0
      %362 = vmatprep.subr.mxu0 0.0
      %363 = vmatpush1.msra.mxu0 0.0
      %364 = vmatprep.subr.mxu0 0.0
      %365 = vmatpush1.msra.mxu0 %v336
      %366 = vmatprep.subr.mxu0 0.0
      %367 = vmatpush1.msra.mxu0 %v335
      %368 = vmatprep.subr.mxu0 0.0
      %369 = vmatpush1.msra.mxu0 %v334
      %370 = vmatprep.subr.mxu0 0.0
      %371 = vmatpush1.msra.mxu0 %v333
      %372 = vmatprep.subr.mxu0 0.0
      %373 = vmatpush1.msra.mxu0 %v332
      %374 = vmatprep.subr.mxu0 0.0
      %375 = vmatpush1.msra.mxu0 %v331
      %376 = vmatprep.subr.mxu0 0.0
      %377 = vmatpush1.msra.mxu0 %v330
      %378 = vmatprep.subr.mxu0 0.0
      %379 = vmatpush1.msra.mxu0 %v329
      %380 = vmatprep.subr.mxu0 0.0
      %381 = vmatpush2.msra.mxu0 0.0
      %382 = vmatprep.subr.mxu0 0.0
      %383 = vmatpush2.msra.mxu0 0.0
      %384 = vmatprep.subr.mxu0 0.0
      %385 = vmatpush2.msra.mxu0 0.0
      %386 = vmatprep.subr.mxu0 0.0
      %387 = vmatpush2.msra.mxu0 0.0
      %388 = vmatprep.subr.mxu0 0.0
      %389 = vmatpush2.msra.mxu0 0.0
      %390 = vmatprep.subr.mxu0 0.0
      %391 = vmatpush2.msra.mxu0 0.0
      %392 = vmatprep.subr.mxu0 0.0
      %393 = vmatpush2.msra.mxu0 0.0
      %394 = vmatprep.subr.mxu0 0.0
      %395 = vmatpush2.msra.mxu0 0.0
      %396 = vmatprep.subr.mxu0 0.0
      %397 = vmatpush2.msra.mxu0 0.0
      %398 = vmatprep.subr.mxu0 0.0
      %399 = vmatpush2.msra.mxu0 0.0
      %400 = vmatprep.subr.mxu0 0.0
      %401 = vmatpush2.msra.mxu0 0.0
      %402 = vmatprep.subr.mxu0 0.0
      %403 = vmatpush2.msra.mxu0 0.0
      %404 = vmatprep.subr.mxu0 0.0
      %405 = vmatpush2.msra.mxu0 0.0
      %406 = vmatprep.subr.mxu0 0.0
      %407 = vmatpush2.msra.mxu0 0.0
      %408 = vmatprep.subr.mxu0 0.0
      %409 = vmatpush2.msra.mxu0 0.0
      %410 = vmatprep.subr.mxu0 0.0
      %411 = vmatpush2.msra.mxu0 0.0
      %412 = vmatprep.mubr.f32.mxu0 0.0
      %413 = vmatmul.mubr.f32.gmra.mxu0 %v346
      %v414 = vpop.f32.mrf.mxu0
      %v415 = vadd.f32 %v342, %v414
      %v416 = vpop.f32.mrf.mxu0
      %417 = vdwg.mxu0
      %v418 = vtanh.pop %v415
      %v419 = vld [vmem:[%s4] sm:$0x1]
      %v421 = vlaneseq
      %v422 = vshrl.u32 %v421, 7
      %v423 = vsub.s32 0, %v422
      %v424 = vrot.slane %v419, %v423
      %v426 = vadd.f32 %v424, 0.0
      %vm427 = vcmask 125952
      %428 = vst.msk [vmem:[#allocation2] sm:$0xf] %vm427, %v426
      %v429 = vld [vmem:[%s3] sm:$0xff]
      %v430 = vld [vmem:[%s3 + $0x8] sm:$0xff]
      %vm431 = vcmask 130048
      %v433 = vsel %vm431, %v418, 0
      %435 = vmatprep.subr.mxu0 0.0
      %436 = vmatpush1.msra.mxu0 0.0
      %437 = vmatprep.subr.mxu0 0.0
      %438 = vmatpush1.msra.mxu0 0.0
      %439 = vmatprep.subr.mxu0 0.0
      %440 = vmatpush1.msra.mxu0 0.0
      %441 = vmatprep.subr.mxu0 0.0
      %442 = vmatpush1.msra.mxu0 0.0
      %443 = vmatprep.subr.mxu0 0.0
      %444 = vmatpush1.msra.mxu0 0.0
      %445 = vmatprep.subr.mxu0 0.0
      %446 = vmatpush1.msra.mxu0 0.0
      %447 = vmatprep.subr.mxu0 0.0
      %448 = vmatpush1.msra.mxu0 0.0
      %449 = vmatprep.subr.mxu0 0.0
      %450 = vmatpush1.msra.mxu0 0.0
      %451 = vmatprep.subr.mxu0 0.0
      %452 = vmatpush1.msra.mxu0 0.0
      %453 = vmatprep.subr.mxu0 0.0
      %454 = vmatpush1.msra.mxu0 0.0
      %455 = vmatprep.subr.mxu0 0.0
      %456 = vmatpush1.msra.mxu0 0.0
      %457 = vmatprep.subr.mxu0 0.0
      %458 = vmatpush1.msra.mxu0 0.0
      %459 = vmatprep.subr.mxu0 0.0
      %460 = vmatpush1.msra.mxu0 0.0
      %461 = vmatprep.subr.mxu0 0.0
      %462 = vmatpush1.msra.mxu0 0.0
      %463 = vmatprep.subr.mxu0 0.0
      %464 = vmatpush1.msra.mxu0 %v430
      %465 = vmatprep.subr.mxu0 0.0
      %466 = vmatpush1.msra.mxu0 %v429
      %467 = vmatprep.subr.mxu0 0.0
      %468 = vmatpush2.msra.mxu0 0.0
      %469 = vmatprep.subr.mxu0 0.0
      %470 = vmatpush2.msra.mxu0 0.0
      %471 = vmatprep.subr.mxu0 0.0
      %472 = vmatpush2.msra.mxu0 0.0
      %473 = vmatprep.subr.mxu0 0.0
      %474 = vmatpush2.msra.mxu0 0.0
      %475 = vmatprep.subr.mxu0 0.0
      %476 = vmatpush2.msra.mxu0 0.0
      %477 = vmatprep.subr.mxu0 0.0
      %478 = vmatpush2.msra.mxu0 0.0
      %479 = vmatprep.subr.mxu0 0.0
      %480 = vmatpush2.msra.mxu0 0.0
      %481 = vmatprep.subr.mxu0 0.0
      %482 = vmatpush2.msra.mxu0 0.0
      %483 = vmatprep.subr.mxu0 0.0
      %484 = vmatpush2.msra.mxu0 0.0
      %485 = vmatprep.subr.mxu0 0.0
      %486 = vmatpush2.msra.mxu0 0.0
      %487 = vmatprep.subr.mxu0 0.0
      %488 = vmatpush2.msra.mxu0 0.0
      %489 = vmatprep.subr.mxu0 0.0
      %490 = vmatpush2.msra.mxu0 0.0
      %491 = vmatprep.subr.mxu0 0.0
      %492 = vmatpush2.msra.mxu0 0.0
      %493 = vmatprep.subr.mxu0 0.0
      %494 = vmatpush2.msra.mxu0 0.0
      %495 = vmatprep.subr.mxu0 0.0
      %496 = vmatpush2.msra.mxu0 0.0
      %497 = vmatprep.subr.mxu0 0.0
      %498 = vmatpush2.msra.mxu0 0.0
      %499 = vmatprep.mubr.f32.mxu0 0.0
      %500 = vmatmul.mubr.f32.gmra.mxu0 %v433
      %v501 = vpop.f32.mrf.mxu0
      %v502 = vadd.f32 0.0, %v501
      %v503 = vpop.f32.mrf.mxu0
      %504 = vdwg.mxu0
      %v505 = vld [vmem:[#allocation2] sm:$0xf]
      %v506 = vadd.f32 %v505, %v502
      %507 = vst.msk [vmem:[#allocation2] sm:$0xf] %vm427, %v506
      %v508 = vld [vmem:[%s3 + $0x10] sm:$0xff]
      %v509 = vld [vmem:[%s3 + $0x18] sm:$0xff]
      %510 = vmatprep.subr.mxu0 0.0
      %511 = vmatpush1.msra.mxu0 0.0
      %512 = vmatprep.subr.mxu0 0.0
      %513 = vmatpush1.msra.mxu0 0.0
      %514 = vmatprep.subr.mxu0 0.0
      %515 = vmatpush1.msra.mxu0 0.0
      %516 = vmatprep.subr.mxu0 0.0
      %517 = vmatpush1.msra.mxu0 0.0
      %518 = vmatprep.subr.mxu0 0.0
      %519 = vmatpush1.msra.mxu0 0.0
      %520 = vmatprep.subr.mxu0 0.0
      %521 = vmatpush1.msra.mxu0 0.0
      %522 = vmatprep.subr.mxu0 0.0
      %523 = vmatpush1.msra.mxu0 0.0
      %524 = vmatprep.subr.mxu0 0.0
      %525 = vmatpush1.msra.mxu0 0.0
      %526 = vmatprep.subr.mxu0 0.0
      %527 = vmatpush1.msra.mxu0 0.0
      %528 = vmatprep.subr.mxu0 0.0
      %529 = vmatpush1.msra.mxu0 0.0
      %530 = vmatprep.subr.mxu0 0.0
      %531 = vmatpush1.msra.mxu0 0.0
      %532 = vmatprep.subr.mxu0 0.0
      %533 = vmatpush1.msra.mxu0 0.0
      %534 = vmatprep.subr.mxu0 0.0
      %535 = vmatpush1.msra.mxu0 0.0
      %536 = vmatprep.subr.mxu0 0.0
      %537 = vmatpush1.msra.mxu0 0.0
      %538 = vmatprep.subr.mxu0 0.0
      %539 = vmatpush1.msra.mxu0 %v509
      %540 = vmatprep.subr.mxu0 0.0
      %541 = vmatpush1.msra.mxu0 %v508
      %542 = vmatprep.subr.mxu0 0.0
      %543 = vmatpush2.msra.mxu0 0.0
      %544 = vmatprep.subr.mxu0 0.0
      %545 = vmatpush2.msra.mxu0 0.0
      %546 = vmatprep.subr.mxu0 0.0
      %547 = vmatpush2.msra.mxu0 0.0
      %548 = vmatprep.subr.mxu0 0.0
      %549 = vmatpush2.msra.mxu0 0.0
      %550 = vmatprep.subr.mxu0 0.0
      %551 = vmatpush2.msra.mxu0 0.0
      %552 = vmatprep.subr.mxu0 0.0
      %553 = vmatpush2.msra.mxu0 0.0
      %554 = vmatprep.subr.mxu0 0.0
      %555 = vmatpush2.msra.mxu0 0.0
      %556 = vmatprep.subr.mxu0 0.0
      %557 = vmatpush2.msra.mxu0 0.0
      %558 = vmatprep.subr.mxu0 0.0
      %559 = vmatpush2.msra.mxu0 0.0
      %560 = vmatprep.subr.mxu0 0.0
      %561 = vmatpush2.msra.mxu0 0.0
      %562 = vmatprep.subr.mxu0 0.0
      %563 = vmatpush2.msra.mxu0 0.0
      %564 = vmatprep.subr.mxu0 0.0
      %565 = vmatpush2.msra.mxu0 0.0
      %566 = vmatprep.subr.mxu0 0.0
      %567 = vmatpush2.msra.mxu0 0.0
      %568 = vmatprep.subr.mxu0 0.0
      %569 = vmatpush2.msra.mxu0 0.0
      %570 = vmatprep.subr.mxu0 0.0
      %571 = vmatpush2.msra.mxu0 0.0
      %572 = vmatprep.subr.mxu0 0.0
      %573 = vmatpush2.msra.mxu0 0.0
      %574 = vmatprep.mubr.f32.mxu0 0.0
      %575 = vmatmul.mubr.f32.gmra.mxu0 %v433
      %v576 = vpop.f32.mrf.mxu0
      %v577 = vadd.f32 0.0, %v576
      %v578 = vpop.f32.mrf.mxu0
      %579 = vdwg.mxu0
      %v580 = vld [vmem:[#allocation2 + $0x1] sm:$0x7]
      %v581 = vadd.f32 %v580, %v577
      %vm582 = vcmask 124928
      %583 = vst.msk [vmem:[#allocation2 + $0x1] sm:$0x7] %vm582, %v581
      %v584 = vld [vmem:[%s3 + $0x20] sm:$0xff]
      %v585 = vld [vmem:[%s3 + $0x28] sm:$0xff]
      %586 = vmatprep.subr.mxu0 0.0
      %587 = vmatpush1.msra.mxu0 0.0
      %588 = vmatprep.subr.mxu0 0.0
      %589 = vmatpush1.msra.mxu0 0.0
      %590 = vmatprep.subr.mxu0 0.0
      %591 = vmatpush1.msra.mxu0 0.0
      %592 = vmatprep.subr.mxu0 0.0
      %593 = vmatpush1.msra.mxu0 0.0
      %594 = vmatprep.subr.mxu0 0.0
      %595 = vmatpush1.msra.mxu0 0.0
      %596 = vmatprep.subr.mxu0 0.0
      %597 = vmatpush1.msra.mxu0 0.0
      %598 = vmatprep.subr.mxu0 0.0
      %599 = vmatpush1.msra.mxu0 0.0
      %600 = vmatprep.subr.mxu0 0.0
      %601 = vmatpush1.msra.mxu0 0.0
      %602 = vmatprep.subr.mxu0 0.0
      %603 = vmatpush1.msra.mxu0 0.0
      %604 = vmatprep.subr.mxu0 0.0
      %605 = vmatpush1.msra.mxu0 0.0
      %606 = vmatprep.subr.mxu0 0.0
      %607 = vmatpush1.msra.mxu0 0.0
      %608 = vmatprep.subr.mxu0 0.0
      %609 = vmatpush1.msra.mxu0 0.0
      %610 = vmatprep.subr.mxu0 0.0
      %611 = vmatpush1.msra.mxu0 0.0
      %612 = vmatprep.subr.mxu0 0.0
      %613 = vmatpush1.msra.mxu0 0.0
      %614 = vmatprep.subr.mxu0 0.0
      %615 = vmatpush1.msra.mxu0 %v585
      %616 = vmatprep.subr.mxu0 0.0
      %617 = vmatpush1.msra.mxu0 %v584
      %618 = vmatprep.subr.mxu0 0.0
      %619 = vmatpush2.msra.mxu0 0.0
      %620 = vmatprep.subr.mxu0 0.0
      %621 = vmatpush2.msra.mxu0 0.0
      %622 = vmatprep.subr.mxu0 0.0
      %623 = vmatpush2.msra.mxu0 0.0
      %624 = vmatprep.subr.mxu0 0.0
      %625 = vmatpush2.msra.mxu0 0.0
      %626 = vmatprep.subr.mxu0 0.0
      %627 = vmatpush2.msra.mxu0 0.0
      %628 = vmatprep.subr.mxu0 0.0
      %629 = vmatpush2.msra.mxu0 0.0
      %630 = vmatprep.subr.mxu0 0.0
      %631 = vmatpush2.msra.mxu0 0.0
      %632 = vmatprep.subr.mxu0 0.0
      %633 = vmatpush2.msra.mxu0 0.0
      %634 = vmatprep.subr.mxu0 0.0
      %635 = vmatpush2.msra.mxu0 0.0
      %636 = vmatprep.subr.mxu0 0.0
      %637 = vmatpush2.msra.mxu0 0.0
      %638 = vmatprep.subr.mxu0 0.0
      %639 = vmatpush2.msra.mxu0 0.0
      %640 = vmatprep.subr.mxu0 0.0
      %641 = vmatpush2.msra.mxu0 0.0
      %642 = vmatprep.subr.mxu0 0.0
      %643 = vmatpush2.msra.mxu0 0.0
      %644 = vmatprep.subr.mxu0 0.0
      %645 = vmatpush2.msra.mxu0 0.0
      %646 = vmatprep.subr.mxu0 0.0
      %647 = vmatpush2.msra.mxu0 0.0
      %648 = vmatprep.subr.mxu0 0.0
      %649 = vmatpush2.msra.mxu0 0.0
      %650 = vmatprep.mubr.f32.mxu0 0.0
      %651 = vmatmul.mubr.f32.gmra.mxu0 %v433
      %v652 = vpop.f32.mrf.mxu0
      %v653 = vadd.f32 0.0, %v652
      %v654 = vpop.f32.mrf.mxu0
      %655 = vdwg.mxu0
      %v656 = vld [vmem:[#allocation2 + $0x2] sm:$0x3]
      %v657 = vadd.f32 %v656, %v653
      %vm658 = vcmask 123904
      %659 = vst.msk [vmem:[#allocation2 + $0x2] sm:$0x3] %vm658, %v657
      %v660 = vld [vmem:[%s3 + $0x30] sm:$0xff]
      %v661 = vld [vmem:[%s3 + $0x38] sm:$0xff]
      %662 = vmatprep.subr.mxu0 0.0
      %663 = vmatpush1.msra.mxu0 0.0
      %664 = vmatprep.subr.mxu0 0.0
      %665 = vmatpush1.msra.mxu0 0.0
      %666 = vmatprep.subr.mxu0 0.0
      %667 = vmatpush1.msra.mxu0 0.0
      %668 = vmatprep.subr.mxu0 0.0
      %669 = vmatpush1.msra.mxu0 0.0
      %670 = vmatprep.subr.mxu0 0.0
      %671 = vmatpush1.msra.mxu0 0.0
      %672 = vmatprep.subr.mxu0 0.0
      %673 = vmatpush1.msra.mxu0 0.0
      %674 = vmatprep.subr.mxu0 0.0
      %675 = vmatpush1.msra.mxu0 0.0
      %676 = vmatprep.subr.mxu0 0.0
      %677 = vmatpush1.msra.mxu0 0.0
      %678 = vmatprep.subr.mxu0 0.0
      %679 = vmatpush1.msra.mxu0 0.0
      %680 = vmatprep.subr.mxu0 0.0
      %681 = vmatpush1.msra.mxu0 0.0
      %682 = vmatprep.subr.mxu0 0.0
      %683 = vmatpush1.msra.mxu0 0.0
      %684 = vmatprep.subr.mxu0 0.0
      %685 = vmatpush1.msra.mxu0 0.0
      %686 = vmatprep.subr.mxu0 0.0
      %687 = vmatpush1.msra.mxu0 0.0
      %688 = vmatprep.subr.mxu0 0.0
      %689 = vmatpush1.msra.mxu0 0.0
      %690 = vmatprep.subr.mxu0 0.0
      %691 = vmatpush1.msra.mxu0 %v661
      %692 = vmatprep.subr.mxu0 0.0
      %693 = vmatpush1.msra.mxu0 %v660
      %694 = vmatprep.subr.mxu0 0.0
      %695 = vmatpush2.msra.mxu0 0.0
      %696 = vmatprep.subr.mxu0 0.0
      %697 = vmatpush2.msra.mxu0 0.0
      %698 = vmatprep.subr.mxu0 0.0
      %699 = vmatpush2.msra.mxu0 0.0
      %700 = vmatprep.subr.mxu0 0.0
      %701 = vmatpush2.msra.mxu0 0.0
      %702 = vmatprep.subr.mxu0 0.0
      %703 = vmatpush2.msra.mxu0 0.0
      %704 = vmatprep.subr.mxu0 0.0
      %705 = vmatpush2.msra.mxu0 0.0
      %706 = vmatprep.subr.mxu0 0.0
      %707 = vmatpush2.msra.mxu0 0.0
      %708 = vmatprep.subr.mxu0 0.0
      %709 = vmatpush2.msra.mxu0 0.0
      %710 = vmatprep.subr.mxu0 0.0
      %711 = vmatpush2.msra.mxu0 0.0
      %712 = vmatprep.subr.mxu0 0.0
      %713 = vmatpush2.msra.mxu0 0.0
      %714 = vmatprep.subr.mxu0 0.0
      %715 = vmatpush2.msra.mxu0 0.0
      %716 = vmatprep.subr.mxu0 0.0
      %717 = vmatpush2.msra.mxu0 0.0
      %718 = vmatprep.subr.mxu0 0.0
      %719 = vmatpush2.msra.mxu0 0.0
      %720 = vmatprep.subr.mxu0 0.0
      %721 = vmatpush2.msra.mxu0 0.0
      %722 = vmatprep.subr.mxu0 0.0
      %723 = vmatpush2.msra.mxu0 0.0
      %724 = vmatprep.subr.mxu0 0.0
      %725 = vmatpush2.msra.mxu0 0.0
      %726 = vmatprep.mubr.f32.mxu0 0.0
      %727 = vmatmul.mubr.f32.gmra.mxu0 %v433
      %v728 = vpop.f32.mrf.mxu0
      %v729 = vadd.f32 0.0, %v728
      %v730 = vpop.f32.mrf.mxu0
      %731 = vdwg.mxu0
      %v732 = vld [vmem:[#allocation2 + $0x3] sm:$0x1]
      %v733 = vadd.f32 %v732, %v729
      %vm734 = vcmask 122880
      %735 = vst.msk [vmem:[#allocation2 + $0x3] sm:$0x1] %vm734, %v733
      %v736 = vld [vmem:[#allocation2] sm:$0xf]
      %v737 = vtanh.pop %v736
      %v738 = vadd.f32 %v737, %v418
      %v739 = vsel %vm427, %v738, 0.0
      %740 = vadd.xlane.f32.xlu0 %v739
      %v741 = vpop.xlane.xlu0 %740
      %v742 = vrcp.pop 16.0
      %v743 = vmul.f32 %v741, %v742
      %v744 = vsub.f32 %v738, %v743
      %v745 = vmul.f32 %v744, %v744
      %v746 = vsel %vm427, %v745, 0.0
      %747 = vadd.xlane.f32.xlu0 %v746
      %v748 = vpop.xlane.xlu0 %747
      %v749 = vmul.f32 %v748, %v742
      %v750 = vadd.f32 %v749, 1e-05
      %v751 = vrsqrt.pop %v750
      %v752 = vmul.f32 %v744, %v751
      %v753 = vld [vmem:[%s5] sm:$0x1]
      %v755 = vlaneseq
      %v756 = vshrl.u32 %v755, 7
      %v757 = vsub.s32 0, %v756
      %v758 = vrot.slane %v753, %v757
      %v760 = vmul.f32 %v752, %v758
      %v761 = vld [vmem:[%s6] sm:$0x1]
      %v763 = vlaneseq
      %v764 = vshrl.u32 %v763, 7
      %v765 = vsub.s32 0, %v764
      %v766 = vrot.slane %v761, %v765
      %v768 = vadd.f32 %v760, %v766
      %v769 = vld [vmem:[%s7] sm:$0xff]
      %v770 = vld [vmem:[%s7 + $0x8] sm:$0xff]
      %v771 = vld [vmem:[%s8] sm:$0x1]
      %v773 = vlaneseq
      %v774 = vshrl.u32 %v773, 7
      %v775 = vsub.s32 0, %v774
      %v776 = vrot.slane %v771, %v775
      %v779 = vsel %vm431, %v768, 0
      %781 = vmatprep.subr.mxu0 0.0
      %782 = vmatpush1.msra.mxu0 0.0
      %783 = vmatprep.subr.mxu0 0.0
      %784 = vmatpush1.msra.mxu0 0.0
      %785 = vmatprep.subr.mxu0 0.0
      %786 = vmatpush1.msra.mxu0 0.0
      %787 = vmatprep.subr.mxu0 0.0
      %788 = vmatpush1.msra.mxu0 0.0
      %789 = vmatprep.subr.mxu0 0.0
      %790 = vmatpush1.msra.mxu0 0.0
      %791 = vmatprep.subr.mxu0 0.0
      %792 = vmatpush1.msra.mxu0 0.0
      %793 = vmatprep.subr.mxu0 0.0
      %794 = vmatpush1.msra.mxu0 0.0
      %795 = vmatprep.subr.mxu0 0.0
      %796 = vmatpush1.msra.mxu0 0.0
      %797 = vmatprep.subr.mxu0 0.0
      %798 = vmatpush1.msra.mxu0 0.0
      %799 = vmatprep.subr.mxu0 0.0
      %800 = vmatpush1.msra.mxu0 0.0
      %801 = vmatprep.subr.mxu0 0.0
      %802 = vmatpush1.msra.mxu0 0.0
      %803 = vmatprep.subr.mxu0 0.0
      %804 = vmatpush1.msra.mxu0 0.0
      %805 = vmatprep.subr.mxu0 0.0
      %806 = vmatpush1.msra.mxu0 0.0
      %807 = vmatprep.subr.mxu0 0.0
      %808 = vmatpush1.msra.mxu0 0.0
      %809 = vmatprep.subr.mxu0 0.0
      %810 = vmatpush1.msra.mxu0 %v770
      %811 = vmatprep.subr.mxu0 0.0
      %812 = vmatpush1.msra.mxu0 %v769
      %813 = vmatprep.subr.mxu0 0.0
      %814 = vmatpush2.msra.mxu0 0.0
      %815 = vmatprep.subr.mxu0 0.0
      %816 = vmatpush2.msra.mxu0 0.0
      %817 = vmatprep.subr.mxu0 0.0
      %818 = vmatpush2.msra.mxu0 0.0
      %819 = vmatprep.subr.mxu0 0.0
      %820 = vmatpush2.msra.mxu0 0.0
      %821 = vmatprep.subr.mxu0 0.0
      %822 = vmatpush2.msra.mxu0 0.0
      %823 = vmatprep.subr.mxu0 0.0
      %824 = vmatpush2.msra.mxu0 0.0
      %825 = vmatprep.subr.mxu0 0.0
      %826 = vmatpush2.msra.mxu0 0.0
      %827 = vmatprep.subr.mxu0 0.0
      %828 = vmatpush2.msra.mxu0 0.0
      %829 = vmatprep.subr.mxu0 0.0
      %830 = vmatpush2.msra.mxu0 0.0
      %831 = vmatprep.subr.mxu0 0.0
      %832 = vmatpush2.msra.mxu0 0.0
      %833 = vmatprep.subr.mxu0 0.0
      %834 = vmatpush2.msra.mxu0 0.0
      %835 = vmatprep.subr.mxu0 0.0
      %836 = vmatpush2.msra.mxu0 0.0
      %837 = vmatprep.subr.mxu0 0.0
      %838 = vmatpush2.msra.mxu0 0.0
      %839 = vmatprep.subr.mxu0 0.0
      %840 = vmatpush2.msra.mxu0 0.0
      %841 = vmatprep.subr.mxu0 0.0
      %842 = vmatpush2.msra.mxu0 0.0
      %843 = vmatprep.subr.mxu0 0.0
      %844 = vmatpush2.msra.mxu0 0.0
      %845 = vmatprep.mubr.f32.mxu0 0.0
      %846 = vmatmul.mubr.f32.gmra.mxu0 %v779
      %v847 = vpop.f32.mrf.mxu0
      %v848 = vadd.f32 %v776, %v847
      %v849 = vpop.f32.mrf.mxu0
      %850 = vdwg.mxu0
      %v851 = vtanh.pop %v848
      %vm852 = vcmask 519168
      %853 = vst.msk [vmem:[%s327] sm:$0xf] %vm852, %v851
      %p854 = scmp.lt.s32.totalorder %s20, 1
      %s855 = scalar_select %p854, %s20, 1
      %s856 = smul.addr %s855, 4
      %s857 = scalar_lea.vmem %s9, %s856
      // Predicated region
      $region57: #{_lambda_.8} parent=55 // pred_check
        %p858 = pneg %p232
      $region58: #{_lambda_.8} parent=55 // pred_check_branch
        %860 = sbr.rel (%p858) target = $region60
      $region59: #{_lambda_.8} parent=55 // pred_region
        _
      $region60: #{_lambda_.8} parent=55 // pred_fallthru
        _
    $region56: #{_lambda_.8} parent=5 // pred_fallthru
      _
    %p861 = scmp.le.s32.totalorder 2, %s15
    // Predicated region
    $region61: #{_lambda_.8} parent=5 // pred_check
      %p862 = pneg %p861
    $region62: #{_lambda_.8} parent=5 // pred_check_branch
      %864 = sbr.rel (%p862) target = $region64
    $region63: #{_lambda_.8} parent=5 // pred_region
      %s865 = ssub.s32 %s15, 2
      // Predicated region
      $region65: #{_lambda_.8} parent=63 // pred_check
        %p866 = pneg %p238
      $region66: #{_lambda_.8} parent=63 // pred_check_branch
        %868 = sbr.rel (%p866) target = $region68
      $region67: #{_lambda_.8} parent=63 // pred_region
        %p869 = scmp.lt.s32.totalorder %s21, 1
        %s870 = scalar_select %p869, %s21, 1
        %s871 = smul.addr %s870, 4
        %s872 = scalar_lea.vmem %s9, %s871
      $region68: #{_lambda_.8} parent=63 // pred_fallthru
        _
    $region64: #{_lambda_.8} parent=5 // pred_fallthru
      _
  $region6: #{_lambda_.8} parent=0 // loop_footer
    %s19 = sadd.s32 1, %s15
  $region7: #{_lambda_.8} parent=0 // loop_footer_branch
    %14 = sbr.rel target = $region3
  $region8: #{_lambda_.8} parent=0 // loop_exit
    _

// kernel: _lambda_.6
$region0: #{_lambda_.6}
  #allocation0 [shape = 'u32[]', space=smem, size = 0x4, offset = 0x4, fixed_abs, tag = 'smem constant byte address 0x4 - core index']
  #allocation1 [shape = 'u32[144,128]{1,0:T(1,128)}', space=vmem, size = 0x12000, scoped, tag = 'internal scratch']
  #allocation2 [shape = 'f32[7,16]{1,0:T(8,128)}', space=vmem, size = 0x1000, scoped, tag = 'scratch operand']
  %s0 = inlined_call_operand.vmem [shape: f32[2,7,32], index: 0, kind: input, shape index: {}]
  %s1 = inlined_call_operand.vmem [shape: f32[32,16], index: 1, kind: input, shape index: {}]
  %s2 = inlined_call_operand.vmem [shape: f32[1,16], index: 2, kind: input, shape index: {}]
  %s3 = inlined_call_operand.vmem [shape: f32[112,16], index: 3, kind: input, shape index: {}]
  %s4 = inlined_call_operand.vmem [shape: f32[1,16], index: 4, kind: input, shape index: {}]
  %s5 = inlined_call_operand.vmem [shape: f32[1,16], index: 5, kind: input, shape index: {}]
  %s6 = inlined_call_operand.vmem [shape: f32[1,16], index: 6, kind: input, shape index: {}]
  %s7 = inlined_call_operand.vmem [shape: f32[16,32], index: 7, kind: input, shape index: {}]
  %s8 = inlined_call_operand.vmem [shape: f32[1,32], index: 8, kind: input, shape index: {}]
  %s9 = inlined_call_operand.vmem [shape: f32[2,7,32], index: 9, kind: output, shape index: {}]
  %s10 = sld [smem:[#allocation0]]
  $region69: #{_lambda_.6} parent=0
    _
  %s12 = ssub.s32 1, %s10
  %s13 = scalar_select 0, %s12, %s10
  loop: start=0, step=1, limit=4
  $region2: #{_lambda_.6} parent=0 // loop_pre_header
    _
  $region3: #{_lambda_.6} parent=0 // loop_header
    %s15 = sphi 0, %s19
    %p16 = scmp.ge.s32.totalorder %s15, 4
    %s25 = sphi 0, %s27
    %s28 = sphi 0, %s25
    %s29 = sphi 0, %s28
    %s45 = sphi 0, %s29
    %s49 = sphi 0, %s49
    %s51 = sphi 0, %s49
    %s52 = sphi 0, %s51
    %s66 = sphi 0, %s52
    %s70 = sphi 0, %s70
    %s72 = sphi 0, %s70
    %s73 = sphi 0, %s72
    %s87 = sphi 0, %s73
    %s91 = sphi 0, %s91
    %s93 = sphi 0, %s91
    %s94 = sphi 0, %s93
    %s108 = sphi 0, %s94
    %s112 = sphi 0, %s112
    %s114 = sphi 0, %s112
    %s115 = sphi 0, %s114
    %s129 = sphi 0, %s115
    %s133 = sphi 0, %s133
    %s135 = sphi 0, %s133
    %s136 = sphi 0, %s135
    %s150 = sphi 0, %s136
    %s154 = sphi 0, %s154
    %s156 = sphi 0, %s154
    %s157 = sphi 0, %s156
    %s171 = sphi 0, %s157
    %s175 = sphi 0, %s175
    %s177 = sphi 0, %s175
    %s178 = sphi 0, %s177
    %s192 = sphi 0, %s178
    %s196 = sphi 0, %s196
    %s198 = sphi 0, %s196
    %s199 = sphi 0, %s198
    %s213 = sphi 0, %s199
    %s219 = sphi 0, %s221
    %s222 = sphi 0, %s219
    %s223 = sphi 0, %s222
    %s239 = sphi 0, %s223
  $region4: #{_lambda_.6} parent=0 // loop_header_branch
    %18 = sbr.rel (%p16) target = $region8
  $region5: #{_lambda_.6} parent=0 // loop_body
    %s20 = ssub.s32 %s15, 1
    %s21 = ssub.s32 %s15, 2
    %s22 = sadd.s32 %s15, 1
    %s23 = ssub.s32 %s15, %s22
    %p24 = scmp.eq.s32.totalorder %s23, 0
    %s26 = sadd.s32 %s25, 1
    %s27 = scalar_select %p24, %s25, %s26
    %p30 = pneg %p24
    %p31 = scmp.eq.s32.totalorder %s15, 1
    %p32 = por %p30, %p31
    %p33 = scmp.ne.s32.totalorder %s25, %s28
    %p34 = scmp.eq.s32.totalorder %s15, 0
    %p35 = por %p33, %p34
    %p36 = scmp.ne.s32.totalorder %s25, %s28
    %p37 = scmp.eq.s32.totalorder %s20, 1
    %p38 = por %p36, %p37
    %p39 = scmp.ne.s32.totalorder %s28, %s29
    %p40 = scmp.eq.s32.totalorder %s20, 0
    %p41 = por %p39, %p40
    %p42 = scmp.ne.s32.totalorder %s28, %s29
    %p43 = scmp.eq.s32.totalorder %s21, 1
    %p44 = por %p42, %p43
    %p46 = scmp.ne.s32.totalorder %s29, %s45
    %p47 = scmp.eq.s32.totalorder %s21, 0
    %p48 = por %p46, %p47
    %s50 = sadd.s32 %s49, 1
    %p53 = scmp.eq.s32.totalorder %s15, 1
    %p54 = scmp.ne.s32.totalorder %s49, %s51
    %p55 = scmp.eq.s32.totalorder %s15, 0
    %p56 = por %p54, %p55
    %p57 = scmp.ne.s32.totalorder %s49, %s51
    %p58 = scmp.eq.s32.totalorder %s20, 1
    %p59 = por %p57, %p58
    %p60 = scmp.ne.s32.totalorder %s51, %s52
    %p61 = scmp.eq.s32.totalorder %s20, 0
    %p62 = por %p60, %p61
    %p63 = scmp.ne.s32.totalorder %s51, %s52
    %p64 = scmp.eq.s32.totalorder %s21, 1
    %p65 = por %p63, %p64
    %p67 = scmp.ne.s32.totalorder %s52, %s66
    %p68 = scmp.eq.s32.totalorder %s21, 0
    %p69 = por %p67, %p68
    %s71 = sadd.s32 %s70, 1
    %p74 = scmp.eq.s32.totalorder %s15, 1
    %p75 = scmp.ne.s32.totalorder %s70, %s72
    %p76 = scmp.eq.s32.totalorder %s15, 0
    %p77 = por %p75, %p76
    %p78 = scmp.ne.s32.totalorder %s70, %s72
    %p79 = scmp.eq.s32.totalorder %s20, 1
    %p80 = por %p78, %p79
    %p81 = scmp.ne.s32.totalorder %s72, %s73
    %p82 = scmp.eq.s32.totalorder %s20, 0
    %p83 = por %p81, %p82
    %p84 = scmp.ne.s32.totalorder %s72, %s73
    %p85 = scmp.eq.s32.totalorder %s21, 1
    %p86 = por %p84, %p85
    %p88 = scmp.ne.s32.totalorder %s73, %s87
    %p89 = scmp.eq.s32.totalorder %s21, 0
    %p90 = por %p88, %p89
    %s92 = sadd.s32 %s91, 1
    %p95 = scmp.eq.s32.totalorder %s15, 1
    %p96 = scmp.ne.s32.totalorder %s91, %s93
    %p97 = scmp.eq.s32.totalorder %s15, 0
    %p98 = por %p96, %p97
    %p99 = scmp.ne.s32.totalorder %s91, %s93
    %p100 = scmp.eq.s32.totalorder %s20, 1
    %p101 = por %p99, %p100
    %p102 = scmp.ne.s32.totalorder %s93, %s94
    %p103 = scmp.eq.s32.totalorder %s20, 0
    %p104 = por %p102, %p103
    %p105 = scmp.ne.s32.totalorder %s93, %s94
    %p106 = scmp.eq.s32.totalorder %s21, 1
    %p107 = por %p105, %p106
    %p109 = scmp.ne.s32.totalorder %s94, %s108
    %p110 = scmp.eq.s32.totalorder %s21, 0
    %p111 = por %p109, %p110
    %s113 = sadd.s32 %s112, 1
    %p116 = scmp.eq.s32.totalorder %s15, 1
    %p117 = scmp.ne.s32.totalorder %s112, %s114
    %p118 = scmp.eq.s32.totalorder %s15, 0
    %p119 = por %p117, %p118
    %p120 = scmp.ne.s32.totalorder %s112, %s114
    %p121 = scmp.eq.s32.totalorder %s20, 1
    %p122 = por %p120, %p121
    %p123 = scmp.ne.s32.totalorder %s114, %s115
    %p124 = scmp.eq.s32.totalorder %s20, 0
    %p125 = por %p123, %p124
    %p126 = scmp.ne.s32.totalorder %s114, %s115
    %p127 = scmp.eq.s32.totalorder %s21, 1
    %p128 = por %p126, %p127
    %p130 = scmp.ne.s32.totalorder %s115, %s129
    %p131 = scmp.eq.s32.totalorder %s21, 0
    %p132 = por %p130, %p131
    %s134 = sadd.s32 %s133, 1
    %p137 = scmp.eq.s32.totalorder %s15, 1
    %p138 = scmp.ne.s32.totalorder %s133, %s135
    %p139 = scmp.eq.s32.totalorder %s15, 0
    %p140 = por %p138, %p139
    %p141 = scmp.ne.s32.totalorder %s133, %s135
    %p142 = scmp.eq.s32.totalorder %s20, 1
    %p143 = por %p141, %p142
    %p144 = scmp.ne.s32.totalorder %s135, %s136
    %p145 = scmp.eq.s32.totalorder %s20, 0
    %p146 = por %p144, %p145
    %p147 = scmp.ne.s32.totalorder %s135, %s136
    %p148 = scmp.eq.s32.totalorder %s21, 1
    %p149 = por %p147, %p148
    %p151 = scmp.ne.s32.totalorder %s136, %s150
    %p152 = scmp.eq.s32.totalorder %s21, 0
    %p153 = por %p151, %p152
    %s155 = sadd.s32 %s154, 1
    %p158 = scmp.eq.s32.totalorder %s15, 1
    %p159 = scmp.ne.s32.totalorder %s154, %s156
    %p160 = scmp.eq.s32.totalorder %s15, 0
    %p161 = por %p159, %p160
    %p162 = scmp.ne.s32.totalorder %s154, %s156
    %p163 = scmp.eq.s32.totalorder %s20, 1
    %p164 = por %p162, %p163
    %p165 = scmp.ne.s32.totalorder %s156, %s157
    %p166 = scmp.eq.s32.totalorder %s20, 0
    %p167 = por %p165, %p166
    %p168 = scmp.ne.s32.totalorder %s156, %s157
    %p169 = scmp.eq.s32.totalorder %s21, 1
    %p170 = por %p168, %p169
    %p172 = scmp.ne.s32.totalorder %s157, %s171
    %p173 = scmp.eq.s32.totalorder %s21, 0
    %p174 = por %p172, %p173
    %s176 = sadd.s32 %s175, 1
    %p179 = scmp.eq.s32.totalorder %s15, 1
    %p180 = scmp.ne.s32.totalorder %s175, %s177
    %p181 = scmp.eq.s32.totalorder %s15, 0
    %p182 = por %p180, %p181
    %p183 = scmp.ne.s32.totalorder %s175, %s177
    %p184 = scmp.eq.s32.totalorder %s20, 1
    %p185 = por %p183, %p184
    %p186 = scmp.ne.s32.totalorder %s177, %s178
    %p187 = scmp.eq.s32.totalorder %s20, 0
    %p188 = por %p186, %p187
    %p189 = scmp.ne.s32.totalorder %s177, %s178
    %p190 = scmp.eq.s32.totalorder %s21, 1
    %p191 = por %p189, %p190
    %p193 = scmp.ne.s32.totalorder %s178, %s192
    %p194 = scmp.eq.s32.totalorder %s21, 0
    %p195 = por %p193, %p194
    %s197 = sadd.s32 %s196, 1
    %p200 = scmp.eq.s32.totalorder %s15, 1
    %p201 = scmp.ne.s32.totalorder %s196, %s198
    %p202 = scmp.eq.s32.totalorder %s15, 0
    %p203 = por %p201, %p202
    %p204 = scmp.ne.s32.totalorder %s196, %s198
    %p205 = scmp.eq.s32.totalorder %s20, 1
    %p206 = por %p204, %p205
    %p207 = scmp.ne.s32.totalorder %s198, %s199
    %p208 = scmp.eq.s32.totalorder %s20, 0
    %p209 = por %p207, %p208
    %p210 = scmp.ne.s32.totalorder %s198, %s199
    %p211 = scmp.eq.s32.totalorder %s21, 1
    %p212 = por %p210, %p211
    %p214 = scmp.ne.s32.totalorder %s199, %s213
    %p215 = scmp.eq.s32.totalorder %s21, 0
    %p216 = por %p214, %p215
    %s217 = ssub.s32 %s15, %s22
    %p218 = scmp.eq.s32.totalorder %s217, 0
    %s220 = sadd.s32 %s219, 1
    %s221 = scalar_select %p218, %s219, %s220
    %p224 = pneg %p218
    %p225 = scmp.eq.s32.totalorder %s15, 1
    %p226 = por %p224, %p225
    %p227 = scmp.ne.s32.totalorder %s219, %s222
    %p228 = scmp.eq.s32.totalorder %s15, 0
    %p229 = por %p227, %p228
    %p230 = scmp.ne.s32.totalorder %s219, %s222
    %p231 = scmp.eq.s32.totalorder %s20, 1
    %p232 = por %p230, %p231
    %p233 = scmp.ne.s32.totalorder %s222, %s223
    %p234 = scmp.eq.s32.totalorder %s20, 0
    %p235 = por %p233, %p234
    %p236 = scmp.ne.s32.totalorder %s222, %s223
    %p237 = scmp.eq.s32.totalorder %s21, 1
    %p238 = por %p236, %p237
    %p240 = scmp.ne.s32.totalorder %s223, %s239
    %p241 = scmp.eq.s32.totalorder %s21, 0
    %p242 = por %p240, %p241
    %p243 = scmp.le.s32.totalorder 1, %s15
    %p244 = scmp.lt.s32.totalorder %s15, 3
    %p245 = pnand %p243, %p244
    %p246 = pneg %p245
    // Predicated region
    $region9: #{_lambda_.6} parent=5 // pred_check
      _
    $region10: #{_lambda_.6} parent=5 // pred_check_branch
      %248 = sbr.rel (%p245) target = $region12
    $region11: #{_lambda_.6} parent=5 // pred_region
      %s249 = ssub.s32 %s15, 1
      // Predicated region
      $region13: #{_lambda_.6} parent=11 // pred_check
        %p250 = pneg %p62
      $region14: #{_lambda_.6} parent=11 // pred_check_branch
        %252 = sbr.rel (%p250) target = $region16
      $region15: #{_lambda_.6} parent=11 // pred_region
        _
      $region16: #{_lambda_.6} parent=11 // pred_fallthru
        _
      // Predicated region
      $region17: #{_lambda_.6} parent=11 // pred_check
        %p253 = pneg %p83
      $region18: #{_lambda_.6} parent=11 // pred_check_branch
        %255 = sbr.rel (%p253) target = $region20
      $region19: #{_lambda_.6} parent=11 // pred_region
        _
      $region20: #{_lambda_.6} parent=11 // pred_fallthru
        _
      // Predicated region
      $region21: #{_lambda_.6} parent=11 // pred_check
        %p256 = pneg %p104
      $region22: #{_lambda_.6} parent=11 // pred_check_branch
        %258 = sbr.rel (%p256) target = $region24
      $region23: #{_lambda_.6} parent=11 // pred_region
        _
      $region24: #{_lambda_.6} parent=11 // pred_fallthru
        _
      // Predicated region
      $region25: #{_lambda_.6} parent=11 // pred_check
        %p259 = pneg %p125
      $region26: #{_lambda_.6} parent=11 // pred_check_branch
        %261 = sbr.rel (%p259) target = $region28
      $region27: #{_lambda_.6} parent=11 // pred_region
        _
      $region28: #{_lambda_.6} parent=11 // pred_fallthru
        _
      // Predicated region
      $region29: #{_lambda_.6} parent=11 // pred_check
        %p262 = pneg %p146
      $region30: #{_lambda_.6} parent=11 // pred_check_branch
        %264 = sbr.rel (%p262) target = $region32
      $region31: #{_lambda_.6} parent=11 // pred_region
        _
      $region32: #{_lambda_.6} parent=11 // pred_fallthru
        _
      // Predicated region
      $region33: #{_lambda_.6} parent=11 // pred_check
        %p265 = pneg %p167
      $region34: #{_lambda_.6} parent=11 // pred_check_branch
        %267 = sbr.rel (%p265) target = $region36
      $region35: #{_lambda_.6} parent=11 // pred_region
        _
      $region36: #{_lambda_.6} parent=11 // pred_fallthru
        _
      // Predicated region
      $region37: #{_lambda_.6} parent=11 // pred_check
        %p268 = pneg %p188
      $region38: #{_lambda_.6} parent=11 // pred_check_branch
        %270 = sbr.rel (%p268) target = $region40
      $region39: #{_lambda_.6} parent=11 // pred_region
        _
      $region40: #{_lambda_.6} parent=11 // pred_fallthru
        _
      // Predicated region
      $region41: #{_lambda_.6} parent=11 // pred_check
        %p271 = pneg %p209
      $region42: #{_lambda_.6} parent=11 // pred_check_branch
        %273 = sbr.rel (%p271) target = $region44
      $region43: #{_lambda_.6} parent=11 // pred_region
        _
      $region44: #{_lambda_.6} parent=11 // pred_fallthru
        _
    $region12: #{_lambda_.6} parent=5 // pred_fallthru
      _
    %p274 = scmp.lt.s32.totalorder %s15, 2
    // Predicated region
    $region45: #{_lambda_.6} parent=5 // pred_check
      %p275 = pneg %p274
    $region46: #{_lambda_.6} parent=5 // pred_check_branch
      %277 = sbr.rel (%p275) target = $region48
    $region47: #{_lambda_.6} parent=5 // pred_region
      // Predicated region
      $region49: #{_lambda_.6} parent=47 // pred_check
        %p278 = pneg %p35
      $region50: #{_lambda_.6} parent=47 // pred_check_branch
        %280 = sbr.rel (%p278) target = $region52
      $region51: #{_lambda_.6} parent=47 // pred_region
        %p281 = scmp.lt.s32.totalorder %s15, 1
        %s282 = scalar_select %p281, %s15, 1
        %s283 = smul.addr %s282, 8
        %s284 = scalar_lea.vmem %s0, %s283
      $region52: #{_lambda_.6} parent=47 // pred_fallthru
        _
    $region48: #{_lambda_.6} parent=5 // pred_fallthru
      _
    %p285 = scmp.le.s32.totalorder 1, %s15
    %p286 = scmp.lt.s32.totalorder %s15, 3
    %p287 = pnand %p285, %p286
    %p288 = pneg %p287
    // Predicated region
    $region53: #{_lambda_.6} parent=5 // pred_check
      _
    $region54: #{_lambda_.6} parent=5 // pred_check_branch
      %290 = sbr.rel (%p287) target = $region56
    $region55: #{_lambda_.6} parent=5 // pred_region
      %s291 = ssub.s32 %s15, 1
      %p292 = scmp.lt.s32.totalorder %s20, 1
      %s293 = scalar_select %p292, %s20, 1
      %s294 = smul.addr %s293, 8
      %s295 = scalar_lea.vmem %s0, %s294
      %p296 = pneg %p41
      %p297 = pneg %p38
      %p298 = pneg %p62
      %p299 = pneg %p59
      %p300 = pneg %p83
      %p301 = pneg %p80
      %p302 = pneg %p104
      %p303 = pneg %p101
      %p304 = pneg %p125
      %p305 = pneg %p122
      %p306 = pneg %p146
      %p307 = pneg %p143
      %p308 = pneg %p167
      %p309 = pneg %p164
      %p310 = pneg %p188
      %p311 = pneg %p185
      %p312 = pneg %p209
      %p313 = pneg %p206
      %p314 = pneg %p235
      %p315 = pneg %p232
      %p316 = scmp.lt.s32.totalorder %s20, 1
      %s317 = scalar_select %p316, %s20, 1
      %s318 = smul.addr %s317, 8
      %s319 = scalar_lea.vmem %s9, %s318
      %p320 = scmp.lt.s32.totalorder %s20, 1
      %s321 = scalar_select %p320, %s20, 1
      %s322 = smul.addr %s321, 8
      %s323 = scalar_lea.vmem %s0, %s322
      %p324 = scmp.lt.s32.totalorder %s20, 1
      %s325 = scalar_select %p324, %s20, 1
      %s326 = smul.addr %s325, 8
      %s327 = scalar_lea.vmem %s9, %s326
      %v328 = vld [vmem:[%s323] sm:$0x7f]
      %v329 = vld [vmem:[%s1] sm:$0xff]
      %v330 = vld [vmem:[%s1 + $0x8] sm:$0xff]
      %v331 = vld [vmem:[%s1 + $0x10] sm:$0xff]
      %v332 = vld [vmem:[%s1 + $0x18] sm:$0xff]
      %v333 = vld [vmem:[%s2] sm:$0x1]
      %v335 = vlaneseq
      %v336 = vshrl.u32 %v335, 7
      %v337 = vsub.s32 0, %v336
      %v338 = vrot.slane %v333, %v337
      %vm340 = vcmask 261120
      %v342 = vsel %vm340, %v328, 0
      %344 = vmatprep.subr.mxu0 0.0
      %345 = vmatpush1.msra.mxu0 0.0
      %346 = vmatprep.subr.mxu0 0.0
      %347 = vmatpush1.msra.mxu0 0.0
      %348 = vmatprep.subr.mxu0 0.0
      %349 = vmatpush1.msra.mxu0 0.0
      %350 = vmatprep.subr.mxu0 0.0
      %351 = vmatpush1.msra.mxu0 0.0
      %352 = vmatprep.subr.mxu0 0.0
      %353 = vmatpush1.msra.mxu0 0.0
      %354 = vmatprep.subr.mxu0 0.0
      %355 = vmatpush1.msra.mxu0 0.0
      %356 = vmatprep.subr.mxu0 0.0
      %357 = vmatpush1.msra.mxu0 0.0
      %358 = vmatprep.subr.mxu0 0.0
      %359 = vmatpush1.msra.mxu0 0.0
      %360 = vmatprep.subr.mxu0 0.0
      %361 = vmatpush1.msra.mxu0 0.0
      %362 = vmatprep.subr.mxu0 0.0
      %363 = vmatpush1.msra.mxu0 0.0
      %364 = vmatprep.subr.mxu0 0.0
      %365 = vmatpush1.msra.mxu0 0.0
      %366 = vmatprep.subr.mxu0 0.0
      %367 = vmatpush1.msra.mxu0 0.0
      %368 = vmatprep.subr.mxu0 0.0
      %369 = vmatpush1.msra.mxu0 %v332
      %370 = vmatprep.subr.mxu0 0.0
      %371 = vmatpush1.msra.mxu0 %v331
      %372 = vmatprep.subr.mxu0 0.0
      %373 = vmatpush1.msra.mxu0 %v330
      %374 = vmatprep.subr.mxu0 0.0
      %375 = vmatpush1.msra.mxu0 %v329
      %376 = vmatprep.subr.mxu0 0.0
      %377 = vmatpush2.msra.mxu0 0.0
      %378 = vmatprep.subr.mxu0 0.0
      %379 = vmatpush2.msra.mxu0 0.0
      %380 = vmatprep.subr.mxu0 0.0
      %381 = vmatpush2.msra.mxu0 0.0
      %382 = vmatprep.subr.mxu0 0.0
      %383 = vmatpush2.msra.mxu0 0.0
      %384 = vmatprep.subr.mxu0 0.0
      %385 = vmatpush2.msra.mxu0 0.0
      %386 = vmatprep.subr.mxu0 0.0
      %387 = vmatpush2.msra.mxu0 0.0
      %388 = vmatprep.subr.mxu0 0.0
      %389 = vmatpush2.msra.mxu0 0.0
      %390 = vmatprep.subr.mxu0 0.0
      %391 = vmatpush2.msra.mxu0 0.0
      %392 = vmatprep.subr.mxu0 0.0
      %393 = vmatpush2.msra.mxu0 0.0
      %394 = vmatprep.subr.mxu0 0.0
      %395 = vmatpush2.msra.mxu0 0.0
      %396 = vmatprep.subr.mxu0 0.0
      %397 = vmatpush2.msra.mxu0 0.0
      %398 = vmatprep.subr.mxu0 0.0
      %399 = vmatpush2.msra.mxu0 0.0
      %400 = vmatprep.subr.mxu0 0.0
      %401 = vmatpush2.msra.mxu0 0.0
      %402 = vmatprep.subr.mxu0 0.0
      %403 = vmatpush2.msra.mxu0 0.0
      %404 = vmatprep.subr.mxu0 0.0
      %405 = vmatpush2.msra.mxu0 0.0
      %406 = vmatprep.subr.mxu0 0.0
      %407 = vmatpush2.msra.mxu0 0.0
      %408 = vmatprep.mubr.f32.mxu0 0.0
      %409 = vmatmul.mubr.f32.gmra.mxu0 %v342
      %v410 = vpop.f32.mrf.mxu0
      %v411 = vadd.f32 %v338, %v410
      %v412 = vpop.f32.mrf.mxu0
      %413 = vdwg.mxu0
      %v414 = vtanh.pop %v411
      %v415 = vld [vmem:[%s4] sm:$0x1]
      %v417 = vlaneseq
      %v418 = vshrl.u32 %v417, 7
      %v419 = vsub.s32 0, %v418
      %v420 = vrot.slane %v415, %v419
      %v422 = vadd.f32 %v420, 0.0
      %vm423 = vcmask 129024
      %424 = vst.msk [vmem:[#allocation2] sm:$0x7f] %vm423, %v422
      %v425 = vld [vmem:[%s3] sm:$0xff]
      %v426 = vld [vmem:[%s3 + $0x8] sm:$0xff]
      %vm427 = vcmask 130048
      %v429 = vsel %vm427, %v414, 0
      %431 = vmatprep.subr.mxu0 0.0
      %432 = vmatpush1.msra.mxu0 0.0
      %433 = vmatprep.subr.mxu0 0.0
      %434 = vmatpush1.msra.mxu0 0.0
      %435 = vmatprep.subr.mxu0 0.0
      %436 = vmatpush1.msra.mxu0 0.0
      %437 = vmatprep.subr.mxu0 0.0
      %438 = vmatpush1.msra.mxu0 0.0
      %439 = vmatprep.subr.mxu0 0.0
      %440 = vmatpush1.msra.mxu0 0.0
      %441 = vmatprep.subr.mxu0 0.0
      %442 = vmatpush1.msra.mxu0 0.0
      %443 = vmatprep.subr.mxu0 0.0
      %444 = vmatpush1.msra.mxu0 0.0
      %445 = vmatprep.subr.mxu0 0.0
      %446 = vmatpush1.msra.mxu0 0.0
      %447 = vmatprep.subr.mxu0 0.0
      %448 = vmatpush1.msra.mxu0 0.0
      %449 = vmatprep.subr.mxu0 0.0
      %450 = vmatpush1.msra.mxu0 0.0
      %451 = vmatprep.subr.mxu0 0.0
      %452 = vmatpush1.msra.mxu0 0.0
      %453 = vmatprep.subr.mxu0 0.0
      %454 = vmatpush1.msra.mxu0 0.0
      %455 = vmatprep.subr.mxu0 0.0
      %456 = vmatpush1.msra.mxu0 0.0
      %457 = vmatprep.subr.mxu0 0.0
      %458 = vmatpush1.msra.mxu0 0.0
      %459 = vmatprep.subr.mxu0 0.0
      %460 = vmatpush1.msra.mxu0 %v426
      %461 = vmatprep.subr.mxu0 0.0
      %462 = vmatpush1.msra.mxu0 %v425
      %463 = vmatprep.subr.mxu0 0.0
      %464 = vmatpush2.msra.mxu0 0.0
      %465 = vmatprep.subr.mxu0 0.0
      %466 = vmatpush2.msra.mxu0 0.0
      %467 = vmatprep.subr.mxu0 0.0
      %468 = vmatpush2.msra.mxu0 0.0
      %469 = vmatprep.subr.mxu0 0.0
      %470 = vmatpush2.msra.mxu0 0.0
      %471 = vmatprep.subr.mxu0 0.0
      %472 = vmatpush2.msra.mxu0 0.0
      %473 = vmatprep.subr.mxu0 0.0
      %474 = vmatpush2.msra.mxu0 0.0
      %475 = vmatprep.subr.mxu0 0.0
      %476 = vmatpush2.msra.mxu0 0.0
      %477 = vmatprep.subr.mxu0 0.0
      %478 = vmatpush2.msra.mxu0 0.0
      %479 = vmatprep.subr.mxu0 0.0
      %480 = vmatpush2.msra.mxu0 0.0
      %481 = vmatprep.subr.mxu0 0.0
      %482 = vmatpush2.msra.mxu0 0.0
      %483 = vmatprep.subr.mxu0 0.0
      %484 = vmatpush2.msra.mxu0 0.0
      %485 = vmatprep.subr.mxu0 0.0
      %486 = vmatpush2.msra.mxu0 0.0
      %487 = vmatprep.subr.mxu0 0.0
      %488 = vmatpush2.msra.mxu0 0.0
      %489 = vmatprep.subr.mxu0 0.0
      %490 = vmatpush2.msra.mxu0 0.0
      %491 = vmatprep.subr.mxu0 0.0
      %492 = vmatpush2.msra.mxu0 0.0
      %493 = vmatprep.subr.mxu0 0.0
      %494 = vmatpush2.msra.mxu0 0.0
      %495 = vmatprep.mubr.f32.mxu0 0.0
      %496 = vmatmul.mubr.f32.gmra.mxu0 %v429
      %v497 = vpop.f32.mrf.mxu0
      %v498 = vadd.f32 0.0, %v497
      %v499 = vpop.f32.mrf.mxu0
      %500 = vdwg.mxu0
      %v501 = vld [vmem:[#allocation2] sm:$0x7f]
      %v502 = vadd.f32 %v501, %v498
      %503 = vst.msk [vmem:[#allocation2] sm:$0x7f] %vm423, %v502
      %v504 = vld [vmem:[%s3 + $0x10] sm:$0xff]
      %v505 = vld [vmem:[%s3 + $0x18] sm:$0xff]
      %506 = vmatprep.subr.mxu0 0.0
      %507 = vmatpush1.msra.mxu0 0.0
      %508 = vmatprep.subr.mxu0 0.0
      %509 = vmatpush1.msra.mxu0 0.0
      %510 = vmatprep.subr.mxu0 0.0
      %511 = vmatpush1.msra.mxu0 0.0
      %512 = vmatprep.subr.mxu0 0.0
      %513 = vmatpush1.msra.mxu0 0.0
      %514 = vmatprep.subr.mxu0 0.0
      %515 = vmatpush1.msra.mxu0 0.0
      %516 = vmatprep.subr.mxu0 0.0
      %517 = vmatpush1.msra.mxu0 0.0
      %518 = vmatprep.subr.mxu0 0.0
      %519 = vmatpush1.msra.mxu0 0.0
      %520 = vmatprep.subr.mxu0 0.0
      %521 = vmatpush1.msra.mxu0 0.0
      %522 = vmatprep.subr.mxu0 0.0
      %523 = vmatpush1.msra.mxu0 0.0
      %524 = vmatprep.subr.mxu0 0.0
      %525 = vmatpush1.msra.mxu0 0.0
      %526 = vmatprep.subr.mxu0 0.0
      %527 = vmatpush1.msra.mxu0 0.0
      %528 = vmatprep.subr.mxu0 0.0
      %529 = vmatpush1.msra.mxu0 0.0
      %530 = vmatprep.subr.mxu0 0.0
      %531 = vmatpush1.msra.mxu0 0.0
      %532 = vmatprep.subr.mxu0 0.0
      %533 = vmatpush1.msra.mxu0 0.0
      %534 = vmatprep.subr.mxu0 0.0
      %535 = vmatpush1.msra.mxu0 %v505
      %536 = vmatprep.subr.mxu0 0.0
      %537 = vmatpush1.msra.mxu0 %v504
      %538 = vmatprep.subr.mxu0 0.0
      %539 = vmatpush2.msra.mxu0 0.0
      %540 = vmatprep.subr.mxu0 0.0
      %541 = vmatpush2.msra.mxu0 0.0
      %542 = vmatprep.subr.mxu0 0.0
      %543 = vmatpush2.msra.mxu0 0.0
      %544 = vmatprep.subr.mxu0 0.0
      %545 = vmatpush2.msra.mxu0 0.0
      %546 = vmatprep.subr.mxu0 0.0
      %547 = vmatpush2.msra.mxu0 0.0
      %548 = vmatprep.subr.mxu0 0.0
      %549 = vmatpush2.msra.mxu0 0.0
      %550 = vmatprep.subr.mxu0 0.0
      %551 = vmatpush2.msra.mxu0 0.0
      %552 = vmatprep.subr.mxu0 0.0
      %553 = vmatpush2.msra.mxu0 0.0
      %554 = vmatprep.subr.mxu0 0.0
      %555 = vmatpush2.msra.mxu0 0.0
      %556 = vmatprep.subr.mxu0 0.0
      %557 = vmatpush2.msra.mxu0 0.0
      %558 = vmatprep.subr.mxu0 0.0
      %559 = vmatpush2.msra.mxu0 0.0
      %560 = vmatprep.subr.mxu0 0.0
      %561 = vmatpush2.msra.mxu0 0.0
      %562 = vmatprep.subr.mxu0 0.0
      %563 = vmatpush2.msra.mxu0 0.0
      %564 = vmatprep.subr.mxu0 0.0
      %565 = vmatpush2.msra.mxu0 0.0
      %566 = vmatprep.subr.mxu0 0.0
      %567 = vmatpush2.msra.mxu0 0.0
      %568 = vmatprep.subr.mxu0 0.0
      %569 = vmatpush2.msra.mxu0 0.0
      %570 = vmatprep.mubr.f32.mxu0 0.0
      %571 = vmatmul.mubr.f32.gmra.mxu0 %v429
      %v572 = vpop.f32.mrf.mxu0
      %v573 = vadd.f32 0.0, %v572
      %v574 = vpop.f32.mrf.mxu0
      %575 = vdwg.mxu0
      %v576 = vld [vmem:[#allocation2 + $0x1] sm:$0x3f]
      %v577 = vadd.f32 %v576, %v573
      %vm578 = vcmask 128000
      %579 = vst.msk [vmem:[#allocation2 + $0x1] sm:$0x3f] %vm578, %v577
      %v580 = vld [vmem:[%s3 + $0x20] sm:$0xff]
      %v581 = vld [vmem:[%s3 + $0x28] sm:$0xff]
      %582 = vmatprep.subr.mxu0 0.0
      %583 = vmatpush1.msra.mxu0 0.0
      %584 = vmatprep.subr.mxu0 0.0
      %585 = vmatpush1.msra.mxu0 0.0
      %586 = vmatprep.subr.mxu0 0.0
      %587 = vmatpush1.msra.mxu0 0.0
      %588 = vmatprep.subr.mxu0 0.0
      %589 = vmatpush1.msra.mxu0 0.0
      %590 = vmatprep.subr.mxu0 0.0
      %591 = vmatpush1.msra.mxu0 0.0
      %592 = vmatprep.subr.mxu0 0.0
      %593 = vmatpush1.msra.mxu0 0.0
      %594 = vmatprep.subr.mxu0 0.0
      %595 = vmatpush1.msra.mxu0 0.0
      %596 = vmatprep.subr.mxu0 0.0
      %597 = vmatpush1.msra.mxu0 0.0
      %598 = vmatprep.subr.mxu0 0.0
      %599 = vmatpush1.msra.mxu0 0.0
      %600 = vmatprep.subr.mxu0 0.0
      %601 = vmatpush1.msra.mxu0 0.0
      %602 = vmatprep.subr.mxu0 0.0
      %603 = vmatpush1.msra.mxu0 0.0
      %604 = vmatprep.subr.mxu0 0.0
      %605 = vmatpush1.msra.mxu0 0.0
      %606 = vmatprep.subr.mxu0 0.0
      %607 = vmatpush1.msra.mxu0 0.0
      %608 = vmatprep.subr.mxu0 0.0
      %609 = vmatpush1.msra.mxu0 0.0
      %610 = vmatprep.subr.mxu0 0.0
      %611 = vmatpush1.msra.mxu0 %v581
      %612 = vmatprep.subr.mxu0 0.0
      %613 = vmatpush1.msra.mxu0 %v580
      %614 = vmatprep.subr.mxu0 0.0
      %615 = vmatpush2.msra.mxu0 0.0
      %616 = vmatprep.subr.mxu0 0.0
      %617 = vmatpush2.msra.mxu0 0.0
      %618 = vmatprep.subr.mxu0 0.0
      %619 = vmatpush2.msra.mxu0 0.0
      %620 = vmatprep.subr.mxu0 0.0
      %621 = vmatpush2.msra.mxu0 0.0
      %622 = vmatprep.subr.mxu0 0.0
      %623 = vmatpush2.msra.mxu0 0.0
      %624 = vmatprep.subr.mxu0 0.0
      %625 = vmatpush2.msra.mxu0 0.0
      %626 = vmatprep.subr.mxu0 0.0
      %627 = vmatpush2.msra.mxu0 0.0
      %628 = vmatprep.subr.mxu0 0.0
      %629 = vmatpush2.msra.mxu0 0.0
      %630 = vmatprep.subr.mxu0 0.0
      %631 = vmatpush2.msra.mxu0 0.0
      %632 = vmatprep.subr.mxu0 0.0
      %633 = vmatpush2.msra.mxu0 0.0
      %634 = vmatprep.subr.mxu0 0.0
      %635 = vmatpush2.msra.mxu0 0.0
      %636 = vmatprep.subr.mxu0 0.0
      %637 = vmatpush2.msra.mxu0 0.0
      %638 = vmatprep.subr.mxu0 0.0
      %639 = vmatpush2.msra.mxu0 0.0
      %640 = vmatprep.subr.mxu0 0.0
      %641 = vmatpush2.msra.mxu0 0.0
      %642 = vmatprep.subr.mxu0 0.0
      %643 = vmatpush2.msra.mxu0 0.0
      %644 = vmatprep.subr.mxu0 0.0
      %645 = vmatpush2.msra.mxu0 0.0
      %646 = vmatprep.mubr.f32.mxu0 0.0
      %647 = vmatmul.mubr.f32.gmra.mxu0 %v429
      %v648 = vpop.f32.mrf.mxu0
      %v649 = vadd.f32 0.0, %v648
      %v650 = vpop.f32.mrf.mxu0
      %651 = vdwg.mxu0
      %v652 = vld [vmem:[#allocation2 + $0x2] sm:$0x1f]
      %v653 = vadd.f32 %v652, %v649
      %vm654 = vcmask 126976
      %655 = vst.msk [vmem:[#allocation2 + $0x2] sm:$0x1f] %vm654, %v653
      %v656 = vld [vmem:[%s3 + $0x30] sm:$0xff]
      %v657 = vld [vmem:[%s3 + $0x38] sm:$0xff]
      %658 = vmatprep.subr.mxu0 0.0
      %659 = vmatpush1.msra.mxu0 0.0
      %660 = vmatprep.subr.mxu0 0.0
      %661 = vmatpush1.msra.mxu0 0.0
      %662 = vmatprep.subr.mxu0 0.0
      %663 = vmatpush1.msra.mxu0 0.0
      %664 = vmatprep.subr.mxu0 0.0
      %665 = vmatpush1.msra.mxu0 0.0
      %666 = vmatprep.subr.mxu0 0.0
      %667 = vmatpush1.msra.mxu0 0.0
      %668 = vmatprep.subr.mxu0 0.0
      %669 = vmatpush1.msra.mxu0 0.0
      %670 = vmatprep.subr.mxu0 0.0
      %671 = vmatpush1.msra.mxu0 0.0
      %672 = vmatprep.subr.mxu0 0.0
      %673 = vmatpush1.msra.mxu0 0.0
      %674 = vmatprep.subr.mxu0 0.0
      %675 = vmatpush1.msra.mxu0 0.0
      %676 = vmatprep.subr.mxu0 0.0
      %677 = vmatpush1.msra.mxu0 0.0
      %678 = vmatprep.subr.mxu0 0.0
      %679 = vmatpush1.msra.mxu0 0.0
      %680 = vmatprep.subr.mxu0 0.0
      %681 = vmatpush1.msra.mxu0 0.0
      %682 = vmatprep.subr.mxu0 0.0
      %683 = vmatpush1.msra.mxu0 0.0
      %684 = vmatprep.subr.mxu0 0.0
      %685 = vmatpush1.msra.mxu0 0.0
      %686 = vmatprep.subr.mxu0 0.0
      %687 = vmatpush1.msra.mxu0 %v657
      %688 = vmatprep.subr.mxu0 0.0
      %689 = vmatpush1.msra.mxu0 %v656
      %690 = vmatprep.subr.mxu0 0.0
      %691 = vmatpush2.msra.mxu0 0.0
      %692 = vmatprep.subr.mxu0 0.0
      %693 = vmatpush2.msra.mxu0 0.0
      %694 = vmatprep.subr.mxu0 0.0
      %695 = vmatpush2.msra.mxu0 0.0
      %696 = vmatprep.subr.mxu0 0.0
      %697 = vmatpush2.msra.mxu0 0.0
      %698 = vmatprep.subr.mxu0 0.0
      %699 = vmatpush2.msra.mxu0 0.0
      %700 = vmatprep.subr.mxu0 0.0
      %701 = vmatpush2.msra.mxu0 0.0
      %702 = vmatprep.subr.mxu0 0.0
      %703 = vmatpush2.msra.mxu0 0.0
      %704 = vmatprep.subr.mxu0 0.0
      %705 = vmatpush2.msra.mxu0 0.0
      %706 = vmatprep.subr.mxu0 0.0
      %707 = vmatpush2.msra.mxu0 0.0
      %708 = vmatprep.subr.mxu0 0.0
      %709 = vmatpush2.msra.mxu0 0.0
      %710 = vmatprep.subr.mxu0 0.0
      %711 = vmatpush2.msra.mxu0 0.0
      %712 = vmatprep.subr.mxu0 0.0
      %713 = vmatpush2.msra.mxu0 0.0
      %714 = vmatprep.subr.mxu0 0.0
      %715 = vmatpush2.msra.mxu0 0.0
      %716 = vmatprep.subr.mxu0 0.0
      %717 = vmatpush2.msra.mxu0 0.0
      %718 = vmatprep.subr.mxu0 0.0
      %719 = vmatpush2.msra.mxu0 0.0
      %720 = vmatprep.subr.mxu0 0.0
      %721 = vmatpush2.msra.mxu0 0.0
      %722 = vmatprep.mubr.f32.mxu0 0.0
      %723 = vmatmul.mubr.f32.gmra.mxu0 %v429
      %v724 = vpop.f32.mrf.mxu0
      %v725 = vadd.f32 0.0, %v724
      %v726 = vpop.f32.mrf.mxu0
      %727 = vdwg.mxu0
      %v728 = vld [vmem:[#allocation2 + $0x3] sm:$0xf]
      %v729 = vadd.f32 %v728, %v725
      %vm730 = vcmask 125952
      %731 = vst.msk [vmem:[#allocation2 + $0x3] sm:$0xf] %vm730, %v729
      %v732 = vld [vmem:[%s3 + $0x40] sm:$0xff]
      %v733 = vld [vmem:[%s3 + $0x48] sm:$0xff]
      %734 = vmatprep.subr.mxu0 0.0
      %735 = vmatpush1.msra.mxu0 0.0
      %736 = vmatprep.subr.mxu0 0.0
      %737 = vmatpush1.msra.mxu0 0.0
      %738 = vmatprep.subr.mxu0 0.0
      %739 = vmatpush1.msra.mxu0 0.0
      %740 = vmatprep.subr.mxu0 0.0
      %741 = vmatpush1.msra.mxu0 0.0
      %742 = vmatprep.subr.mxu0 0.0
      %743 = vmatpush1.msra.mxu0 0.0
      %744 = vmatprep.subr.mxu0 0.0
      %745 = vmatpush1.msra.mxu0 0.0
      %746 = vmatprep.subr.mxu0 0.0
      %747 = vmatpush1.msra.mxu0 0.0
      %748 = vmatprep.subr.mxu0 0.0
      %749 = vmatpush1.msra.mxu0 0.0
      %750 = vmatprep.subr.mxu0 0.0
      %751 = vmatpush1.msra.mxu0 0.0
      %752 = vmatprep.subr.mxu0 0.0
      %753 = vmatpush1.msra.mxu0 0.0
      %754 = vmatprep.subr.mxu0 0.0
      %755 = vmatpush1.msra.mxu0 0.0
      %756 = vmatprep.subr.mxu0 0.0
      %757 = vmatpush1.msra.mxu0 0.0
      %758 = vmatprep.subr.mxu0 0.0
      %759 = vmatpush1.msra.mxu0 0.0
      %760 = vmatprep.subr.mxu0 0.0
      %761 = vmatpush1.msra.mxu0 0.0
      %762 = vmatprep.subr.mxu0 0.0
      %763 = vmatpush1.msra.mxu0 %v733
      %764 = vmatprep.subr.mxu0 0.0
      %765 = vmatpush1.msra.mxu0 %v732
      %766 = vmatprep.subr.mxu0 0.0
      %767 = vmatpush2.msra.mxu0 0.0
      %768 = vmatprep.subr.mxu0 0.0
      %769 = vmatpush2.msra.mxu0 0.0
      %770 = vmatprep.subr.mxu0 0.0
      %771 = vmatpush2.msra.mxu0 0.0
      %772 = vmatprep.subr.mxu0 0.0
      %773 = vmatpush2.msra.mxu0 0.0
      %774 = vmatprep.subr.mxu0 0.0
      %775 = vmatpush2.msra.mxu0 0.0
      %776 = vmatprep.subr.mxu0 0.0
      %777 = vmatpush2.msra.mxu0 0.0
      %778 = vmatprep.subr.mxu0 0.0
      %779 = vmatpush2.msra.mxu0 0.0
      %780 = vmatprep.subr.mxu0 0.0
      %781 = vmatpush2.msra.mxu0 0.0
      %782 = vmatprep.subr.mxu0 0.0
      %783 = vmatpush2.msra.mxu0 0.0
      %784 = vmatprep.subr.mxu0 0.0
      %785 = vmatpush2.msra.mxu0 0.0
      %786 = vmatprep.subr.mxu0 0.0
      %787 = vmatpush2.msra.mxu0 0.0
      %788 = vmatprep.subr.mxu0 0.0
      %789 = vmatpush2.msra.mxu0 0.0
      %790 = vmatprep.subr.mxu0 0.0
      %791 = vmatpush2.msra.mxu0 0.0
      %792 = vmatprep.subr.mxu0 0.0
      %793 = vmatpush2.msra.mxu0 0.0
      %794 = vmatprep.subr.mxu0 0.0
      %795 = vmatpush2.msra.mxu0 0.0
      %796 = vmatprep.subr.mxu0 0.0
      %797 = vmatpush2.msra.mxu0 0.0
      %798 = vmatprep.mubr.f32.mxu0 0.0
      %799 = vmatmul.mubr.f32.gmra.mxu0 %v429
      %v800 = vpop.f32.mrf.mxu0
      %v801 = vadd.f32 0.0, %v800
      %v802 = vpop.f32.mrf.mxu0
      %803 = vdwg.mxu0
      %v804 = vld [vmem:[#allocation2 + $0x4] sm:$0x7]
      %v805 = vadd.f32 %v804, %v801
      %vm806 = vcmask 124928
      %807 = vst.msk [vmem:[#allocation2 + $0x4] sm:$0x7] %vm806, %v805
      %v808 = vld [vmem:[%s3 + $0x50] sm:$0xff]
      %v809 = vld [vmem:[%s3 + $0x58] sm:$0xff]
      %810 = vmatprep.subr.mxu0 0.0
      %811 = vmatpush1.msra.mxu0 0.0
      %812 = vmatprep.subr.mxu0 0.0
      %813 = vmatpush1.msra.mxu0 0.0
      %814 = vmatprep.subr.mxu0 0.0
      %815 = vmatpush1.msra.mxu0 0.0
      %816 = vmatprep.subr.mxu0 0.0
      %817 = vmatpush1.msra.mxu0 0.0
      %818 = vmatprep.subr.mxu0 0.0
      %819 = vmatpush1.msra.mxu0 0.0
      %820 = vmatprep.subr.mxu0 0.0
      %821 = vmatpush1.msra.mxu0 0.0
      %822 = vmatprep.subr.mxu0 0.0
      %823 = vmatpush1.msra.mxu0 0.0
      %824 = vmatprep.subr.mxu0 0.0
      %825 = vmatpush1.msra.mxu0 0.0
      %826 = vmatprep.subr.mxu0 0.0
      %827 = vmatpush1.msra.mxu0 0.0
      %828 = vmatprep.subr.mxu0 0.0
      %829 = vmatpush1.msra.mxu0 0.0
      %830 = vmatprep.subr.mxu0 0.0
      %831 = vmatpush1.msra.mxu0 0.0
      %832 = vmatprep.subr.mxu0 0.0
      %833 = vmatpush1.msra.mxu0 0.0
      %834 = vmatprep.subr.mxu0 0.0
      %835 = vmatpush1.msra.mxu0 0.0
      %836 = vmatprep.subr.mxu0 0.0
      %837 = vmatpush1.msra.mxu0 0.0
      %838 = vmatprep.subr.mxu0 0.0
      %839 = vmatpush1.msra.mxu0 %v809
      %840 = vmatprep.subr.mxu0 0.0
      %841 = vmatpush1.msra.mxu0 %v808
      %842 = vmatprep.subr.mxu0 0.0
      %843 = vmatpush2.msra.mxu0 0.0
      %844 = vmatprep.subr.mxu0 0.0
      %845 = vmatpush2.msra.mxu0 0.0
      %846 = vmatprep.subr.mxu0 0.0
      %847 = vmatpush2.msra.mxu0 0.0
      %848 = vmatprep.subr.mxu0 0.0
      %849 = vmatpush2.msra.mxu0 0.0
      %850 = vmatprep.subr.mxu0 0.0
      %851 = vmatpush2.msra.mxu0 0.0
      %852 = vmatprep.subr.mxu0 0.0
      %853 = vmatpush2.msra.mxu0 0.0
      %854 = vmatprep.subr.mxu0 0.0
      %855 = vmatpush2.msra.mxu0 0.0
      %856 = vmatprep.subr.mxu0 0.0
      %857 = vmatpush2.msra.mxu0 0.0
      %858 = vmatprep.subr.mxu0 0.0
      %859 = vmatpush2.msra.mxu0 0.0
      %860 = vmatprep.subr.mxu0 0.0
      %861 = vmatpush2.msra.mxu0 0.0
      %862 = vmatprep.subr.mxu0 0.0
      %863 = vmatpush2.msra.mxu0 0.0
      %864 = vmatprep.subr.mxu0 0.0
      %865 = vmatpush2.msra.mxu0 0.0
      %866 = vmatprep.subr.mxu0 0.0
      %867 = vmatpush2.msra.mxu0 0.0
      %868 = vmatprep.subr.mxu0 0.0
      %869 = vmatpush2.msra.mxu0 0.0
      %870 = vmatprep.subr.mxu0 0.0
      %871 = vmatpush2.msra.mxu0 0.0
      %872 = vmatprep.subr.mxu0 0.0
      %873 = vmatpush2.msra.mxu0 0.0
      %874 = vmatprep.mubr.f32.mxu0 0.0
      %875 = vmatmul.mubr.f32.gmra.mxu0 %v429
      %v876 = vpop.f32.mrf.mxu0
      %v877 = vadd.f32 0.0, %v876
      %v878 = vpop.f32.mrf.mxu0
      %879 = vdwg.mxu0
      %v880 = vld [vmem:[#allocation2 + $0x5] sm:$0x3]
      %v881 = vadd.f32 %v880, %v877
      %vm882 = vcmask 123904
      %883 = vst.msk [vmem:[#allocation2 + $0x5] sm:$0x3] %vm882, %v881
      %v884 = vld [vmem:[%s3 + $0x60] sm:$0xff]
      %v885 = vld [vmem:[%s3 + $0x68] sm:$0xff]
      %886 = vmatprep.subr.mxu0 0.0
      %887 = vmatpush1.msra.mxu0 0.0
      %888 = vmatprep.subr.mxu0 0.0
      %889 = vmatpush1.msra.mxu0 0.0
      %890 = vmatprep.subr.mxu0 0.0
      %891 = vmatpush1.msra.mxu0 0.0
      %892 = vmatprep.subr.mxu0 0.0
      %893 = vmatpush1.msra.mxu0 0.0
      %894 = vmatprep.subr.mxu0 0.0
      %895 = vmatpush1.msra.mxu0 0.0
      %896 = vmatprep.subr.mxu0 0.0
      %897 = vmatpush1.msra.mxu0 0.0
      %898 = vmatprep.subr.mxu0 0.0
      %899 = vmatpush1.msra.mxu0 0.0
      %900 = vmatprep.subr.mxu0 0.0
      %901 = vmatpush1.msra.mxu0 0.0
      %902 = vmatprep.subr.mxu0 0.0
      %903 = vmatpush1.msra.mxu0 0.0
      %904 = vmatprep.subr.mxu0 0.0
      %905 = vmatpush1.msra.mxu0 0.0
      %906 = vmatprep.subr.mxu0 0.0
      %907 = vmatpush1.msra.mxu0 0.0
      %908 = vmatprep.subr.mxu0 0.0
      %909 = vmatpush1.msra.mxu0 0.0
      %910 = vmatprep.subr.mxu0 0.0
      %911 = vmatpush1.msra.mxu0 0.0
      %912 = vmatprep.subr.mxu0 0.0
      %913 = vmatpush1.msra.mxu0 0.0
      %914 = vmatprep.subr.mxu0 0.0
      %915 = vmatpush1.msra.mxu0 %v885
      %916 = vmatprep.subr.mxu0 0.0
      %917 = vmatpush1.msra.mxu0 %v884
      %918 = vmatprep.subr.mxu0 0.0
      %919 = vmatpush2.msra.mxu0 0.0
      %920 = vmatprep.subr.mxu0 0.0
      %921 = vmatpush2.msra.mxu0 0.0
      %922 = vmatprep.subr.mxu0 0.0
      %923 = vmatpush2.msra.mxu0 0.0
      %924 = vmatprep.subr.mxu0 0.0
      %925 = vmatpush2.msra.mxu0 0.0
      %926 = vmatprep.subr.mxu0 0.0
      %927 = vmatpush2.msra.mxu0 0.0
      %928 = vmatprep.subr.mxu0 0.0
      %929 = vmatpush2.msra.mxu0 0.0
      %930 = vmatprep.subr.mxu0 0.0
      %931 = vmatpush2.msra.mxu0 0.0
      %932 = vmatprep.subr.mxu0 0.0
      %933 = vmatpush2.msra.mxu0 0.0
      %934 = vmatprep.subr.mxu0 0.0
      %935 = vmatpush2.msra.mxu0 0.0
      %936 = vmatprep.subr.mxu0 0.0
      %937 = vmatpush2.msra.mxu0 0.0
      %938 = vmatprep.subr.mxu0 0.0
      %939 = vmatpush2.msra.mxu0 0.0
      %940 = vmatprep.subr.mxu0 0.0
      %941 = vmatpush2.msra.mxu0 0.0
      %942 = vmatprep.subr.mxu0 0.0
      %943 = vmatpush2.msra.mxu0 0.0
      %944 = vmatprep.subr.mxu0 0.0
      %945 = vmatpush2.msra.mxu0 0.0
      %946 = vmatprep.subr.mxu0 0.0
      %947 = vmatpush2.msra.mxu0 0.0
      %948 = vmatprep.subr.mxu0 0.0
      %949 = vmatpush2.msra.mxu0 0.0
      %950 = vmatprep.mubr.f32.mxu0 0.0
      %951 = vmatmul.mubr.f32.gmra.mxu0 %v429
      %v952 = vpop.f32.mrf.mxu0
      %v953 = vadd.f32 0.0, %v952
      %v954 = vpop.f32.mrf.mxu0
      %955 = vdwg.mxu0
      %v956 = vld [vmem:[#allocation2 + $0x6] sm:$0x1]
      %v957 = vadd.f32 %v956, %v953
      %vm958 = vcmask 122880
      %959 = vst.msk [vmem:[#allocation2 + $0x6] sm:$0x1] %vm958, %v957
      %v960 = vld [vmem:[#allocation2] sm:$0x7f]
      %v961 = vtanh.pop %v960
      %v962 = vadd.f32 %v961, %v414
      %v963 = vsel %vm423, %v962, 0.0
      %964 = vadd.xlane.f32.xlu0 %v963
      %v965 = vpop.xlane.xlu0 %964
      %v966 = vrcp.pop 16.0
      %v967 = vmul.f32 %v965, %v966
      %v968 = vsub.f32 %v962, %v967
      %v969 = vmul.f32 %v968, %v968
      %v970 = vsel %vm423, %v969, 0.0
      %971 = vadd.xlane.f32.xlu0 %v970
      %v972 = vpop.xlane.xlu0 %971
      %v973 = vmul.f32 %v972, %v966
      %v974 = vadd.f32 %v973, 1e-05
      %v975 = vrsqrt.pop %v974
      %v976 = vmul.f32 %v968, %v975
      %v977 = vld [vmem:[%s5] sm:$0x1]
      %v979 = vlaneseq
      %v980 = vshrl.u32 %v979, 7
      %v981 = vsub.s32 0, %v980
      %v982 = vrot.slane %v977, %v981
      %v984 = vmul.f32 %v976, %v982
      %v985 = vld [vmem:[%s6] sm:$0x1]
      %v987 = vlaneseq
      %v988 = vshrl.u32 %v987, 7
      %v989 = vsub.s32 0, %v988
      %v990 = vrot.slane %v985, %v989
      %v992 = vadd.f32 %v984, %v990
      %v993 = vld [vmem:[%s7] sm:$0xff]
      %v994 = vld [vmem:[%s7 + $0x8] sm:$0xff]
      %v995 = vld [vmem:[%s8] sm:$0x1]
      %v997 = vlaneseq
      %v998 = vshrl.u32 %v997, 7
      %v999 = vsub.s32 0, %v998
      %v1000 = vrot.slane %v995, %v999
      %v1003 = vsel %vm427, %v992, 0
      %1005 = vmatprep.subr.mxu0 0.0
      %1006 = vmatpush1.msra.mxu0 0.0
      %1007 = vmatprep.subr.mxu0 0.0
      %1008 = vmatpush1.msra.mxu0 0.0
      %1009 = vmatprep.subr.mxu0 0.0
      %1010 = vmatpush1.msra.mxu0 0.0
      %1011 = vmatprep.subr.mxu0 0.0
      %1012 = vmatpush1.msra.mxu0 0.0
      %1013 = vmatprep.subr.mxu0 0.0
      %1014 = vmatpush1.msra.mxu0 0.0
      %1015 = vmatprep.subr.mxu0 0.0
      %1016 = vmatpush1.msra.mxu0 0.0
      %1017 = vmatprep.subr.mxu0 0.0
      %1018 = vmatpush1.msra.mxu0 0.0
      %1019 = vmatprep.subr.mxu0 0.0
      %1020 = vmatpush1.msra.mxu0 0.0
      %1021 = vmatprep.subr.mxu0 0.0
      %1022 = vmatpush1.msra.mxu0 0.0
      %1023 = vmatprep.subr.mxu0 0.0
      %1024 = vmatpush1.msra.mxu0 0.0
      %1025 = vmatprep.subr.mxu0 0.0
      %1026 = vmatpush1.msra.mxu0 0.0
      %1027 = vmatprep.subr.mxu0 0.0
      %1028 = vmatpush1.msra.mxu0 0.0
      %1029 = vmatprep.subr.mxu0 0.0
      %1030 = vmatpush1.msra.mxu0 0.0
      %1031 = vmatprep.subr.mxu0 0.0
      %1032 = vmatpush1.msra.mxu0 0.0
      %1033 = vmatprep.subr.mxu0 0.0
      %1034 = vmatpush1.msra.mxu0 %v994
      %1035 = vmatprep.subr.mxu0 0.0
      %1036 = vmatpush1.msra.mxu0 %v993
      %1037 = vmatprep.subr.mxu0 0.0
      %1038 = vmatpush2.msra.mxu0 0.0
      %1039 = vmatprep.subr.mxu0 0.0
      %1040 = vmatpush2.msra.mxu0 0.0
      %1041 = vmatprep.subr.mxu0 0.0
      %1042 = vmatpush2.msra.mxu0 0.0
      %1043 = vmatprep.subr.mxu0 0.0
      %1044 = vmatpush2.msra.mxu0 0.0
      %1045 = vmatprep.subr.mxu0 0.0
      %1046 = vmatpush2.msra.mxu0 0.0
      %1047 = vmatprep.subr.mxu0 0.0
      %1048 = vmatpush2.msra.mxu0 0.0
      %1049 = vmatprep.subr.mxu0 0.0
      %1050 = vmatpush2.msra.mxu0 0.0
      %1051 = vmatprep.subr.mxu0 0.0
      %1052 = vmatpush2.msra.mxu0 0.0
      %1053 = vmatprep.subr.mxu0 0.0
      %1054 = vmatpush2.msra.mxu0 0.0
      %1055 = vmatprep.subr.mxu0 0.0
      %1056 = vmatpush2.msra.mxu0 0.0
      %1057 = vmatprep.subr.mxu0 0.0
      %1058 = vmatpush2.msra.mxu0 0.0
      %1059 = vmatprep.subr.mxu0 0.0
      %1060 = vmatpush2.msra.mxu0 0.0
      %1061 = vmatprep.subr.mxu0 0.0
      %1062 = vmatpush2.msra.mxu0 0.0
      %1063 = vmatprep.subr.mxu0 0.0
      %1064 = vmatpush2.msra.mxu0 0.0
      %1065 = vmatprep.subr.mxu0 0.0
      %1066 = vmatpush2.msra.mxu0 0.0
      %1067 = vmatprep.subr.mxu0 0.0
      %1068 = vmatpush2.msra.mxu0 0.0
      %1069 = vmatprep.mubr.f32.mxu0 0.0
      %1070 = vmatmul.mubr.f32.gmra.mxu0 %v1003
      %v1071 = vpop.f32.mrf.mxu0
      %v1072 = vadd.f32 %v1000, %v1071
      %v1073 = vpop.f32.mrf.mxu0
      %1074 = vdwg.mxu0
      %v1075 = vtanh.pop %v1072
      %vm1076 = vcmask 260096
      %1077 = vst.msk [vmem:[%s327] sm:$0x7f] %vm1076, %v1075
      %p1078 = scmp.lt.s32.totalorder %s20, 1
      %s1079 = scalar_select %p1078, %s20, 1
      %s1080 = smul.addr %s1079, 8
      %s1081 = scalar_lea.vmem %s9, %s1080
      // Predicated region
      $region57: #{_lambda_.6} parent=55 // pred_check
        %p1082 = pneg %p232
      $region58: #{_lambda_.6} parent=55 // pred_check_branch
        %1084 = sbr.rel (%p1082) target = $region60
      $region59: #{_lambda_.6} parent=55 // pred_region
        _
      $region60: #{_lambda_.6} parent=55 // pred_fallthru
        _
    $region56: #{_lambda_.6} parent=5 // pred_fallthru
      _
    %p1085 = scmp.le.s32.totalorder 2, %s15
    // Predicated region
    $region61: #{_lambda_.6} parent=5 // pred_check
      %p1086 = pneg %p1085
    $region62: #{_lambda_.6} parent=5 // pred_check_branch
      %1088 = sbr.rel (%p1086) target = $region64
    $region63: #{_lambda_.6} parent=5 // pred_region
      %s1089 = ssub.s32 %s15, 2
      // Predicated region
      $region65: #{_lambda_.6} parent=63 // pred_check
        %p1090 = pneg %p238
      $region66: #{_lambda_.6} parent=63 // pred_check_branch
        %1092 = sbr.rel (%p1090) target = $region68
      $region67: #{_lambda_.6} parent=63 // pred_region
        %p1093 = scmp.lt.s32.totalorder %s21, 1
        %s1094 = scalar_select %p1093, %s21, 1
        %s1095 = smul.addr %s1094, 8
        %s1096 = scalar_lea.vmem %s9, %s1095
      $region68: #{_lambda_.6} parent=63 // pred_fallthru
        _
    $region64: #{_lambda_.6} parent=5 // pred_fallthru
      _
  $region6: #{_lambda_.6} parent=0 // loop_footer
    %s19 = sadd.s32 1, %s15
  $region7: #{_lambda_.6} parent=0 // loop_footer_branch
    %14 = sbr.rel target = $region3
  $region8: #{_lambda_.6} parent=0 // loop_exit
    _

// kernel: _lambda_.9
$region0: #{_lambda_.9}
  #allocation0 [shape = 'u32[]', space=smem, size = 0x4, offset = 0x4, fixed_abs, tag = 'smem constant byte address 0x4 - core index']
  #allocation1 [shape = 'u32[144,128]{1,0:T(1,128)}', space=vmem, size = 0x12000, scoped, tag = 'internal scratch']
  %s0 = inlined_call_operand.vmem [shape: f32[2,12,16], index: 0, kind: input, shape index: {}]
  %s1 = inlined_call_operand.vmem [shape: f32[2,12,16], index: 1, kind: input, shape index: {}]
  %s2 = inlined_call_operand.vmem [shape: f32[32,16], index: 2, kind: input, shape index: {}]
  %s3 = inlined_call_operand.vmem [shape: f32[1,16], index: 3, kind: input, shape index: {}]
  %s4 = inlined_call_operand.vmem [shape: f32[2,12,16], index: 4, kind: output, shape index: {}]
  %s5 = sld [smem:[#allocation0]]
  $region49: #{_lambda_.9} parent=0
    _
  %s7 = ssub.s32 1, %s5
  %s8 = scalar_select 0, %s7, %s5
  loop: start=0, step=1, limit=4
  $region2: #{_lambda_.9} parent=0 // loop_pre_header
    _
  $region3: #{_lambda_.9} parent=0 // loop_header
    %s10 = sphi 0, %s14
    %p11 = scmp.ge.s32.totalorder %s10, 4
    %s20 = sphi 0, %s22
    %s23 = sphi 0, %s20
    %s24 = sphi 0, %s23
    %s40 = sphi 0, %s24
    %s46 = sphi 0, %s48
    %s49 = sphi 0, %s46
    %s50 = sphi 0, %s49
    %s66 = sphi 0, %s50
    %s70 = sphi 0, %s70
    %s72 = sphi 0, %s70
    %s73 = sphi 0, %s72
    %s87 = sphi 0, %s73
    %s91 = sphi 0, %s91
    %s93 = sphi 0, %s91
    %s94 = sphi 0, %s93
    %s108 = sphi 0, %s94
    %s114 = sphi 0, %s116
    %s117 = sphi 0, %s114
    %s118 = sphi 0, %s117
    %s134 = sphi 0, %s118
  $region4: #{_lambda_.9} parent=0 // loop_header_branch
    %13 = sbr.rel (%p11) target = $region8
  $region5: #{_lambda_.9} parent=0 // loop_body
    %s15 = ssub.s32 %s10, 1
    %s16 = ssub.s32 %s10, 2
    %s17 = sadd.s32 %s10, 1
    %s18 = ssub.s32 %s10, %s17
    %p19 = scmp.eq.s32.totalorder %s18, 0
    %s21 = sadd.s32 %s20, 1
    %s22 = scalar_select %p19, %s20, %s21
    %p25 = pneg %p19
    %p26 = scmp.eq.s32.totalorder %s10, 1
    %p27 = por %p25, %p26
    %p28 = scmp.ne.s32.totalorder %s20, %s23
    %p29 = scmp.eq.s32.totalorder %s10, 0
    %p30 = por %p28, %p29
    %p31 = scmp.ne.s32.totalorder %s20, %s23
    %p32 = scmp.eq.s32.totalorder %s15, 1
    %p33 = por %p31, %p32
    %p34 = scmp.ne.s32.totalorder %s23, %s24
    %p35 = scmp.eq.s32.totalorder %s15, 0
    %p36 = por %p34, %p35
    %p37 = scmp.ne.s32.totalorder %s23, %s24
    %p38 = scmp.eq.s32.totalorder %s16, 1
    %p39 = por %p37, %p38
    %p41 = scmp.ne.s32.totalorder %s24, %s40
    %p42 = scmp.eq.s32.totalorder %s16, 0
    %p43 = por %p41, %p42
    %s44 = ssub.s32 %s10, %s17
    %p45 = scmp.eq.s32.totalorder %s44, 0
    %s47 = sadd.s32 %s46, 1
    %s48 = scalar_select %p45, %s46, %s47
    %p51 = pneg %p45
    %p52 = scmp.eq.s32.totalorder %s10, 1
    %p53 = por %p51, %p52
    %p54 = scmp.ne.s32.totalorder %s46, %s49
    %p55 = scmp.eq.s32.totalorder %s10, 0
    %p56 = por %p54, %p55
    %p57 = scmp.ne.s32.totalorder %s46, %s49
    %p58 = scmp.eq.s32.totalorder %s15, 1
    %p59 = por %p57, %p58
    %p60 = scmp.ne.s32.totalorder %s49, %s50
    %p61 = scmp.eq.s32.totalorder %s15, 0
    %p62 = por %p60, %p61
    %p63 = scmp.ne.s32.totalorder %s49, %s50
    %p64 = scmp.eq.s32.totalorder %s16, 1
    %p65 = por %p63, %p64
    %p67 = scmp.ne.s32.totalorder %s50, %s66
    %p68 = scmp.eq.s32.totalorder %s16, 0
    %p69 = por %p67, %p68
    %s71 = sadd.s32 %s70, 1
    %p74 = scmp.eq.s32.totalorder %s10, 1
    %p75 = scmp.ne.s32.totalorder %s70, %s72
    %p76 = scmp.eq.s32.totalorder %s10, 0
    %p77 = por %p75, %p76
    %p78 = scmp.ne.s32.totalorder %s70, %s72
    %p79 = scmp.eq.s32.totalorder %s15, 1
    %p80 = por %p78, %p79
    %p81 = scmp.ne.s32.totalorder %s72, %s73
    %p82 = scmp.eq.s32.totalorder %s15, 0
    %p83 = por %p81, %p82
    %p84 = scmp.ne.s32.totalorder %s72, %s73
    %p85 = scmp.eq.s32.totalorder %s16, 1
    %p86 = por %p84, %p85
    %p88 = scmp.ne.s32.totalorder %s73, %s87
    %p89 = scmp.eq.s32.totalorder %s16, 0
    %p90 = por %p88, %p89
    %s92 = sadd.s32 %s91, 1
    %p95 = scmp.eq.s32.totalorder %s10, 1
    %p96 = scmp.ne.s32.totalorder %s91, %s93
    %p97 = scmp.eq.s32.totalorder %s10, 0
    %p98 = por %p96, %p97
    %p99 = scmp.ne.s32.totalorder %s91, %s93
    %p100 = scmp.eq.s32.totalorder %s15, 1
    %p101 = por %p99, %p100
    %p102 = scmp.ne.s32.totalorder %s93, %s94
    %p103 = scmp.eq.s32.totalorder %s15, 0
    %p104 = por %p102, %p103
    %p105 = scmp.ne.s32.totalorder %s93, %s94
    %p106 = scmp.eq.s32.totalorder %s16, 1
    %p107 = por %p105, %p106
    %p109 = scmp.ne.s32.totalorder %s94, %s108
    %p110 = scmp.eq.s32.totalorder %s16, 0
    %p111 = por %p109, %p110
    %s112 = ssub.s32 %s10, %s17
    %p113 = scmp.eq.s32.totalorder %s112, 0
    %s115 = sadd.s32 %s114, 1
    %s116 = scalar_select %p113, %s114, %s115
    %p119 = pneg %p113
    %p120 = scmp.eq.s32.totalorder %s10, 1
    %p121 = por %p119, %p120
    %p122 = scmp.ne.s32.totalorder %s114, %s117
    %p123 = scmp.eq.s32.totalorder %s10, 0
    %p124 = por %p122, %p123
    %p125 = scmp.ne.s32.totalorder %s114, %s117
    %p126 = scmp.eq.s32.totalorder %s15, 1
    %p127 = por %p125, %p126
    %p128 = scmp.ne.s32.totalorder %s117, %s118
    %p129 = scmp.eq.s32.totalorder %s15, 0
    %p130 = por %p128, %p129
    %p131 = scmp.ne.s32.totalorder %s117, %s118
    %p132 = scmp.eq.s32.totalorder %s16, 1
    %p133 = por %p131, %p132
    %p135 = scmp.ne.s32.totalorder %s118, %s134
    %p136 = scmp.eq.s32.totalorder %s16, 0
    %p137 = por %p135, %p136
    %p138 = scmp.le.s32.totalorder 1, %s10
    %p139 = scmp.lt.s32.totalorder %s10, 3
    %p140 = pnand %p138, %p139
    %p141 = pneg %p140
    // Predicated region
    $region9: #{_lambda_.9} parent=5 // pred_check
      _
    $region10: #{_lambda_.9} parent=5 // pred_check_branch
      %143 = sbr.rel (%p140) target = $region12
    $region11: #{_lambda_.9} parent=5 // pred_region
      %s144 = ssub.s32 %s10, 1
      // Predicated region
      $region13: #{_lambda_.9} parent=11 // pred_check
        %p145 = pneg %p83
      $region14: #{_lambda_.9} parent=11 // pred_check_branch
        %147 = sbr.rel (%p145) target = $region16
      $region15: #{_lambda_.9} parent=11 // pred_region
        _
      $region16: #{_lambda_.9} parent=11 // pred_fallthru
        _
      // Predicated region
      $region17: #{_lambda_.9} parent=11 // pred_check
        %p148 = pneg %p104
      $region18: #{_lambda_.9} parent=11 // pred_check_branch
        %150 = sbr.rel (%p148) target = $region20
      $region19: #{_lambda_.9} parent=11 // pred_region
        _
      $region20: #{_lambda_.9} parent=11 // pred_fallthru
        _
    $region12: #{_lambda_.9} parent=5 // pred_fallthru
      _
    %p151 = scmp.lt.s32.totalorder %s10, 2
    // Predicated region
    $region21: #{_lambda_.9} parent=5 // pred_check
      %p152 = pneg %p151
    $region22: #{_lambda_.9} parent=5 // pred_check_branch
      %154 = sbr.rel (%p152) target = $region24
    $region23: #{_lambda_.9} parent=5 // pred_region
      // Predicated region
      $region25: #{_lambda_.9} parent=23 // pred_check
        %p155 = pneg %p30
      $region26: #{_lambda_.9} parent=23 // pred_check_branch
        %157 = sbr.rel (%p155) target = $region28
      $region27: #{_lambda_.9} parent=23 // pred_region
        %p158 = scmp.lt.s32.totalorder %s10, 1
        %s159 = scalar_select %p158, %s10, 1
        %s160 = smul.addr %s159, 2
        %s161 = smul.addr %s160, 8
        %s162 = scalar_lea.vmem %s0, %s161
      $region28: #{_lambda_.9} parent=23 // pred_fallthru
        _
      // Predicated region
      $region29: #{_lambda_.9} parent=23 // pred_check
        %p163 = pneg %p56
      $region30: #{_lambda_.9} parent=23 // pred_check_branch
        %165 = sbr.rel (%p163) target = $region32
      $region31: #{_lambda_.9} parent=23 // pred_region
        %p166 = scmp.lt.s32.totalorder %s10, 1
        %s167 = scalar_select %p166, %s10, 1
        %s168 = smul.addr %s167, 2
        %s169 = smul.addr %s168, 8
        %s170 = scalar_lea.vmem %s1, %s169
      $region32: #{_lambda_.9} parent=23 // pred_fallthru
        _
    $region24: #{_lambda_.9} parent=5 // pred_fallthru
      _
    %p171 = scmp.le.s32.totalorder 1, %s10
    %p172 = scmp.lt.s32.totalorder %s10, 3
    %p173 = pnand %p171, %p172
    %p174 = pneg %p173
    // Predicated region
    $region33: #{_lambda_.9} parent=5 // pred_check
      _
    $region34: #{_lambda_.9} parent=5 // pred_check_branch
      %176 = sbr.rel (%p173) target = $region36
    $region35: #{_lambda_.9} parent=5 // pred_region
      %s177 = ssub.s32 %s10, 1
      %p178 = scmp.lt.s32.totalorder %s15, 1
      %s179 = scalar_select %p178, %s15, 1
      %s180 = smul.addr %s179, 2
      %s181 = smul.addr %s180, 8
      %s182 = scalar_lea.vmem %s0, %s181
      %p183 = pneg %p36
      %p184 = pneg %p33
      %p185 = scmp.lt.s32.totalorder %s15, 1
      %s186 = scalar_select %p185, %s15, 1
      %s187 = smul.addr %s186, 2
      %s188 = smul.addr %s187, 8
      %s189 = scalar_lea.vmem %s1, %s188
      %p190 = pneg %p62
      %p191 = pneg %p59
      %p192 = pneg %p83
      %p193 = pneg %p80
      %p194 = pneg %p104
      %p195 = pneg %p101
      %p196 = pneg %p130
      %p197 = pneg %p127
      %p198 = scmp.lt.s32.totalorder %s15, 1
      %s199 = scalar_select %p198, %s15, 1
      %s200 = smul.addr %s199, 2
      %s201 = smul.addr %s200, 8
      %s202 = scalar_lea.vmem %s4, %s201
      %p203 = scmp.lt.s32.totalorder %s15, 1
      %s204 = scalar_select %p203, %s15, 1
      %s205 = smul.addr %s204, 2
      %s206 = smul.addr %s205, 8
      %s207 = scalar_lea.vmem %s0, %s206
      %p208 = scmp.lt.s32.totalorder %s15, 1
      %s209 = scalar_select %p208, %s15, 1
      %s210 = smul.addr %s209, 2
      %s211 = smul.addr %s210, 8
      %s212 = scalar_lea.vmem %s1, %s211
      %p213 = scmp.lt.s32.totalorder %s15, 1
      %s214 = scalar_select %p213, %s15, 1
      %s215 = smul.addr %s214, 2
      %s216 = smul.addr %s215, 8
      %s217 = scalar_lea.vmem %s4, %s216
      %v218 = vld [vmem:[%s3] sm:$0x1]
      %v220 = vlaneseq
      %v221 = vshrl.u32 %v220, 7
      %v222 = vsub.s32 0, %v221
      %v223 = vrot.slane %v218, %v222
      %v225 = vadd.f32 %v223, 0.0
      %v226 = vld [vmem:[%s207] sm:$0xff]
      %v227 = vld [vmem:[%s207 + $0x8] sm:$0xf]
      %v228 = vld [vmem:[%s2] sm:$0xff]
      %v229 = vld [vmem:[%s2 + $0x8] sm:$0xff]
      %vm230 = vcmask 130048
      %v232 = vsel %vm230, %v226, 0
      %v235 = vsel %vm230, %v227, 0
      %237 = vmatprep.subr.mxu0 0.0
      %238 = vmatpush1.msra.mxu0 0.0
      %239 = vmatprep.subr.mxu0 0.0
      %240 = vmatpush1.msra.mxu0 0.0
      %241 = vmatprep.subr.mxu0 0.0
      %242 = vmatpush1.msra.mxu0 0.0
      %243 = vmatprep.subr.mxu0 0.0
      %244 = vmatpush1.msra.mxu0 0.0
      %245 = vmatprep.subr.mxu0 0.0
      %246 = vmatpush1.msra.mxu0 0.0
      %247 = vmatprep.subr.mxu0 0.0
      %248 = vmatpush1.msra.mxu0 0.0
      %249 = vmatprep.subr.mxu0 0.0
      %250 = vmatpush1.msra.mxu0 0.0
      %251 = vmatprep.subr.mxu0 0.0
      %252 = vmatpush1.msra.mxu0 0.0
      %253 = vmatprep.subr.mxu0 0.0
      %254 = vmatpush1.msra.mxu0 0.0
      %255 = vmatprep.subr.mxu0 0.0
      %256 = vmatpush1.msra.mxu0 0.0
      %257 = vmatprep.subr.mxu0 0.0
      %258 = vmatpush1.msra.mxu0 0.0
      %259 = vmatprep.subr.mxu0 0.0
      %260 = vmatpush1.msra.mxu0 0.0
      %261 = vmatprep.subr.mxu0 0.0
      %262 = vmatpush1.msra.mxu0 0.0
      %263 = vmatprep.subr.mxu0 0.0
      %264 = vmatpush1.msra.mxu0 0.0
      %265 = vmatprep.subr.mxu0 0.0
      %266 = vmatpush1.msra.mxu0 %v229
      %267 = vmatprep.subr.mxu0 0.0
      %268 = vmatpush1.msra.mxu0 %v228
      %269 = vmatprep.subr.mxu0 0.0
      %270 = vmatpush2.msra.mxu0 0.0
      %271 = vmatprep.subr.mxu0 0.0
      %272 = vmatpush2.msra.mxu0 0.0
      %273 = vmatprep.subr.mxu0 0.0
      %274 = vmatpush2.msra.mxu0 0.0
      %275 = vmatprep.subr.mxu0 0.0
      %276 = vmatpush2.msra.mxu0 0.0
      %277 = vmatprep.subr.mxu0 0.0
      %278 = vmatpush2.msra.mxu0 0.0
      %279 = vmatprep.subr.mxu0 0.0
      %280 = vmatpush2.msra.mxu0 0.0
      %281 = vmatprep.subr.mxu0 0.0
      %282 = vmatpush2.msra.mxu0 0.0
      %283 = vmatprep.subr.mxu0 0.0
      %284 = vmatpush2.msra.mxu0 0.0
      %285 = vmatprep.subr.mxu0 0.0
      %286 = vmatpush2.msra.mxu0 0.0
      %287 = vmatprep.subr.mxu0 0.0
      %288 = vmatpush2.msra.mxu0 0.0
      %289 = vmatprep.subr.mxu0 0.0
      %290 = vmatpush2.msra.mxu0 0.0
      %291 = vmatprep.subr.mxu0 0.0
      %292 = vmatpush2.msra.mxu0 0.0
      %293 = vmatprep.subr.mxu0 0.0
      %294 = vmatpush2.msra.mxu0 0.0
      %295 = vmatprep.subr.mxu0 0.0
      %296 = vmatpush2.msra.mxu0 0.0
      %297 = vmatprep.subr.mxu0 0.0
      %298 = vmatpush2.msra.mxu0 0.0
      %299 = vmatprep.subr.mxu0 0.0
      %300 = vmatpush2.msra.mxu0 0.0
      %301 = vmatprep.mubr.f32.mxu0 0.0
      %302 = vmatmul.mubr.f32.gmra.mxu0 %v232
      %v303 = vpop.f32.mrf.mxu0
      %v304 = vadd.f32 0.0, %v303
      %v305 = vpop.f32.mrf.mxu0
      %306 = vmatprep.mubr.f32.mxu0 0.0
      %307 = vmatmul.mubr.f32.gmra.mxu0 %v235
      %v308 = vpop.f32.mrf.mxu0
      %v309 = vadd.f32 0.0, %v308
      %v310 = vpop.f32.mrf.mxu0
      %311 = vdwg.mxu0
      %v312 = vadd.f32 %v225, %v304
      %v313 = vadd.f32 %v225, %v309
      %v314 = vld [vmem:[%s212] sm:$0xff]
      %v315 = vld [vmem:[%s212 + $0x8] sm:$0xf]
      %v316 = vld [vmem:[%s2 + $0x10] sm:$0xff]
      %v317 = vld [vmem:[%s2 + $0x18] sm:$0xff]
      %v319 = vsel %vm230, %v314, 0
      %v322 = vsel %vm230, %v315, 0
      %324 = vmatprep.subr.mxu0 0.0
      %325 = vmatpush1.msra.mxu0 0.0
      %326 = vmatprep.subr.mxu0 0.0
      %327 = vmatpush1.msra.mxu0 0.0
      %328 = vmatprep.subr.mxu0 0.0
      %329 = vmatpush1.msra.mxu0 0.0
      %330 = vmatprep.subr.mxu0 0.0
      %331 = vmatpush1.msra.mxu0 0.0
      %332 = vmatprep.subr.mxu0 0.0
      %333 = vmatpush1.msra.mxu0 0.0
      %334 = vmatprep.subr.mxu0 0.0
      %335 = vmatpush1.msra.mxu0 0.0
      %336 = vmatprep.subr.mxu0 0.0
      %337 = vmatpush1.msra.mxu0 0.0
      %338 = vmatprep.subr.mxu0 0.0
      %339 = vmatpush1.msra.mxu0 0.0
      %340 = vmatprep.subr.mxu0 0.0
      %341 = vmatpush1.msra.mxu0 0.0
      %342 = vmatprep.subr.mxu0 0.0
      %343 = vmatpush1.msra.mxu0 0.0
      %344 = vmatprep.subr.mxu0 0.0
      %345 = vmatpush1.msra.mxu0 0.0
      %346 = vmatprep.subr.mxu0 0.0
      %347 = vmatpush1.msra.mxu0 0.0
      %348 = vmatprep.subr.mxu0 0.0
      %349 = vmatpush1.msra.mxu0 0.0
      %350 = vmatprep.subr.mxu0 0.0
      %351 = vmatpush1.msra.mxu0 0.0
      %352 = vmatprep.subr.mxu0 0.0
      %353 = vmatpush1.msra.mxu0 %v317
      %354 = vmatprep.subr.mxu0 0.0
      %355 = vmatpush1.msra.mxu0 %v316
      %356 = vmatprep.subr.mxu0 0.0
      %357 = vmatpush2.msra.mxu0 0.0
      %358 = vmatprep.subr.mxu0 0.0
      %359 = vmatpush2.msra.mxu0 0.0
      %360 = vmatprep.subr.mxu0 0.0
      %361 = vmatpush2.msra.mxu0 0.0
      %362 = vmatprep.subr.mxu0 0.0
      %363 = vmatpush2.msra.mxu0 0.0
      %364 = vmatprep.subr.mxu0 0.0
      %365 = vmatpush2.msra.mxu0 0.0
      %366 = vmatprep.subr.mxu0 0.0
      %367 = vmatpush2.msra.mxu0 0.0
      %368 = vmatprep.subr.mxu0 0.0
      %369 = vmatpush2.msra.mxu0 0.0
      %370 = vmatprep.subr.mxu0 0.0
      %371 = vmatpush2.msra.mxu0 0.0
      %372 = vmatprep.subr.mxu0 0.0
      %373 = vmatpush2.msra.mxu0 0.0
      %374 = vmatprep.subr.mxu0 0.0
      %375 = vmatpush2.msra.mxu0 0.0
      %376 = vmatprep.subr.mxu0 0.0
      %377 = vmatpush2.msra.mxu0 0.0
      %378 = vmatprep.subr.mxu0 0.0
      %379 = vmatpush2.msra.mxu0 0.0
      %380 = vmatprep.subr.mxu0 0.0
      %381 = vmatpush2.msra.mxu0 0.0
      %382 = vmatprep.subr.mxu0 0.0
      %383 = vmatpush2.msra.mxu0 0.0
      %384 = vmatprep.subr.mxu0 0.0
      %385 = vmatpush2.msra.mxu0 0.0
      %386 = vmatprep.subr.mxu0 0.0
      %387 = vmatpush2.msra.mxu0 0.0
      %388 = vmatprep.mubr.f32.mxu0 0.0
      %389 = vmatmul.mubr.f32.gmra.mxu0 %v319
      %v390 = vpop.f32.mrf.mxu0
      %v391 = vadd.f32 0.0, %v390
      %v392 = vpop.f32.mrf.mxu0
      %393 = vmatprep.mubr.f32.mxu0 0.0
      %394 = vmatmul.mubr.f32.gmra.mxu0 %v322
      %v395 = vpop.f32.mrf.mxu0
      %v396 = vadd.f32 0.0, %v395
      %v397 = vpop.f32.mrf.mxu0
      %398 = vdwg.mxu0
      %v399 = vadd.f32 %v312, %v391
      %v400 = vadd.f32 %v313, %v396
      %401 = vst.msk [vmem:[%s217] sm:$0xff] %vm230, %v399
      %vm402 = vcmask 125952
      %403 = vst.msk [vmem:[%s217 + $0x8] sm:$0xf] %vm402, %v400
      %p404 = scmp.lt.s32.totalorder %s15, 1
      %s405 = scalar_select %p404, %s15, 1
      %s406 = smul.addr %s405, 2
      %s407 = smul.addr %s406, 8
      %s408 = scalar_lea.vmem %s4, %s407
      // Predicated region
      $region37: #{_lambda_.9} parent=35 // pred_check
        %p409 = pneg %p127
      $region38: #{_lambda_.9} parent=35 // pred_check_branch
        %411 = sbr.rel (%p409) target = $region40
      $region39: #{_lambda_.9} parent=35 // pred_region
        _
      $region40: #{_lambda_.9} parent=35 // pred_fallthru
        _
    $region36: #{_lambda_.9} parent=5 // pred_fallthru
      _
    %p412 = scmp.le.s32.totalorder 2, %s10
    // Predicated region
    $region41: #{_lambda_.9} parent=5 // pred_check
      %p413 = pneg %p412
    $region42: #{_lambda_.9} parent=5 // pred_check_branch
      %415 = sbr.rel (%p413) target = $region44
    $region43: #{_lambda_.9} parent=5 // pred_region
      %s416 = ssub.s32 %s10, 2
      // Predicated region
      $region45: #{_lambda_.9} parent=43 // pred_check
        %p417 = pneg %p133
      $region46: #{_lambda_.9} parent=43 // pred_check_branch
        %419 = sbr.rel (%p417) target = $region48
      $region47: #{_lambda_.9} parent=43 // pred_region
        %p420 = scmp.lt.s32.totalorder %s16, 1
        %s421 = scalar_select %p420, %s16, 1
        %s422 = smul.addr %s421, 2
        %s423 = smul.addr %s422, 8
        %s424 = scalar_lea.vmem %s4, %s423
      $region48: #{_lambda_.9} parent=43 // pred_fallthru
        _
    $region44: #{_lambda_.9} parent=5 // pred_fallthru
      _
  $region6: #{_lambda_.9} parent=0 // loop_footer
    %s14 = sadd.s32 1, %s10
  $region7: #{_lambda_.9} parent=0 // loop_footer_branch
    %9 = sbr.rel target = $region3
  $region8: #{_lambda_.9} parent=0 // loop_exit
    _

</llo_original>
